<compile_context>
chip_gen: v7x
topology: tpu7x:2x2x1
jax: 0.10.0
libtpu: 0.0.40
codegen_flags: <defaults>
</compile_context>

<pallas_src>
import functools
import math

import jax
import jax.numpy as jnp
from jax import lax
from jax.experimental import pallas as pl
from jax.experimental.pallas import tpu as pltpu

EPS = 1e-5
_NEG_INF = -1e30                      # finite "minus-inf": avoids (-inf)-(-inf) NaNs in tiled softmax
_VMEM_LIMIT = 32 * 1024 * 1024        # safe on v5e/v6e/v7x at these tile sizes; retune per generation


# ---------------- stage 1: RMSNorm(ln1) + fused QKV projection ----------------
def _ln_qkv_kernel(x_ref, g1_ref, wqkv_ref, qkv_ref):
    x = x_ref[0]                                                   # (Ts, D) f32
    rms = lax.rsqrt(jnp.mean(x * x, axis=-1, keepdims=True) + EPS)
    x_ln = (g1_ref[...] * (x * rms)).astype(jnp.bfloat16)          # cast only at MXU boundary
    qkv = jnp.dot(x_ln, wqkv_ref[...], preferred_element_type=jnp.float32)   # (Ts, 3D)
    qkv_ref[0] = qkv.astype(jnp.bfloat16)                          # one lane-dense (Ts, 3D) store


# ---------------- stage 2: causal flash attention, all heads in-kernel ----------------
def _flash_attn_kernel(q_ref, k_ref, v_ref, o_ref, m_sc, l_sc, acc_sc,
                       *, sm_scale, block_q, block_k, num_heads, head_dim):
    i = pl.program_id(1)              # q-tile index
    j = pl.program_id(2)              # kv-tile index (reduction axis, last in grid)

    @pl.when(j == 0)
    def _init():
        m_sc[...] = jnp.full_like(m_sc, _NEG_INF)
        l_sc[...] = jnp.zeros_like(l_sc)
        acc_sc[...] = jnp.zeros_like(acc_sc)

    # Skip KV tiles that lie entirely above the causal diagonal (~2x fewer score FLOPs).
    @pl.when(j * block_k <= i * block_q + (block_q - 1))
    def _compute():
        q = q_ref[0]                                               # (Tq, D) bf16
        k = k_ref[0]                                               # (Tk, D) bf16
        v = v_ref[0]                                               # (Tk, D) bf16
        row = i * block_q + lax.broadcasted_iota(jnp.int32, (block_q, block_k), 0)
        col = j * block_k + lax.broadcasted_iota(jnp.int32, (block_q, block_k), 1)
        causal = col <= row                                        # shared across heads
        for h in range(num_heads):                                 # static unrolled head loop
            sl = slice(h * head_dim, (h + 1) * head_dim)
            s = lax.dot_general(q[:, sl], k[:, sl], (((1,), (1,)), ((), ())),
                                preferred_element_type=jnp.float32) * sm_scale
            s = jnp.where(causal, s, _NEG_INF)

            m_prev = m_sc[h]                                       # (Tq, 1)
            m_new = jnp.maximum(m_prev, jnp.max(s, axis=-1, keepdims=True))
            alpha = jnp.exp(m_prev - m_new)
            p = jnp.exp(s - m_new)
            l_sc[h] = alpha * l_sc[h] + jnp.sum(p, axis=-1, keepdims=True)
            acc_sc[h] = alpha * acc_sc[h] + jnp.dot(
                p.astype(jnp.bfloat16), v[:, sl], preferred_element_type=jnp.float32)
            m_sc[h] = m_new

    @pl.when(j == pl.num_programs(2) - 1)
    def _finalize():
        pieces = []
        for h in range(num_heads):
            inv_l = pl.reciprocal(l_sc[h], approx=True)            # EUP slot, not VALU divide
            pieces.append(acc_sc[h] * inv_l)
        # Single lane-dense (Tq, D) store instead of H narrow stores.
        o_ref[0] = jnp.concatenate(pieces, axis=-1).astype(o_ref.dtype)


# ---------------- stage 3: Wo proj + residual + RMSNorm(ln2) + FFN + residual ----------------
def _out_ffn_kernel(x_ref, ctx_ref, g2_ref, wo_ref, w1_ref, w2_ref, o_ref):
    x = x_ref[0]                                                   # (Ts, D) f32
    ctx = ctx_ref[0]                                               # (Ts, D) bf16
    attn_out = jnp.dot(ctx, wo_ref[...], preferred_element_type=jnp.float32)
    h1 = x + attn_out                                              # residual 1 (f32)

    rms = lax.rsqrt(jnp.mean(h1 * h1, axis=-1, keepdims=True) + EPS)
    h_ln = (g2_ref[...] * (h1 * rms)).astype(jnp.bfloat16)

    u = jnp.dot(h_ln, w1_ref[...], preferred_element_type=jnp.float32)       # (Ts, d_ff)
    # Exact (erf) GELU — matches PyTorch F.gelu default numerics.
    u = 0.5 * u * (1.0 + lax.erf(u * jnp.float32(1.0 / math.sqrt(2.0))))
    y = jnp.dot(u.astype(jnp.bfloat16), w2_ref[...], preferred_element_type=jnp.float32)

    o_ref[0] = h1 + y                                              # residual 2


def _weight_spec(shape, single_buffer):
    index_map = lambda *_: (0,) * len(shape)
    if single_buffer:
        # Constant index_map -> never re-DMA'd; Buffered(1) drops the useless 2nd VMEM copy.
        return pl.BlockSpec(shape, index_map, pipeline_mode=pl.Buffered(1))
    return pl.BlockSpec(shape, index_map)


def transformer_block(x, params, *, num_heads, block_q=128, block_k=128,
                      block_s=128, single_buffer_weights=True):
    """x: (B, S, D) f32. params: dict of pre-transposed f32 weights (see init_params)."""
    B, S, D = x.shape
    d_ff = params["w1_t"].shape[1]
    assert D % num_heads == 0
    hd = D // num_heads

    block_s = min(block_s, S)
    block_q = min(block_q, S)
    block_k = min(block_k, S)
    assert S % block_s == 0 and S % block_q == 0 and S % block_k == 0
    assert block_s % 8 == 0 and block_q % 8 == 0 and block_k % 8 == 0
    assert D % 128 == 0

    f32, bf16 = jnp.float32, jnp.bfloat16

    # Fuse Wq/Wk/Wv into one (D, 3D) matrix; pre-cast all weights to bf16 (MXU native).
    wqkv = jnp.concatenate([params["wq_t"], params["wk_t"], params["wv_t"]],
                           axis=1).astype(bf16)
    wo = params["wo_t"].astype(bf16)
    w1 = params["w1_t"].astype(bf16)
    w2 = params["w2_t"].astype(bf16)
    g1 = params["g1"].astype(f32)
    g2 = params["g2"].astype(f32)

    wspec = functools.partial(_weight_spec, single_buffer=single_buffer_weights)
    cparams = lambda sem: pltpu.CompilerParams(dimension_semantics=sem,
                                               vmem_limit_bytes=_VMEM_LIMIT)

    # ---- stage 1: ln1 + fused QKV, grid over (B, S-tiles)  (2 parallel axes: megacore) ----
    n_s = S // block_s
    qkv = pl.pallas_call(
        _ln_qkv_kernel,
        out_shape=jax.ShapeDtypeStruct((B, S, 3 * D), bf16),
        grid_spec=pltpu.PrefetchScalarGridSpec(
            num_scalar_prefetch=0,
            grid=(B, n_s),
            in_specs=[
                pl.BlockSpec((1, block_s, D), lambda b, i: (b, i, 0)),   # x tile
                wspec((1, D)),                                           # ln1 gamma
                wspec((D, 3 * D)),                                       # fused Wqkv^T (bf16)
            ],
            out_specs=pl.BlockSpec((1, block_s, 3 * D), lambda b, i: (b, i, 0)),
        ),
        compiler_params=cparams(("parallel", "parallel")),
    )(x, g1, wqkv)

    # ---- stage 2: flash attention over (B, q-tiles, kv-tiles); heads looped in-kernel ----
    # qkv is passed three times with different last-dim block indices (q=0, k=1, v=2),
    # so no head split/merge transposes and no q/k/v slicing happen on the XLA side.
    n_q, n_k = S // block_q, S // block_k
    attn_kernel = functools.partial(_flash_attn_kernel,
                                    sm_scale=1.0 / math.sqrt(hd),
                                    block_q=block_q, block_k=block_k,
                                    num_heads=num_heads, head_dim=hd)
    ctx = pl.pallas_call(
        attn_kernel,
        out_shape=jax.ShapeDtypeStruct((B, S, D), bf16),
        grid_spec=pltpu.PrefetchScalarGridSpec(
            num_scalar_prefetch=0,
            grid=(B, n_q, n_k),
            in_specs=[
                pl.BlockSpec((1, block_q, D), lambda b, i, j: (b, i, 0)),   # Q columns
                pl.BlockSpec((1, block_k, D), lambda b, i, j: (b, j, 1)),   # K columns
                pl.BlockSpec((1, block_k, D), lambda b, i, j: (b, j, 2)),   # V columns
            ],
            out_specs=pl.BlockSpec((1, block_q, D), lambda b, i, j: (b, i, 0)),
            scratch_shapes=[
                pltpu.VMEM((num_heads, block_q, 1), jnp.float32),    # running max m
                pltpu.VMEM((num_heads, block_q, 1), jnp.float32),    # running denom l
                pltpu.VMEM((num_heads, block_q, hd), jnp.float32),   # f32 accumulators
            ],
        ),
        compiler_params=cparams(("parallel", "parallel", "arbitrary")),
    )(qkv, qkv, qkv)

    # ---- stage 3: Wo + residual + ln2 + FFN + residual, grid over (B, S-tiles) ----
    out = pl.pallas_call(
        _out_ffn_kernel,
        out_shape=jax.ShapeDtypeStruct((B, S, D), f32),
        grid_spec=pltpu.PrefetchScalarGridSpec(
            num_scalar_prefetch=0,
            grid=(B, n_s),
            in_specs=[
                pl.BlockSpec((1, block_s, D), lambda b, i: (b, i, 0)),   # x (residual)
                pl.BlockSpec((1, block_s, D), lambda b, i: (b, i, 0)),   # attention ctx
                wspec((1, D)),                                           # ln2 gamma
                wspec((D, D)),                                           # Wo^T
                wspec((D, d_ff)),                                        # W1^T
                wspec((d_ff, D)),                                        # W2^T
            ],
            out_specs=pl.BlockSpec((1, block_s, D), lambda b, i: (b, i, 0)),
        ),
        compiler_params=cparams(("parallel", "parallel")),
    )(x, ctx, g2, wo, w1, w2)

    return out


def init_params(key, d_model, num_heads, d_ff):
    """Deterministic synthetic parameters (PyTorch Linear stores (out,in);
    we store the transposed (in,out) matrices so kernels do x @ W)."""
    ks = jax.random.split(key, 6)
    std = 0.02
    in_proj = jax.random.normal(ks[0], (3 * d_model, d_model), jnp.float32) * std
    wq, wk, wv = jnp.split(in_proj, 3, axis=0)
    wo = jax.random.normal(ks[1], (d_model, d_model), jnp.float32) * std
    w1 = jax.random.normal(ks[2], (d_ff, d_model), jnp.float32) * std
    w2 = jax.random.normal(ks[3], (d_model, d_ff), jnp.float32) * std
    return {
        "wq_t": wq.T, "wk_t": wk.T, "wv_t": wv.T, "wo_t": wo.T,
        "w1_t": w1.T, "w2_t": w2.T,
        "g1": jnp.ones((1, d_model), jnp.float32),
        "g2": jnp.ones((1, d_model), jnp.float32),
    }


def reference_forward(x, params, *, num_heads):
    """Pure f32 JAX reference of the PyTorch TransformerBlock forward."""
    B, S, D = x.shape
    hd = D // num_heads

    def rmsnorm(v, g):
        return g * (v * lax.rsqrt(jnp.mean(v * v, axis=-1, keepdims=True) + EPS))

    x_ln = rmsnorm(x, params["g1"][0])
    q = x_ln @ params["wq_t"]
    k = x_ln @ params["wk_t"]
    v = x_ln @ params["wv_t"]
    q = q.reshape(B, S, num_heads, hd).transpose(0, 2, 1, 3)
    k = k.reshape(B, S, num_heads, hd).transpose(0, 2, 1, 3)
    v = v.reshape(B, S, num_heads, hd).transpose(0, 2, 1, 3)
    s = jnp.einsum("bhqd,bhkd->bhqk", q, k) / math.sqrt(hd)
    mask = jnp.tril(jnp.ones((S, S), bool))
    s = jnp.where(mask, s, -jnp.inf)
    p = jax.nn.softmax(s, axis=-1)
    ctx = jnp.einsum("bhqk,bhkd->bhqd", p, v).transpose(0, 2, 1, 3).reshape(B, S, D)
    h1 = x + ctx @ params["wo_t"]
    h_ln = rmsnorm(h1, params["g2"][0])
    u = h_ln @ params["w1_t"]
    u = 0.5 * u * (1.0 + lax.erf(u / math.sqrt(2.0)))   # exact GELU (F.gelu default)
    return h1 + u @ params["w2_t"]


if __name__ == "__main__":
    # Small but tile-exercising shapes: B=2, S=256, d_model=256, heads=4 (hd=64), d_ff=512.
    B, S, D, H, FF = 2, 256, 256, 4, 512
    key = jax.random.PRNGKey(0)
    kx, kp = jax.random.split(key)
    x = jax.random.normal(kx, (B, S, D), jnp.float32)
    params = init_params(kp, D, H, FF)

    try:
        out = transformer_block(x, params, num_heads=H, single_buffer_weights=True)
        out = jax.block_until_ready(out)
    except Exception:
        # Fallback for JAX versions without BlockSpec(pipeline_mode=pl.Buffered(1)) support.
        out = transformer_block(x, params, num_heads=H, single_buffer_weights=False)
        out = jax.block_until_ready(out)

    ref = reference_forward(x, params, num_heads=H)
    assert out.shape == (B, S, D)
    # bf16 MXU operands (f32 accumulation) vs the pure-f32 reference -> loosened tolerance.
    assert jnp.allclose(out, ref, rtol=2e-2, atol=2e-2), "mismatch vs reference"

    print("KERNEL_OK")
</pallas_src>

<mosaic_0001>
module attributes {stable_mosaic.version = 11 : i64} {
  func.func @_ln_qkv_kernel(%arg0: i32, %arg1: i32, %arg2: memref<1x128x256xf32, #tpu.memory_space<vmem>>, %arg3: memref<1x256xf32, #tpu.memory_space<vmem>>, %arg4: memref<256x768xbf16, #tpu.memory_space<vmem>>, %arg5: memref<1x128x768xbf16, #tpu.memory_space<vmem>>) attributes {dimension_semantics = [#tpu.dimension_semantics<parallel>, #tpu.dimension_semantics<parallel>], iteration_bounds = array<i64: 2, 2>, scalar_prefetch = 0 : i64, scratch_operands = 0 : i64, tpu.core_type = #tpu.core_type<tc>, window_params = [{transform_indices = @transform_0, window_bounds = array<i64: 1, 128, 256>}, {pipeline_mode = #tpu.pipeline_mode<synchronous>, transform_indices = @transform_1, window_bounds = array<i64: 1, 256>}, {pipeline_mode = #tpu.pipeline_mode<synchronous>, transform_indices = @transform_2, window_bounds = array<i64: 256, 768>}, {transform_indices = @transform_3, window_bounds = array<i64: 1, 128, 768>}]} {
    %c0 = arith.constant 0 : index
    %c0_0 = arith.constant 0 : index
    %c0_1 = arith.constant 0 : index
    %0 = vector.load %arg2[%c0, %c0_0, %c0_1] : memref<1x128x256xf32, #tpu.memory_space<vmem>>, vector<1x128x256xf32>
    %1 = vector.shape_cast %0 : vector<1x128x256xf32> to vector<128x256xf32>
    %2 = arith.mulf %1, %1 : vector<128x256xf32>
    %cst = arith.constant dense<0.000000e+00> : vector<128xf32>
    %3 = vector.multi_reduction <add>, %2, %cst [1] : vector<128x256xf32> to vector<128xf32>
    %4 = vector.shape_cast %3 : vector<128xf32> to vector<128x1xf32>
    %cst_2 = arith.constant 2.560000e+02 : f32
    %5 = vector.broadcast %cst_2 : f32 to vector<128x1xf32>
    %6 = arith.divf %4, %5 : vector<128x1xf32>
    %cst_3 = arith.constant 9.99999974E-6 : f32
    %7 = vector.broadcast %cst_3 : f32 to vector<128x1xf32>
    %8 = arith.addf %6, %7 : vector<128x1xf32>
    %9 = math.rsqrt %8 : vector<128x1xf32>
    %c0_4 = arith.constant 0 : index
    %c0_5 = arith.constant 0 : index
    %10 = vector.load %arg3[%c0_4, %c0_5] : memref<1x256xf32, #tpu.memory_space<vmem>>, vector<1x256xf32>
    %11 = vector.broadcast %9 : vector<128x1xf32> to vector<128x256xf32>
    %12 = arith.mulf %1, %11 : vector<128x256xf32>
    %13 = vector.broadcast %10 : vector<1x256xf32> to vector<128x256xf32>
    %14 = arith.mulf %13, %12 : vector<128x256xf32>
    %15 = arith.truncf %14 : vector<128x256xf32> to vector<128x256xbf16>
    %c0_6 = arith.constant 0 : index
    %c0_7 = arith.constant 0 : index
    %16 = vector.load %arg4[%c0_6, %c0_7] : memref<256x768xbf16, #tpu.memory_space<vmem>>, vector<256x768xbf16>
    %cst_8 = arith.constant dense<0.000000e+00> : vector<128x768xf32>
    %17 = tpu.matmul %15, %16, %cst_8 {dimension_numbers = #tpu.dot_dimension_numbers<[1], [0], [0], [1], [0, 0, 1, 1], [], []>} : vector<128x256xbf16>, vector<256x768xbf16>, vector<128x768xf32> -> vector<128x768xf32>
    %18 = arith.truncf %17 : vector<128x768xf32> to vector<128x768xbf16>
    %c0_9 = arith.constant 0 : index
    %c0_10 = arith.constant 0 : index
    %c0_11 = arith.constant 0 : index
    %19 = vector.load %arg5[%c0_9, %c0_10, %c0_11] : memref<1x128x768xbf16, #tpu.memory_space<vmem>>, vector<1x128x768xbf16>
    %20 = vector.shape_cast %19 : vector<1x128x768xbf16> to vector<128x768xbf16>
    %21 = vector.shape_cast %18 : vector<128x768xbf16> to vector<1x128x768xbf16>
    tpu.vector_store %arg5[%c0_9, %c0_10, %c0_11], %21 {strides = array<i32>} : memref<1x128x768xbf16, #tpu.memory_space<vmem>>, vector<1x128x768xbf16>,
    return
  }
  func.func @transform_0(%arg0: i32, %arg1: i32) -> (i32, i32, i32) {
    %c0_i32 = arith.constant 0 : i32
    %c0_i32_0 = arith.constant 0 : i32
    return %arg0, %arg1, %c0_i32 : i32, i32, i32
  }
  func.func @transform_1(%arg0: i32, %arg1: i32) -> (i32, i32) {
    %c0_i32 = arith.constant 0 : i32
    %c0_i32_0 = arith.constant 0 : i32
    %c0_i32_1 = arith.constant 0 : i32
    return %c0_i32, %c0_i32_0 : i32, i32
  }
  func.func @transform_2(%arg0: i32, %arg1: i32) -> (i32, i32) {
    %c0_i32 = arith.constant 0 : i32
    %c0_i32_0 = arith.constant 0 : i32
    %c0_i32_1 = arith.constant 0 : i32
    return %c0_i32, %c0_i32_0 : i32, i32
  }
  func.func @transform_3(%arg0: i32, %arg1: i32) -> (i32, i32, i32) {
    %c0_i32 = arith.constant 0 : i32
    %c0_i32_0 = arith.constant 0 : i32
    return %arg0, %arg1, %c0_i32 : i32, i32, i32
  }
}

module attributes {stable_mosaic.version = 11 : i64} {
  func.func @_ln_qkv_kernel(%arg0: i32, %arg1: i32, %arg2: memref<1x128x256xf32, #tpu.memory_space<vmem>>, %arg3: memref<1x256xf32, #tpu.memory_space<vmem>>, %arg4: memref<256x768xbf16, #tpu.memory_space<vmem>>, %arg5: memref<1x128x768xbf16, #tpu.memory_space<vmem>>) attributes {dimension_semantics = [#tpu.dimension_semantics<parallel>, #tpu.dimension_semantics<parallel>], iteration_bounds = array<i64: 2, 2>, scalar_prefetch = 0 : i64, scratch_operands = 0 : i64, tpu.core_type = #tpu.core_type<tc>, window_params = [{transform_indices = @transform_0, window_bounds = array<i64: 1, 128, 256>}, {pipeline_mode = #tpu.pipeline_mode<synchronous>, transform_indices = @transform_1, window_bounds = array<i64: 1, 256>}, {pipeline_mode = #tpu.pipeline_mode<synchronous>, transform_indices = @transform_2, window_bounds = array<i64: 256, 768>}, {transform_indices = @transform_3, window_bounds = array<i64: 1, 128, 768>}]} {
    %c0 = arith.constant 0 : index
    %c0_0 = arith.constant 0 : index
    %c0_1 = arith.constant 0 : index
    %0 = vector.load %arg2[%c0, %c0_0, %c0_1] : memref<1x128x256xf32, #tpu.memory_space<vmem>>, vector<1x128x256xf32>
    %1 = vector.shape_cast %0 : vector<1x128x256xf32> to vector<128x256xf32>
    %2 = arith.mulf %1, %1 : vector<128x256xf32>
    %cst = arith.constant dense<0.000000e+00> : vector<128xf32>
    %3 = vector.multi_reduction <add>, %2, %cst [1] : vector<128x256xf32> to vector<128xf32>
    %4 = vector.shape_cast %3 : vector<128xf32> to vector<128x1xf32>
    %cst_2 = arith.constant 2.560000e+02 : f32
    %5 = vector.broadcast %cst_2 : f32 to vector<128x1xf32>
    %6 = arith.divf %4, %5 : vector<128x1xf32>
    %cst_3 = arith.constant 9.99999974E-6 : f32
    %7 = vector.broadcast %cst_3 : f32 to vector<128x1xf32>
    %8 = arith.addf %6, %7 : vector<128x1xf32>
    %9 = math.rsqrt %8 : vector<128x1xf32>
    %c0_4 = arith.constant 0 : index
    %c0_5 = arith.constant 0 : index
    %10 = vector.load %arg3[%c0_4, %c0_5] : memref<1x256xf32, #tpu.memory_space<vmem>>, vector<1x256xf32>
    %11 = vector.broadcast %9 : vector<128x1xf32> to vector<128x256xf32>
    %12 = arith.mulf %1, %11 : vector<128x256xf32>
    %13 = vector.broadcast %10 : vector<1x256xf32> to vector<128x256xf32>
    %14 = arith.mulf %13, %12 : vector<128x256xf32>
    %15 = arith.truncf %14 : vector<128x256xf32> to vector<128x256xbf16>
    %c0_6 = arith.constant 0 : index
    %c0_7 = arith.constant 0 : index
    %16 = vector.load %arg4[%c0_6, %c0_7] : memref<256x768xbf16, #tpu.memory_space<vmem>>, vector<256x768xbf16>
    %cst_8 = arith.constant dense<0.000000e+00> : vector<128x768xf32>
    %17 = tpu.matmul %15, %16, %cst_8 {dimension_numbers = #tpu.dot_dimension_numbers<[1], [0], [0], [1], [0, 0, 1, 1], [], []>} : vector<128x256xbf16>, vector<256x768xbf16>, vector<128x768xf32> -> vector<128x768xf32>
    %18 = arith.truncf %17 : vector<128x768xf32> to vector<128x768xbf16>
    %c0_9 = arith.constant 0 : index
    %c0_10 = arith.constant 0 : index
    %c0_11 = arith.constant 0 : index
    %19 = vector.load %arg5[%c0_9, %c0_10, %c0_11] : memref<1x128x768xbf16, #tpu.memory_space<vmem>>, vector<1x128x768xbf16>
    %20 = vector.shape_cast %19 : vector<1x128x768xbf16> to vector<128x768xbf16>
    %21 = vector.shape_cast %18 : vector<128x768xbf16> to vector<1x128x768xbf16>
    tpu.vector_store %arg5[%c0_9, %c0_10, %c0_11], %21 {strides = array<i32>} : memref<1x128x768xbf16, #tpu.memory_space<vmem>>, vector<1x128x768xbf16>,
    return
  }
  func.func @transform_0(%arg0: i32, %arg1: i32) -> (i32, i32, i32) {
    %c0_i32 = arith.constant 0 : i32
    %c0_i32_0 = arith.constant 0 : i32
    return %arg0, %arg1, %c0_i32 : i32, i32, i32
  }
  func.func @transform_1(%arg0: i32, %arg1: i32) -> (i32, i32) {
    %c0_i32 = arith.constant 0 : i32
    %c0_i32_0 = arith.constant 0 : i32
    %c0_i32_1 = arith.constant 0 : i32
    return %c0_i32, %c0_i32_0 : i32, i32
  }
  func.func @transform_2(%arg0: i32, %arg1: i32) -> (i32, i32) {
    %c0_i32 = arith.constant 0 : i32
    %c0_i32_0 = arith.constant 0 : i32
    %c0_i32_1 = arith.constant 0 : i32
    return %c0_i32, %c0_i32_0 : i32, i32
  }
  func.func @transform_3(%arg0: i32, %arg1: i32) -> (i32, i32, i32) {
    %c0_i32 = arith.constant 0 : i32
    %c0_i32_0 = arith.constant 0 : i32
    return %arg0, %arg1, %c0_i32 : i32, i32, i32
  }
}

</mosaic_0001>

<llo_original>
// kernel: tpu_custom_call.1
$region0: #{tpu_custom_call.1}
  #allocation0 [shape = 'u32[]', space=smem, size = 0x4, offset = 0x4, fixed_abs, tag = 'smem constant byte address 0x4 - core index']
  #allocation1 [shape = 'u32[144,128]{1,0:T(1,128)}', space=vmem, size = 0x12000, scoped, tag = 'internal scratch']
  %s0 = inlined_call_operand.hbm [shape: f32[2,256,256], index: 0, kind: input, shape index: {}]
  %s1 = inlined_call_operand.vmem [shape: f32[1,256], index: 1, kind: input, shape index: {}]
  %s2 = inlined_call_operand.hbm [shape: bf16[256,768], index: 2, kind: input, shape index: {}]
  %s3 = inlined_call_operand.hbm [shape: bf16[2,256,768], index: 3, kind: output, shape index: {}]
  %s4 = sld [smem:[#allocation0]]
  $region53: #{tpu_custom_call.1} parent=0
    _
  %s6 = ssub.s32 1, %s4
  %s7 = scalar_select 0, %s6, %s4
  $region1: #{tpu_custom_call.1} parent=0
    #allocation2 [shape = 'u8[262144]{0}', space=vmem, size = 0x40000, scoped, tag = 'input window, operand 0']
    #allocation3 [shape = 's32[2]{0}', space=sflag, size = 0x8, scoped, tag = 'scoped memory for tpu_custom_call.1']
    #allocation4 [shape = 's32[2]{0}', space=sflag, size = 0x8, scoped, tag = 'scoped memory for tpu_custom_call.1']
    #allocation5 [shape = 'u8[393216]{0}', space=vmem, size = 0x60000, scoped, tag = 'input window, operand 2, single buffered']
    #allocation6 [shape = 's32[1]{0}', space=sflag, size = 0x4, scoped, tag = 'scoped memory for tpu_custom_call.1']
    #allocation7 [shape = 'u8[393216]{0}', space=vmem, size = 0x60000, scoped, tag = 'output window, operand 0']
    %8 = vsyncpa [#allocation3], 0
    %s9 = scalar_lea.sflag [#allocation3], 1
    %10 = vsyncpa %s9, 0
    %11 = vsyncpa [#allocation6], 0
    %12 = vsyncpa [#allocation4], 0
    %s13 = scalar_lea.sflag [#allocation4], 1
    %14 = vsyncpa %s13, 0
    loop: start=0, step=1, limit=6
    $region2: #{tpu_custom_call.1} parent=1 // loop_pre_header
      _
    $region3: #{tpu_custom_call.1} parent=1 // loop_header
      %s16 = sphi 0, %s20
      %p17 = scmp.ge.s32.totalorder %s16, 6
      %s23 = sphi 0, %s35
      %s24 = sphi 0, %s31
      %s25 = sphi 0, %s23
      %s26 = sphi 0, %s24
      %s27 = sphi 0, %s25
      %s28 = sphi 0, %s26
      %s40 = sphi 0, %s42
      %s43 = sphi 0, %s40
      %s44 = sphi 0, %s43
      %s60 = sphi 0, %s44
      %s64 = sphi 0, %s64
      %s66 = sphi 0, %s64
      %s67 = sphi 0, %s66
      %s81 = sphi 0, %s67
      %s85 = sphi 0, %s85
      %s87 = sphi 0, %s85
      %s88 = sphi 0, %s87
      %s102 = sphi 0, %s88
      %s110 = sphi 0, %s112
      %s113 = sphi 0, %s110
      %s114 = sphi 0, %s113
      %s130 = sphi 0, %s114
    $region4: #{tpu_custom_call.1} parent=1 // loop_header_branch
      %19 = sbr.rel (%p17) target = $region8
    $region5: #{tpu_custom_call.1} parent=1 // loop_body
      %s21 = ssub.s32 %s16, 1
      %s22 = ssub.s32 %s16, 2
      %s29 = sadd.s32 1, %s24
      %p30 = scmp.ge.s32.totalorder %s29, 2
      %s31 = scalar_select %p30, 0, %s29
      %s32 = sadd.s32 1, %s23
      %s33 = scalar_select %p30, %s32, %s23
      %p34 = scmp.ge.s32.totalorder %s33, 2
      %s35 = scalar_select %p34, 0, %s33
      %s36 = ssub.s32 %s23, %s35
      %s37 = ssub.s32 %s24, %s31
      %s38 = sor.u32 %s36, %s37
      %p39 = scmp.eq.s32.totalorder %s38, 0
      %s41 = sadd.s32 %s40, 1
      %s42 = scalar_select %p39, %s40, %s41
      %p45 = pneg %p39
      %p46 = scmp.eq.s32.totalorder %s16, 3
      %p47 = por %p45, %p46
      %p48 = scmp.ne.s32.totalorder %s40, %s43
      %p49 = scmp.eq.s32.totalorder %s16, 0
      %p50 = por %p48, %p49
      %p51 = scmp.ne.s32.totalorder %s40, %s43
      %p52 = scmp.eq.s32.totalorder %s21, 3
      %p53 = por %p51, %p52
      %p54 = scmp.ne.s32.totalorder %s43, %s44
      %p55 = scmp.eq.s32.totalorder %s21, 0
      %p56 = por %p54, %p55
      %p57 = scmp.ne.s32.totalorder %s43, %s44
      %p58 = scmp.eq.s32.totalorder %s22, 3
      %p59 = por %p57, %p58
      %p61 = scmp.ne.s32.totalorder %s44, %s60
      %p62 = scmp.eq.s32.totalorder %s22, 0
      %p63 = por %p61, %p62
      %s65 = sadd.s32 %s64, 1
      %p68 = scmp.eq.s32.totalorder %s16, 3
      %p69 = scmp.ne.s32.totalorder %s64, %s66
      %p70 = scmp.eq.s32.totalorder %s16, 0
      %p71 = por %p69, %p70
      %p72 = scmp.ne.s32.totalorder %s64, %s66
      %p73 = scmp.eq.s32.totalorder %s21, 3
      %p74 = por %p72, %p73
      %p75 = scmp.ne.s32.totalorder %s66, %s67
      %p76 = scmp.eq.s32.totalorder %s21, 0
      %p77 = por %p75, %p76
      %p78 = scmp.ne.s32.totalorder %s66, %s67
      %p79 = scmp.eq.s32.totalorder %s22, 3
      %p80 = por %p78, %p79
      %p82 = scmp.ne.s32.totalorder %s67, %s81
      %p83 = scmp.eq.s32.totalorder %s22, 0
      %p84 = por %p82, %p83
      %s86 = sadd.s32 %s85, 1
      %p89 = scmp.eq.s32.totalorder %s16, 3
      %p90 = scmp.ne.s32.totalorder %s85, %s87
      %p91 = scmp.eq.s32.totalorder %s16, 0
      %p92 = por %p90, %p91
      %p93 = scmp.ne.s32.totalorder %s85, %s87
      %p94 = scmp.eq.s32.totalorder %s21, 3
      %p95 = por %p93, %p94
      %p96 = scmp.ne.s32.totalorder %s87, %s88
      %p97 = scmp.eq.s32.totalorder %s21, 0
      %p98 = por %p96, %p97
      %p99 = scmp.ne.s32.totalorder %s87, %s88
      %p100 = scmp.eq.s32.totalorder %s22, 3
      %p101 = por %p99, %p100
      %p103 = scmp.ne.s32.totalorder %s88, %s102
      %p104 = scmp.eq.s32.totalorder %s22, 0
      %p105 = por %p103, %p104
      %s106 = ssub.s32 %s23, %s35
      %s107 = ssub.s32 %s24, %s31
      %s108 = sor.u32 %s106, %s107
      %p109 = scmp.eq.s32.totalorder %s108, 0
      %s111 = sadd.s32 %s110, 1
      %s112 = scalar_select %p109, %s110, %s111
      %p115 = pneg %p109
      %p116 = scmp.eq.s32.totalorder %s16, 3
      %p117 = por %p115, %p116
      %p118 = scmp.ne.s32.totalorder %s110, %s113
      %p119 = scmp.eq.s32.totalorder %s16, 0
      %p120 = por %p118, %p119
      %p121 = scmp.ne.s32.totalorder %s110, %s113
      %p122 = scmp.eq.s32.totalorder %s21, 3
      %p123 = por %p121, %p122
      %p124 = scmp.ne.s32.totalorder %s113, %s114
      %p125 = scmp.eq.s32.totalorder %s21, 0
      %p126 = por %p124, %p125
      %p127 = scmp.ne.s32.totalorder %s113, %s114
      %p128 = scmp.eq.s32.totalorder %s22, 3
      %p129 = por %p127, %p128
      %p131 = scmp.ne.s32.totalorder %s114, %s130
      %p132 = scmp.eq.s32.totalorder %s22, 0
      %p133 = por %p131, %p132
      %p134 = scmp.le.s32.totalorder 1, %s16
      %p135 = scmp.lt.s32.totalorder %s16, 5
      %p136 = pnand %p134, %p135
      %p137 = pneg %p136
      // Predicated region
      $region9: #{tpu_custom_call.1} parent=5 // pred_check
        _
      $region10: #{tpu_custom_call.1} parent=5 // pred_check_branch
        %139 = sbr.rel (%p136) target = $region12
      $region11: #{tpu_custom_call.1} parent=5 // pred_region
        %s140 = ssub.s32 %s16, 1
        // Predicated region
        $region13: #{tpu_custom_call.1} parent=11 // pred_check
          %p141 = pneg %p77
        $region14: #{tpu_custom_call.1} parent=11 // pred_check_branch
          %143 = sbr.rel (%p141) target = $region16
        $region15: #{tpu_custom_call.1} parent=11 // pred_region
          _
        $region16: #{tpu_custom_call.1} parent=11 // pred_fallthru
          _
        // Predicated region
        $region17: #{tpu_custom_call.1} parent=11 // pred_check
          %p144 = pneg %p98
        $region18: #{tpu_custom_call.1} parent=11 // pred_check_branch
          %146 = sbr.rel (%p144) target = $region20
        $region19: #{tpu_custom_call.1} parent=11 // pred_region
          %s148 = ssub.s32 12288, 12288
          %149 = vsyncadd [#allocation6], %s148
          %s150 = sshll.u32 [#allocation5], 4
          %s151 = int_to_ptr.vmem [resolvable:$true] %s150
          %156 = dma.hbm_to_vmem [thread:$0]  %s2, 12288, %s151, [#allocation6], 384, 384, 24
        $region20: #{tpu_custom_call.1} parent=11 // pred_fallthru
          _
      $region12: #{tpu_custom_call.1} parent=5 // pred_fallthru
        _
      %p157 = scmp.lt.s32.totalorder %s16, 4
      // Predicated region
      $region21: #{tpu_custom_call.1} parent=5 // pred_check
        %p158 = pneg %p157
      $region22: #{tpu_custom_call.1} parent=5 // pred_check_branch
        %160 = sbr.rel (%p158) target = $region24
      $region23: #{tpu_custom_call.1} parent=5 // pred_region
        // Predicated region
        $region25: #{tpu_custom_call.1} parent=23 // pred_check
          %p161 = pneg %p50
        $region26: #{tpu_custom_call.1} parent=23 // pred_check_branch
          %163 = sbr.rel (%p161) target = $region28
        $region27: #{tpu_custom_call.1} parent=23 // pred_region
          %s164 = sand.u32 %s40, 1
          %s165 = scalar_lea.sflag [#allocation3], %s164
          %s166 = sand.u32 %s40, 1
          %s167 = smul.addr %s166, 256
          %s168 = scalar_lea.vmem [#allocation2], %s167
          %s169 = smul.u32 16, %s24
          %s171 = ssub.s32 4096, 4096
          %172 = vsyncadd %s165, %s171
          %s173 = smul.addr %s169, 2
          %s174 = smul.addr %s23, 64
          %s175 = sadd.s32 %s173, %s174
          %s176 = smul.addr %s175, 128
          %s177 = scalar_lea.hbm %s0, %s176
          %s178 = sshll.u32 %s168, 4
          %s179 = int_to_ptr.vmem [resolvable:$true] %s178
          %184 = dma.hbm_to_vmem [thread:$0]  %s177, 4096, %s179, %s165, 256, 256, 16
        $region28: #{tpu_custom_call.1} parent=23 // pred_fallthru
          _
      $region24: #{tpu_custom_call.1} parent=5 // pred_fallthru
        _
      %p185 = scmp.le.s32.totalorder 1, %s16
      %p186 = scmp.lt.s32.totalorder %s16, 5
      %p187 = pnand %p185, %p186
      %p188 = pneg %p187
      // Predicated region
      $region29: #{tpu_custom_call.1} parent=5 // pred_check
        _
      $region30: #{tpu_custom_call.1} parent=5 // pred_check_branch
        %190 = sbr.rel (%p187) target = $region32
      $region31: #{tpu_custom_call.1} parent=5 // pred_region
        %s191 = ssub.s32 %s16, 1
        %s192 = sand.u32 %s43, 1
        %s193 = scalar_lea.sflag [#allocation3], %s192
        %s194 = sand.u32 %s43, 1
        %s195 = smul.addr %s194, 256
        %s196 = scalar_lea.vmem [#allocation2], %s195
        // Predicated region
        $region33: #{tpu_custom_call.1} parent=31 // pred_check
          %p197 = pneg %p56
        $region34: #{tpu_custom_call.1} parent=31 // pred_check_branch
          %199 = sbr.rel (%p197) target = $region36
        $region35: #{tpu_custom_call.1} parent=31 // pred_region
          %200 = dma.done %s193, 4096
        $region36: #{tpu_custom_call.1} parent=31 // pred_fallthru
          _
        // Predicated region
        $region37: #{tpu_custom_call.1} parent=31 // pred_check
          %p201 = pneg %p98
        $region38: #{tpu_custom_call.1} parent=31 // pred_check_branch
          %203 = sbr.rel (%p201) target = $region40
        $region39: #{tpu_custom_call.1} parent=31 // pred_region
          %204 = dma.done [#allocation6], 12288
        $region40: #{tpu_custom_call.1} parent=31 // pred_fallthru
          _
        %s205 = sand.u32 %s43, 1
        %s206 = scalar_lea.sflag [#allocation3], %s205
        %s207 = sand.u32 %s43, 1
        %s208 = smul.addr %s207, 256
        %s209 = scalar_lea.vmem [#allocation2], %s208
        %p210 = pneg %p56
        %p211 = pneg %p53
        %p212 = pneg %p77
        %p213 = pneg %p74
        %p214 = pneg %p98
        %p215 = pneg %p95
        %p216 = pneg %p126
        %p217 = pneg %p123
        %s218 = sand.u32 %s113, 1
        %s219 = scalar_lea.sflag [#allocation4], %s218
        %s220 = sand.u32 %s113, 1
        %s221 = smul.addr %s220, 384
        %s222 = scalar_lea.vmem [#allocation7], %s221
        %s223 = smul.u32 16, %s26
        %s224 = smul.u32 16, %s26
        %v225 = vld [vmem:[%s196] sm:$0xff]
        %v226 = vld [vmem:[%s196 + $0x8] sm:$0xff]
        %v227 = vld [vmem:[%s196 + $0x10] sm:$0xff]
        %v228 = vld [vmem:[%s196 + $0x18] sm:$0xff]
        %v229 = vld [vmem:[%s196 + $0x20] sm:$0xff]
        %v230 = vld [vmem:[%s196 + $0x28] sm:$0xff]
        %v231 = vld [vmem:[%s196 + $0x30] sm:$0xff]
        %v232 = vld [vmem:[%s196 + $0x38] sm:$0xff]
        %v233 = vld [vmem:[%s196 + $0x40] sm:$0xff]
        %v234 = vld [vmem:[%s196 + $0x48] sm:$0xff]
        %v235 = vld [vmem:[%s196 + $0x50] sm:$0xff]
        %v236 = vld [vmem:[%s196 + $0x58] sm:$0xff]
        %v237 = vld [vmem:[%s196 + $0x60] sm:$0xff]
        %v238 = vld [vmem:[%s196 + $0x68] sm:$0xff]
        %v239 = vld [vmem:[%s196 + $0x70] sm:$0xff]
        %v240 = vld [vmem:[%s196 + $0x78] sm:$0xff]
        %v241 = vld [vmem:[%s196 + $0x80] sm:$0xff]
        %v242 = vld [vmem:[%s196 + $0x88] sm:$0xff]
        %v243 = vld [vmem:[%s196 + $0x90] sm:$0xff]
        %v244 = vld [vmem:[%s196 + $0x98] sm:$0xff]
        %v245 = vld [vmem:[%s196 + $0xa0] sm:$0xff]
        %v246 = vld [vmem:[%s196 + $0xa8] sm:$0xff]
        %v247 = vld [vmem:[%s196 + $0xb0] sm:$0xff]
        %v248 = vld [vmem:[%s196 + $0xb8] sm:$0xff]
        %v249 = vld [vmem:[%s196 + $0xc0] sm:$0xff]
        %v250 = vld [vmem:[%s196 + $0xc8] sm:$0xff]
        %v251 = vld [vmem:[%s196 + $0xd0] sm:$0xff]
        %v252 = vld [vmem:[%s196 + $0xd8] sm:$0xff]
        %v253 = vld [vmem:[%s196 + $0xe0] sm:$0xff]
        %v254 = vld [vmem:[%s196 + $0xe8] sm:$0xff]
        %v255 = vld [vmem:[%s196 + $0xf0] sm:$0xff]
        %v256 = vld [vmem:[%s196 + $0xf8] sm:$0xff]
        %v257 = vmul.f32 %v225, %v225
        %v258 = vmul.f32 %v226, %v226
        %v259 = vmul.f32 %v227, %v227
        %v260 = vmul.f32 %v228, %v228
        %v261 = vmul.f32 %v229, %v229
        %v262 = vmul.f32 %v230, %v230
        %v263 = vmul.f32 %v231, %v231
        %v264 = vmul.f32 %v232, %v232
        %v265 = vmul.f32 %v233, %v233
        %v266 = vmul.f32 %v234, %v234
        %v267 = vmul.f32 %v235, %v235
        %v268 = vmul.f32 %v236, %v236
        %v269 = vmul.f32 %v237, %v237
        %v270 = vmul.f32 %v238, %v238
        %v271 = vmul.f32 %v239, %v239
        %v272 = vmul.f32 %v240, %v240
        %v273 = vmul.f32 %v241, %v241
        %v274 = vmul.f32 %v242, %v242
        %v275 = vmul.f32 %v243, %v243
        %v276 = vmul.f32 %v244, %v244
        %v277 = vmul.f32 %v245, %v245
        %v278 = vmul.f32 %v246, %v246
        %v279 = vmul.f32 %v247, %v247
        %v280 = vmul.f32 %v248, %v248
        %v281 = vmul.f32 %v249, %v249
        %v282 = vmul.f32 %v250, %v250
        %v283 = vmul.f32 %v251, %v251
        %v284 = vmul.f32 %v252, %v252
        %v285 = vmul.f32 %v253, %v253
        %v286 = vmul.f32 %v254, %v254
        %v287 = vmul.f32 %v255, %v255
        %v288 = vmul.f32 %v256, %v256
        %v289 = vadd.f32 %v257, %v258
        %290 = vadd.xlane.f32.xlu0 %v289
        %v291 = vpop.xlane.xlu0 %290
        %v292 = vadd.f32 %v259, %v260
        %293 = vadd.xlane.f32.xlu0 %v292
        %v294 = vpop.xlane.xlu0 %293
        %v295 = vadd.f32 %v261, %v262
        %296 = vadd.xlane.f32.xlu0 %v295
        %v297 = vpop.xlane.xlu0 %296
        %v298 = vadd.f32 %v263, %v264
        %299 = vadd.xlane.f32.xlu0 %v298
        %v300 = vpop.xlane.xlu0 %299
        %v301 = vadd.f32 %v265, %v266
        %302 = vadd.xlane.f32.xlu0 %v301
        %v303 = vpop.xlane.xlu0 %302
        %v304 = vadd.f32 %v267, %v268
        %305 = vadd.xlane.f32.xlu0 %v304
        %v306 = vpop.xlane.xlu0 %305
        %v307 = vadd.f32 %v269, %v270
        %308 = vadd.xlane.f32.xlu0 %v307
        %v309 = vpop.xlane.xlu0 %308
        %v310 = vadd.f32 %v271, %v272
        %311 = vadd.xlane.f32.xlu0 %v310
        %v312 = vpop.xlane.xlu0 %311
        %v313 = vadd.f32 %v273, %v274
        %314 = vadd.xlane.f32.xlu0 %v313
        %v315 = vpop.xlane.xlu0 %314
        %v316 = vadd.f32 %v275, %v276
        %317 = vadd.xlane.f32.xlu0 %v316
        %v318 = vpop.xlane.xlu0 %317
        %v319 = vadd.f32 %v277, %v278
        %320 = vadd.xlane.f32.xlu0 %v319
        %v321 = vpop.xlane.xlu0 %320
        %v322 = vadd.f32 %v279, %v280
        %323 = vadd.xlane.f32.xlu0 %v322
        %v324 = vpop.xlane.xlu0 %323
        %v325 = vadd.f32 %v281, %v282
        %326 = vadd.xlane.f32.xlu0 %v325
        %v327 = vpop.xlane.xlu0 %326
        %v328 = vadd.f32 %v283, %v284
        %329 = vadd.xlane.f32.xlu0 %v328
        %v330 = vpop.xlane.xlu0 %329
        %v331 = vadd.f32 %v285, %v286
        %332 = vadd.xlane.f32.xlu0 %v331
        %v333 = vpop.xlane.xlu0 %332
        %v334 = vadd.f32 %v287, %v288
        %335 = vadd.xlane.f32.xlu0 %v334
        %v336 = vpop.xlane.xlu0 %335
        %v337 = vrcp.pop 256.0
        %v338 = vmul.f32 %v291, %v337
        %v339 = vmul.f32 %v294, %v337
        %v340 = vmul.f32 %v297, %v337
        %v341 = vmul.f32 %v300, %v337
        %v342 = vmul.f32 %v303, %v337
        %v343 = vmul.f32 %v306, %v337
        %v344 = vmul.f32 %v309, %v337
        %v345 = vmul.f32 %v312, %v337
        %v346 = vmul.f32 %v315, %v337
        %v347 = vmul.f32 %v318, %v337
        %v348 = vmul.f32 %v321, %v337
        %v349 = vmul.f32 %v324, %v337
        %v350 = vmul.f32 %v327, %v337
        %v351 = vmul.f32 %v330, %v337
        %v352 = vmul.f32 %v333, %v337
        %v353 = vmul.f32 %v336, %v337
        %v354 = vadd.f32 %v338, 1e-05
        %v355 = vadd.f32 %v339, 1e-05
        %v356 = vadd.f32 %v340, 1e-05
        %v357 = vadd.f32 %v341, 1e-05
        %v358 = vadd.f32 %v342, 1e-05
        %v359 = vadd.f32 %v343, 1e-05
        %v360 = vadd.f32 %v344, 1e-05
        %v361 = vadd.f32 %v345, 1e-05
        %v362 = vadd.f32 %v346, 1e-05
        %v363 = vadd.f32 %v347, 1e-05
        %v364 = vadd.f32 %v348, 1e-05
        %v365 = vadd.f32 %v349, 1e-05
        %v366 = vadd.f32 %v350, 1e-05
        %v367 = vadd.f32 %v351, 1e-05
        %v368 = vadd.f32 %v352, 1e-05
        %v369 = vadd.f32 %v353, 1e-05
        %v370 = vrsqrt.pop %v354
        %v371 = vrsqrt.pop %v355
        %v372 = vrsqrt.pop %v356
        %v373 = vrsqrt.pop %v357
        %v374 = vrsqrt.pop %v358
        %v375 = vrsqrt.pop %v359
        %v376 = vrsqrt.pop %v360
        %v377 = vrsqrt.pop %v361
        %v378 = vrsqrt.pop %v362
        %v379 = vrsqrt.pop %v363
        %v380 = vrsqrt.pop %v364
        %v381 = vrsqrt.pop %v365
        %v382 = vrsqrt.pop %v366
        %v383 = vrsqrt.pop %v367
        %v384 = vrsqrt.pop %v368
        %v385 = vrsqrt.pop %v369
        %v386 = vld [vmem:[%s1] sm:$0x3]
        %v387 = vmul.f32 %v225, %v370
        %v388 = vmul.f32 %v226, %v370
        %v389 = vmul.f32 %v227, %v371
        %v390 = vmul.f32 %v228, %v371
        %v391 = vmul.f32 %v229, %v372
        %v392 = vmul.f32 %v230, %v372
        %v393 = vmul.f32 %v231, %v373
        %v394 = vmul.f32 %v232, %v373
        %v395 = vmul.f32 %v233, %v374
        %v396 = vmul.f32 %v234, %v374
        %v397 = vmul.f32 %v235, %v375
        %v398 = vmul.f32 %v236, %v375
        %v399 = vmul.f32 %v237, %v376
        %v400 = vmul.f32 %v238, %v376
        %v401 = vmul.f32 %v239, %v377
        %v402 = vmul.f32 %v240, %v377
        %v403 = vmul.f32 %v241, %v378
        %v404 = vmul.f32 %v242, %v378
        %v405 = vmul.f32 %v243, %v379
        %v406 = vmul.f32 %v244, %v379
        %v407 = vmul.f32 %v245, %v380
        %v408 = vmul.f32 %v246, %v380
        %v409 = vmul.f32 %v247, %v381
        %v410 = vmul.f32 %v248, %v381
        %v411 = vmul.f32 %v249, %v382
        %v412 = vmul.f32 %v250, %v382
        %v413 = vmul.f32 %v251, %v383
        %v414 = vmul.f32 %v252, %v383
        %v415 = vmul.f32 %v253, %v384
        %v416 = vmul.f32 %v254, %v384
        %v417 = vmul.f32 %v255, %v385
        %v418 = vmul.f32 %v256, %v385
        %v420 = vlaneseq
        %v421 = vshrl.u32 %v420, 7
        %v422 = vsub.s32 0, %v421
        %v423 = vrot.slane %v386, %v422
        %v424 = vlaneseq
        %v425 = vshrl.u32 %v424, 7
        %v426 = vsub.s32 1, %v425
        %v427 = vrot.slane %v386, %v426
        %v430 = vmul.f32 %v423, %v387
        %v431 = vmul.f32 %v427, %v388
        %v432 = vmul.f32 %v423, %v389
        %v433 = vmul.f32 %v427, %v390
        %v434 = vmul.f32 %v423, %v391
        %v435 = vmul.f32 %v427, %v392
        %v436 = vmul.f32 %v423, %v393
        %v437 = vmul.f32 %v427, %v394
        %v438 = vmul.f32 %v423, %v395
        %v439 = vmul.f32 %v427, %v396
        %v440 = vmul.f32 %v423, %v397
        %v441 = vmul.f32 %v427, %v398
        %v442 = vmul.f32 %v423, %v399
        %v443 = vmul.f32 %v427, %v400
        %v444 = vmul.f32 %v423, %v401
        %v445 = vmul.f32 %v427, %v402
        %v446 = vmul.f32 %v423, %v403
        %v447 = vmul.f32 %v427, %v404
        %v448 = vmul.f32 %v423, %v405
        %v449 = vmul.f32 %v427, %v406
        %v450 = vmul.f32 %v423, %v407
        %v451 = vmul.f32 %v427, %v408
        %v452 = vmul.f32 %v423, %v409
        %v453 = vmul.f32 %v427, %v410
        %v454 = vmul.f32 %v423, %v411
        %v455 = vmul.f32 %v427, %v412
        %v456 = vmul.f32 %v423, %v413
        %v457 = vmul.f32 %v427, %v414
        %v458 = vmul.f32 %v423, %v415
        %v459 = vmul.f32 %v427, %v416
        %v460 = vmul.f32 %v423, %v417
        %v461 = vmul.f32 %v427, %v418
        %v462 = vpack.c.bf16 %v432, %v430
        %v463 = vpack.c.bf16 %v433, %v431
        %v464 = vpack.c.bf16 %v436, %v434
        %v465 = vpack.c.bf16 %v437, %v435
        %v466 = vpack.c.bf16 %v440, %v438
        %v467 = vpack.c.bf16 %v441, %v439
        %v468 = vpack.c.bf16 %v444, %v442
        %v469 = vpack.c.bf16 %v445, %v443
        %v470 = vpack.c.bf16 %v448, %v446
        %v471 = vpack.c.bf16 %v449, %v447
        %v472 = vpack.c.bf16 %v452, %v450
        %v473 = vpack.c.bf16 %v453, %v451
        %v474 = vpack.c.bf16 %v456, %v454
        %v475 = vpack.c.bf16 %v457, %v455
        %v476 = vpack.c.bf16 %v460, %v458
        %v477 = vpack.c.bf16 %v461, %v459
        %v478 = vld [vmem:[#allocation5] sm:$0xff]
        %v479 = vld [vmem:[#allocation5 + $0x8] sm:$0xff]
        %v480 = vld [vmem:[#allocation5 + $0x10] sm:$0xff]
        %v481 = vld [vmem:[#allocation5 + $0x18] sm:$0xff]
        %v482 = vld [vmem:[#allocation5 + $0x20] sm:$0xff]
        %v483 = vld [vmem:[#allocation5 + $0x28] sm:$0xff]
        %v484 = vld [vmem:[#allocation5 + $0x30] sm:$0xff]
        %v485 = vld [vmem:[#allocation5 + $0x38] sm:$0xff]
        %v486 = vld [vmem:[#allocation5 + $0x40] sm:$0xff]
        %v487 = vld [vmem:[#allocation5 + $0x48] sm:$0xff]
        %v488 = vld [vmem:[#allocation5 + $0x50] sm:$0xff]
        %v489 = vld [vmem:[#allocation5 + $0x58] sm:$0xff]
        %v490 = vld [vmem:[#allocation5 + $0x60] sm:$0xff]
        %v491 = vld [vmem:[#allocation5 + $0x68] sm:$0xff]
        %v492 = vld [vmem:[#allocation5 + $0x70] sm:$0xff]
        %v493 = vld [vmem:[#allocation5 + $0x78] sm:$0xff]
        %v494 = vld [vmem:[#allocation5 + $0x80] sm:$0xff]
        %v495 = vld [vmem:[#allocation5 + $0x88] sm:$0xff]
        %v496 = vld [vmem:[#allocation5 + $0x90] sm:$0xff]
        %v497 = vld [vmem:[#allocation5 + $0x98] sm:$0xff]
        %v498 = vld [vmem:[#allocation5 + $0xa0] sm:$0xff]
        %v499 = vld [vmem:[#allocation5 + $0xa8] sm:$0xff]
        %v500 = vld [vmem:[#allocation5 + $0xb0] sm:$0xff]
        %v501 = vld [vmem:[#allocation5 + $0xb8] sm:$0xff]
        %v502 = vld [vmem:[#allocation5 + $0xc0] sm:$0xff]
        %v503 = vld [vmem:[#allocation5 + $0xc8] sm:$0xff]
        %v504 = vld [vmem:[#allocation5 + $0xd0] sm:$0xff]
        %v505 = vld [vmem:[#allocation5 + $0xd8] sm:$0xff]
        %v506 = vld [vmem:[#allocation5 + $0xe0] sm:$0xff]
        %v507 = vld [vmem:[#allocation5 + $0xe8] sm:$0xff]
        %v508 = vld [vmem:[#allocation5 + $0xf0] sm:$0xff]
        %v509 = vld [vmem:[#allocation5 + $0xf8] sm:$0xff]
        %v510 = vld [vmem:[#allocation5 + $0x100] sm:$0xff]
        %v511 = vld [vmem:[#allocation5 + $0x108] sm:$0xff]
        %v512 = vld [vmem:[#allocation5 + $0x110] sm:$0xff]
        %v513 = vld [vmem:[#allocation5 + $0x118] sm:$0xff]
        %v514 = vld [vmem:[#allocation5 + $0x120] sm:$0xff]
        %v515 = vld [vmem:[#allocation5 + $0x128] sm:$0xff]
        %v516 = vld [vmem:[#allocation5 + $0x130] sm:$0xff]
        %v517 = vld [vmem:[#allocation5 + $0x138] sm:$0xff]
        %v518 = vld [vmem:[#allocation5 + $0x140] sm:$0xff]
        %v519 = vld [vmem:[#allocation5 + $0x148] sm:$0xff]
        %v520 = vld [vmem:[#allocation5 + $0x150] sm:$0xff]
        %v521 = vld [vmem:[#allocation5 + $0x158] sm:$0xff]
        %v522 = vld [vmem:[#allocation5 + $0x160] sm:$0xff]
        %v523 = vld [vmem:[#allocation5 + $0x168] sm:$0xff]
        %v524 = vld [vmem:[#allocation5 + $0x170] sm:$0xff]
        %v525 = vld [vmem:[#allocation5 + $0x178] sm:$0xff]
        %v526 = vld [vmem:[#allocation5 + $0x180] sm:$0xff]
        %v527 = vld [vmem:[#allocation5 + $0x188] sm:$0xff]
        %v528 = vld [vmem:[#allocation5 + $0x190] sm:$0xff]
        %v529 = vld [vmem:[#allocation5 + $0x198] sm:$0xff]
        %v530 = vld [vmem:[#allocation5 + $0x1a0] sm:$0xff]
        %v531 = vld [vmem:[#allocation5 + $0x1a8] sm:$0xff]
        %v532 = vld [vmem:[#allocation5 + $0x1b0] sm:$0xff]
        %v533 = vld [vmem:[#allocation5 + $0x1b8] sm:$0xff]
        %v534 = vld [vmem:[#allocation5 + $0x1c0] sm:$0xff]
        %v535 = vld [vmem:[#allocation5 + $0x1c8] sm:$0xff]
        %v536 = vld [vmem:[#allocation5 + $0x1d0] sm:$0xff]
        %v537 = vld [vmem:[#allocation5 + $0x1d8] sm:$0xff]
        %v538 = vld [vmem:[#allocation5 + $0x1e0] sm:$0xff]
        %v539 = vld [vmem:[#allocation5 + $0x1e8] sm:$0xff]
        %v540 = vld [vmem:[#allocation5 + $0x1f0] sm:$0xff]
        %v541 = vld [vmem:[#allocation5 + $0x1f8] sm:$0xff]
        %v542 = vld [vmem:[#allocation5 + $0x200] sm:$0xff]
        %v543 = vld [vmem:[#allocation5 + $0x208] sm:$0xff]
        %v544 = vld [vmem:[#allocation5 + $0x210] sm:$0xff]
        %v545 = vld [vmem:[#allocation5 + $0x218] sm:$0xff]
        %v546 = vld [vmem:[#allocation5 + $0x220] sm:$0xff]
        %v547 = vld [vmem:[#allocation5 + $0x228] sm:$0xff]
        %v548 = vld [vmem:[#allocation5 + $0x230] sm:$0xff]
        %v549 = vld [vmem:[#allocation5 + $0x238] sm:$0xff]
        %v550 = vld [vmem:[#allocation5 + $0x240] sm:$0xff]
        %v551 = vld [vmem:[#allocation5 + $0x248] sm:$0xff]
        %v552 = vld [vmem:[#allocation5 + $0x250] sm:$0xff]
        %v553 = vld [vmem:[#allocation5 + $0x258] sm:$0xff]
        %v554 = vld [vmem:[#allocation5 + $0x260] sm:$0xff]
        %v555 = vld [vmem:[#allocation5 + $0x268] sm:$0xff]
        %v556 = vld [vmem:[#allocation5 + $0x270] sm:$0xff]
        %v557 = vld [vmem:[#allocation5 + $0x278] sm:$0xff]
        %v558 = vld [vmem:[#allocation5 + $0x280] sm:$0xff]
        %v559 = vld [vmem:[#allocation5 + $0x288] sm:$0xff]
        %v560 = vld [vmem:[#allocation5 + $0x290] sm:$0xff]
        %v561 = vld [vmem:[#allocation5 + $0x298] sm:$0xff]
        %v562 = vld [vmem:[#allocation5 + $0x2a0] sm:$0xff]
        %v563 = vld [vmem:[#allocation5 + $0x2a8] sm:$0xff]
        %v564 = vld [vmem:[#allocation5 + $0x2b0] sm:$0xff]
        %v565 = vld [vmem:[#allocation5 + $0x2b8] sm:$0xff]
        %v566 = vld [vmem:[#allocation5 + $0x2c0] sm:$0xff]
        %v567 = vld [vmem:[#allocation5 + $0x2c8] sm:$0xff]
        %v568 = vld [vmem:[#allocation5 + $0x2d0] sm:$0xff]
        %v569 = vld [vmem:[#allocation5 + $0x2d8] sm:$0xff]
        %v570 = vld [vmem:[#allocation5 + $0x2e0] sm:$0xff]
        %v571 = vld [vmem:[#allocation5 + $0x2e8] sm:$0xff]
        %v572 = vld [vmem:[#allocation5 + $0x2f0] sm:$0xff]
        %v573 = vld [vmem:[#allocation5 + $0x2f8] sm:$0xff]
        %v670 = vunpack.c.l.b16 %v478
        %v671 = vunpack.c.h.b16 %v478
        %v672 = vunpack.c.l.b16 %v479
        %v673 = vunpack.c.h.b16 %v479
        %v674 = vunpack.c.l.b16 %v480
        %v675 = vunpack.c.h.b16 %v480
        %v676 = vunpack.c.l.b16 %v481
        %v677 = vunpack.c.h.b16 %v481
        %v678 = vunpack.c.l.b16 %v482
        %v679 = vunpack.c.h.b16 %v482
        %v680 = vunpack.c.l.b16 %v483
        %v681 = vunpack.c.h.b16 %v483
        %v682 = vunpack.c.l.b16 %v484
        %v683 = vunpack.c.h.b16 %v484
        %v684 = vunpack.c.l.b16 %v485
        %v685 = vunpack.c.h.b16 %v485
        %v686 = vunpack.c.l.b16 %v486
        %v687 = vunpack.c.h.b16 %v486
        %v688 = vunpack.c.l.b16 %v487
        %v689 = vunpack.c.h.b16 %v487
        %v690 = vunpack.c.l.b16 %v488
        %v691 = vunpack.c.h.b16 %v488
        %v692 = vunpack.c.l.b16 %v489
        %v693 = vunpack.c.h.b16 %v489
        %v694 = vunpack.c.l.b16 %v490
        %v695 = vunpack.c.h.b16 %v490
        %v696 = vunpack.c.l.b16 %v491
        %v697 = vunpack.c.h.b16 %v491
        %v698 = vunpack.c.l.b16 %v492
        %v699 = vunpack.c.h.b16 %v492
        %v700 = vunpack.c.l.b16 %v493
        %v701 = vunpack.c.h.b16 %v493
        %v702 = vunpack.c.l.b16 %v494
        %v703 = vunpack.c.h.b16 %v494
        %v704 = vunpack.c.l.b16 %v495
        %v705 = vunpack.c.h.b16 %v495
        %v706 = vunpack.c.l.b16 %v496
        %v707 = vunpack.c.h.b16 %v496
        %v708 = vunpack.c.l.b16 %v497
        %v709 = vunpack.c.h.b16 %v497
        %v710 = vunpack.c.l.b16 %v498
        %v711 = vunpack.c.h.b16 %v498
        %v712 = vunpack.c.l.b16 %v499
        %v713 = vunpack.c.h.b16 %v499
        %v714 = vunpack.c.l.b16 %v500
        %v715 = vunpack.c.h.b16 %v500
        %v716 = vunpack.c.l.b16 %v501
        %v717 = vunpack.c.h.b16 %v501
        %v718 = vunpack.c.l.b16 %v502
        %v719 = vunpack.c.h.b16 %v502
        %v720 = vunpack.c.l.b16 %v503
        %v721 = vunpack.c.h.b16 %v503
        %v722 = vunpack.c.l.b16 %v504
        %v723 = vunpack.c.h.b16 %v504
        %v724 = vunpack.c.l.b16 %v505
        %v725 = vunpack.c.h.b16 %v505
        %v726 = vunpack.c.l.b16 %v506
        %v727 = vunpack.c.h.b16 %v506
        %v728 = vunpack.c.l.b16 %v507
        %v729 = vunpack.c.h.b16 %v507
        %v730 = vunpack.c.l.b16 %v508
        %v731 = vunpack.c.h.b16 %v508
        %v732 = vunpack.c.l.b16 %v509
        %v733 = vunpack.c.h.b16 %v509
        %v734 = vunpack.c.l.b16 %v510
        %v735 = vunpack.c.h.b16 %v510
        %v736 = vunpack.c.l.b16 %v511
        %v737 = vunpack.c.h.b16 %v511
        %v738 = vunpack.c.l.b16 %v512
        %v739 = vunpack.c.h.b16 %v512
        %v740 = vunpack.c.l.b16 %v513
        %v741 = vunpack.c.h.b16 %v513
        %v742 = vunpack.c.l.b16 %v514
        %v743 = vunpack.c.h.b16 %v514
        %v744 = vunpack.c.l.b16 %v515
        %v745 = vunpack.c.h.b16 %v515
        %v746 = vunpack.c.l.b16 %v516
        %v747 = vunpack.c.h.b16 %v516
        %v748 = vunpack.c.l.b16 %v517
        %v749 = vunpack.c.h.b16 %v517
        %v750 = vunpack.c.l.b16 %v518
        %v751 = vunpack.c.h.b16 %v518
        %v752 = vunpack.c.l.b16 %v519
        %v753 = vunpack.c.h.b16 %v519
        %v754 = vunpack.c.l.b16 %v520
        %v755 = vunpack.c.h.b16 %v520
        %v756 = vunpack.c.l.b16 %v521
        %v757 = vunpack.c.h.b16 %v521
        %v758 = vunpack.c.l.b16 %v522
        %v759 = vunpack.c.h.b16 %v522
        %v760 = vunpack.c.l.b16 %v523
        %v761 = vunpack.c.h.b16 %v523
        %v762 = vunpack.c.l.b16 %v524
        %v763 = vunpack.c.h.b16 %v524
        %v764 = vunpack.c.l.b16 %v525
        %v765 = vunpack.c.h.b16 %v525
        %v766 = vunpack.c.l.b16 %v526
        %v767 = vunpack.c.h.b16 %v526
        %v768 = vunpack.c.l.b16 %v527
        %v769 = vunpack.c.h.b16 %v527
        %v770 = vunpack.c.l.b16 %v528
        %v771 = vunpack.c.h.b16 %v528
        %v772 = vunpack.c.l.b16 %v529
        %v773 = vunpack.c.h.b16 %v529
        %v774 = vunpack.c.l.b16 %v530
        %v775 = vunpack.c.h.b16 %v530
        %v776 = vunpack.c.l.b16 %v531
        %v777 = vunpack.c.h.b16 %v531
        %v778 = vunpack.c.l.b16 %v532
        %v779 = vunpack.c.h.b16 %v532
        %v780 = vunpack.c.l.b16 %v533
        %v781 = vunpack.c.h.b16 %v533
        %v782 = vunpack.c.l.b16 %v534
        %v783 = vunpack.c.h.b16 %v534
        %v784 = vunpack.c.l.b16 %v535
        %v785 = vunpack.c.h.b16 %v535
        %v786 = vunpack.c.l.b16 %v536
        %v787 = vunpack.c.h.b16 %v536
        %v788 = vunpack.c.l.b16 %v537
        %v789 = vunpack.c.h.b16 %v537
        %v790 = vunpack.c.l.b16 %v538
        %v791 = vunpack.c.h.b16 %v538
        %v792 = vunpack.c.l.b16 %v539
        %v793 = vunpack.c.h.b16 %v539
        %v794 = vunpack.c.l.b16 %v540
        %v795 = vunpack.c.h.b16 %v540
        %v796 = vunpack.c.l.b16 %v541
        %v797 = vunpack.c.h.b16 %v541
        %v798 = vunpack.c.l.b16 %v542
        %v799 = vunpack.c.h.b16 %v542
        %v800 = vunpack.c.l.b16 %v543
        %v801 = vunpack.c.h.b16 %v543
        %v802 = vunpack.c.l.b16 %v544
        %v803 = vunpack.c.h.b16 %v544
        %v804 = vunpack.c.l.b16 %v545
        %v805 = vunpack.c.h.b16 %v545
        %v806 = vunpack.c.l.b16 %v546
        %v807 = vunpack.c.h.b16 %v546
        %v808 = vunpack.c.l.b16 %v547
        %v809 = vunpack.c.h.b16 %v547
        %v810 = vunpack.c.l.b16 %v548
        %v811 = vunpack.c.h.b16 %v548
        %v812 = vunpack.c.l.b16 %v549
        %v813 = vunpack.c.h.b16 %v549
        %v814 = vunpack.c.l.b16 %v550
        %v815 = vunpack.c.h.b16 %v550
        %v816 = vunpack.c.l.b16 %v551
        %v817 = vunpack.c.h.b16 %v551
        %v818 = vunpack.c.l.b16 %v552
        %v819 = vunpack.c.h.b16 %v552
        %v820 = vunpack.c.l.b16 %v553
        %v821 = vunpack.c.h.b16 %v553
        %v822 = vunpack.c.l.b16 %v554
        %v823 = vunpack.c.h.b16 %v554
        %v824 = vunpack.c.l.b16 %v555
        %v825 = vunpack.c.h.b16 %v555
        %v826 = vunpack.c.l.b16 %v556
        %v827 = vunpack.c.h.b16 %v556
        %v828 = vunpack.c.l.b16 %v557
        %v829 = vunpack.c.h.b16 %v557
        %v830 = vunpack.c.l.b16 %v558
        %v831 = vunpack.c.h.b16 %v558
        %v832 = vunpack.c.l.b16 %v559
        %v833 = vunpack.c.h.b16 %v559
        %v834 = vunpack.c.l.b16 %v560
        %v835 = vunpack.c.h.b16 %v560
        %v836 = vunpack.c.l.b16 %v561
        %v837 = vunpack.c.h.b16 %v561
        %v838 = vunpack.c.l.b16 %v562
        %v839 = vunpack.c.h.b16 %v562
        %v840 = vunpack.c.l.b16 %v563
        %v841 = vunpack.c.h.b16 %v563
        %v842 = vunpack.c.l.b16 %v564
        %v843 = vunpack.c.h.b16 %v564
        %v844 = vunpack.c.l.b16 %v565
        %v845 = vunpack.c.h.b16 %v565
        %v846 = vunpack.c.l.b16 %v566
        %v847 = vunpack.c.h.b16 %v566
        %v848 = vunpack.c.l.b16 %v567
        %v849 = vunpack.c.h.b16 %v567
        %v850 = vunpack.c.l.b16 %v568
        %v851 = vunpack.c.h.b16 %v568
        %v852 = vunpack.c.l.b16 %v569
        %v853 = vunpack.c.h.b16 %v569
        %v854 = vunpack.c.l.b16 %v570
        %v855 = vunpack.c.h.b16 %v570
        %v856 = vunpack.c.l.b16 %v571
        %v857 = vunpack.c.h.b16 %v571
        %v858 = vunpack.c.l.b16 %v572
        %v859 = vunpack.c.h.b16 %v572
        %v860 = vunpack.c.l.b16 %v573
        %v861 = vunpack.c.h.b16 %v573
        %v862 = vpack.c.b16 %v676, %v670
        %v863 = vpack.c.b16 %v677, %v671
        %v864 = vpack.c.b16 %v678, %v672
        %v865 = vpack.c.b16 %v679, %v673
        %v866 = vpack.c.b16 %v680, %v674
        %v867 = vpack.c.b16 %v681, %v675
        %v868 = vpack.c.b16 %v688, %v682
        %v869 = vpack.c.b16 %v689, %v683
        %v870 = vpack.c.b16 %v690, %v684
        %v871 = vpack.c.b16 %v691, %v685
        %v872 = vpack.c.b16 %v692, %v686
        %v873 = vpack.c.b16 %v693, %v687
        %v874 = vpack.c.b16 %v700, %v694
        %v875 = vpack.c.b16 %v701, %v695
        %v876 = vpack.c.b16 %v702, %v696
        %v877 = vpack.c.b16 %v703, %v697
        %v878 = vpack.c.b16 %v704, %v698
        %v879 = vpack.c.b16 %v705, %v699
        %v880 = vpack.c.b16 %v712, %v706
        %v881 = vpack.c.b16 %v713, %v707
        %v882 = vpack.c.b16 %v714, %v708
        %v883 = vpack.c.b16 %v715, %v709
        %v884 = vpack.c.b16 %v716, %v710
        %v885 = vpack.c.b16 %v717, %v711
        %v886 = vpack.c.b16 %v724, %v718
        %v887 = vpack.c.b16 %v725, %v719
        %v888 = vpack.c.b16 %v726, %v720
        %v889 = vpack.c.b16 %v727, %v721
        %v890 = vpack.c.b16 %v728, %v722
        %v891 = vpack.c.b16 %v729, %v723
        %v892 = vpack.c.b16 %v736, %v730
        %v893 = vpack.c.b16 %v737, %v731
        %v894 = vpack.c.b16 %v738, %v732
        %v895 = vpack.c.b16 %v739, %v733
        %v896 = vpack.c.b16 %v740, %v734
        %v897 = vpack.c.b16 %v741, %v735
        %v898 = vpack.c.b16 %v748, %v742
        %v899 = vpack.c.b16 %v749, %v743
        %v900 = vpack.c.b16 %v750, %v744
        %v901 = vpack.c.b16 %v751, %v745
        %v902 = vpack.c.b16 %v752, %v746
        %v903 = vpack.c.b16 %v753, %v747
        %v904 = vpack.c.b16 %v760, %v754
        %v905 = vpack.c.b16 %v761, %v755
        %v906 = vpack.c.b16 %v762, %v756
        %v907 = vpack.c.b16 %v763, %v757
        %v908 = vpack.c.b16 %v764, %v758
        %v909 = vpack.c.b16 %v765, %v759
        %v910 = vpack.c.b16 %v772, %v766
        %v911 = vpack.c.b16 %v773, %v767
        %v912 = vpack.c.b16 %v774, %v768
        %v913 = vpack.c.b16 %v775, %v769
        %v914 = vpack.c.b16 %v776, %v770
        %v915 = vpack.c.b16 %v777, %v771
        %v916 = vpack.c.b16 %v784, %v778
        %v917 = vpack.c.b16 %v785, %v779
        %v918 = vpack.c.b16 %v786, %v780
        %v919 = vpack.c.b16 %v787, %v781
        %v920 = vpack.c.b16 %v788, %v782
        %v921 = vpack.c.b16 %v789, %v783
        %v922 = vpack.c.b16 %v796, %v790
        %v923 = vpack.c.b16 %v797, %v791
        %v924 = vpack.c.b16 %v798, %v792
        %v925 = vpack.c.b16 %v799, %v793
        %v926 = vpack.c.b16 %v800, %v794
        %v927 = vpack.c.b16 %v801, %v795
        %v928 = vpack.c.b16 %v808, %v802
        %v929 = vpack.c.b16 %v809, %v803
        %v930 = vpack.c.b16 %v810, %v804
        %v931 = vpack.c.b16 %v811, %v805
        %v932 = vpack.c.b16 %v812, %v806
        %v933 = vpack.c.b16 %v813, %v807
        %v934 = vpack.c.b16 %v820, %v814
        %v935 = vpack.c.b16 %v821, %v815
        %v936 = vpack.c.b16 %v822, %v816
        %v937 = vpack.c.b16 %v823, %v817
        %v938 = vpack.c.b16 %v824, %v818
        %v939 = vpack.c.b16 %v825, %v819
        %v940 = vpack.c.b16 %v832, %v826
        %v941 = vpack.c.b16 %v833, %v827
        %v942 = vpack.c.b16 %v834, %v828
        %v943 = vpack.c.b16 %v835, %v829
        %v944 = vpack.c.b16 %v836, %v830
        %v945 = vpack.c.b16 %v837, %v831
        %v946 = vpack.c.b16 %v844, %v838
        %v947 = vpack.c.b16 %v845, %v839
        %v948 = vpack.c.b16 %v846, %v840
        %v949 = vpack.c.b16 %v847, %v841
        %v950 = vpack.c.b16 %v848, %v842
        %v951 = vpack.c.b16 %v849, %v843
        %v952 = vpack.c.b16 %v856, %v850
        %v953 = vpack.c.b16 %v857, %v851
        %v954 = vpack.c.b16 %v858, %v852
        %v955 = vpack.c.b16 %v859, %v853
        %v956 = vpack.c.b16 %v860, %v854
        %v957 = vpack.c.b16 %v861, %v855
        %1054 = vmatprep.subr.bf16.mxu0 %v863
        %1055 = vmatpush1.bf16.msra.mxu0 %v862
        %1056 = vmatprep.subr.bf16.mxu0 %v869
        %1057 = vmatpush1.bf16.msra.mxu0 %v868
        %1058 = vmatprep.subr.bf16.mxu0 %v875
        %1059 = vmatpush1.bf16.msra.mxu0 %v874
        %1060 = vmatprep.subr.bf16.mxu0 %v881
        %1061 = vmatpush1.bf16.msra.mxu0 %v880
        %1062 = vmatprep.subr.bf16.mxu0 %v887
        %1063 = vmatpush1.bf16.msra.mxu0 %v886
        %1064 = vmatprep.subr.bf16.mxu0 %v893
        %1065 = vmatpush1.bf16.msra.mxu0 %v892
        %1066 = vmatprep.subr.bf16.mxu0 %v899
        %1067 = vmatpush1.bf16.msra.mxu0 %v898
        %1068 = vmatprep.subr.bf16.mxu0 %v905
        %1069 = vmatpush1.bf16.msra.mxu0 %v904
        %1070 = vmatprep.subr.bf16.mxu0 %v911
        %1071 = vmatpush1.bf16.msra.mxu0 %v910
        %1072 = vmatprep.subr.bf16.mxu0 %v917
        %1073 = vmatpush1.bf16.msra.mxu0 %v916
        %1074 = vmatprep.subr.bf16.mxu0 %v923
        %1075 = vmatpush1.bf16.msra.mxu0 %v922
        %1076 = vmatprep.subr.bf16.mxu0 %v929
        %1077 = vmatpush1.bf16.msra.mxu0 %v928
        %1078 = vmatprep.subr.bf16.mxu0 %v935
        %1079 = vmatpush1.bf16.msra.mxu0 %v934
        %1080 = vmatprep.subr.bf16.mxu0 %v941
        %1081 = vmatpush1.bf16.msra.mxu0 %v940
        %1082 = vmatprep.subr.bf16.mxu0 %v947
        %1083 = vmatpush1.bf16.msra.mxu0 %v946
        %1084 = vmatprep.subr.bf16.mxu0 %v953
        %1085 = vmatpush1.bf16.msra.mxu0 %v952
        %1086 = vmatprep.mubr.bf16.mxu0 %v463
        %1087 = vmatmul.mubr.bf16.gmra.mrb[0].mxu0 %v462
        %v1088 = vpop.f32.mrb[0].mxu0
        %v1089 = vadd.f32 0.0, %v1088
        %v1090 = vpop.f32.mrb[0].mxu0
        %v1091 = vadd.f32 0.0, %v1090
        %v1092 = vpop.f32.mrb[0].mxu0
        %v1093 = vadd.f32 0.0, %v1092
        %v1094 = vpop.f32.mrb[0].mxu0
        %v1095 = vadd.f32 0.0, %v1094
        %1096 = vmatprep.mubr.bf16.mxu0 %v465
        %1097 = vmatmul.mubr.bf16.gmra.mrb[0].mxu0 %v464
        %v1098 = vpop.f32.mrb[0].mxu0
        %v1099 = vadd.f32 0.0, %v1098
        %v1100 = vpop.f32.mrb[0].mxu0
        %v1101 = vadd.f32 0.0, %v1100
        %v1102 = vpop.f32.mrb[0].mxu0
        %v1103 = vadd.f32 0.0, %v1102
        %v1104 = vpop.f32.mrb[0].mxu0
        %v1105 = vadd.f32 0.0, %v1104
        %1106 = vmatprep.mubr.bf16.mxu0 %v467
        %1107 = vmatmul.mubr.bf16.gmra.mrb[0].mxu0 %v466
        %v1108 = vpop.f32.mrb[0].mxu0
        %v1109 = vadd.f32 0.0, %v1108
        %v1110 = vpop.f32.mrb[0].mxu0
        %v1111 = vadd.f32 0.0, %v1110
        %v1112 = vpop.f32.mrb[0].mxu0
        %v1113 = vadd.f32 0.0, %v1112
        %v1114 = vpop.f32.mrb[0].mxu0
        %v1115 = vadd.f32 0.0, %v1114
        %1116 = vmatprep.mubr.bf16.mxu0 %v469
        %1117 = vmatmul.mubr.bf16.gmra.mrb[0].mxu0 %v468
        %v1118 = vpop.f32.mrb[0].mxu0
        %v1119 = vadd.f32 0.0, %v1118
        %v1120 = vpop.f32.mrb[0].mxu0
        %v1121 = vadd.f32 0.0, %v1120
        %v1122 = vpop.f32.mrb[0].mxu0
        %v1123 = vadd.f32 0.0, %v1122
        %v1124 = vpop.f32.mrb[0].mxu0
        %v1125 = vadd.f32 0.0, %v1124
        %1126 = vmatprep.mubr.bf16.mxu0 %v471
        %1127 = vmatmul.mubr.bf16.gmra.mrb[0].mxu0 %v470
        %v1128 = vpop.f32.mrb[0].mxu0
        %v1129 = vadd.f32 0.0, %v1128
        %v1130 = vpop.f32.mrb[0].mxu0
        %v1131 = vadd.f32 0.0, %v1130
        %v1132 = vpop.f32.mrb[0].mxu0
        %v1133 = vadd.f32 0.0, %v1132
        %v1134 = vpop.f32.mrb[0].mxu0
        %v1135 = vadd.f32 0.0, %v1134
        %1136 = vmatprep.mubr.bf16.mxu0 %v473
        %1137 = vmatmul.mubr.bf16.gmra.mrb[0].mxu0 %v472
        %v1138 = vpop.f32.mrb[0].mxu0
        %v1139 = vadd.f32 0.0, %v1138
        %v1140 = vpop.f32.mrb[0].mxu0
        %v1141 = vadd.f32 0.0, %v1140
        %v1142 = vpop.f32.mrb[0].mxu0
        %v1143 = vadd.f32 0.0, %v1142
        %v1144 = vpop.f32.mrb[0].mxu0
        %v1145 = vadd.f32 0.0, %v1144
        %1146 = vmatprep.mubr.bf16.mxu0 %v475
        %1147 = vmatmul.mubr.bf16.gmra.mrb[0].mxu0 %v474
        %v1148 = vpop.f32.mrb[0].mxu0
        %v1149 = vadd.f32 0.0, %v1148
        %v1150 = vpop.f32.mrb[0].mxu0
        %v1151 = vadd.f32 0.0, %v1150
        %v1152 = vpop.f32.mrb[0].mxu0
        %v1153 = vadd.f32 0.0, %v1152
        %v1154 = vpop.f32.mrb[0].mxu0
        %v1155 = vadd.f32 0.0, %v1154
        %1156 = vmatprep.mubr.bf16.mxu0 %v477
        %1157 = vmatmul.mubr.bf16.gmra.mrb[0].mxu0 %v476
        %v1158 = vpop.f32.mrb[0].mxu0
        %v1159 = vadd.f32 0.0, %v1158
        %v1160 = vpop.f32.mrb[0].mxu0
        %v1161 = vadd.f32 0.0, %v1160
        %v1162 = vpop.f32.mrb[0].mxu0
        %v1163 = vadd.f32 0.0, %v1162
        %v1164 = vpop.f32.mrb[0].mxu0
        %v1165 = vadd.f32 0.0, %v1164
        %1166 = vdwg.mxu0
        %1167 = vmatprep.subr.bf16.mxu0 %v865
        %1168 = vmatpush1.bf16.msra.mxu0 %v864
        %1169 = vmatprep.subr.bf16.mxu0 %v871
        %1170 = vmatpush1.bf16.msra.mxu0 %v870
        %1171 = vmatprep.subr.bf16.mxu0 %v877
        %1172 = vmatpush1.bf16.msra.mxu0 %v876
        %1173 = vmatprep.subr.bf16.mxu0 %v883
        %1174 = vmatpush1.bf16.msra.mxu0 %v882
        %1175 = vmatprep.subr.bf16.mxu0 %v889
        %1176 = vmatpush1.bf16.msra.mxu0 %v888
        %1177 = vmatprep.subr.bf16.mxu0 %v895
        %1178 = vmatpush1.bf16.msra.mxu0 %v894
        %1179 = vmatprep.subr.bf16.mxu0 %v901
        %1180 = vmatpush1.bf16.msra.mxu0 %v900
        %1181 = vmatprep.subr.bf16.mxu0 %v907
        %1182 = vmatpush1.bf16.msra.mxu0 %v906
        %1183 = vmatprep.subr.bf16.mxu0 %v913
        %1184 = vmatpush1.bf16.msra.mxu0 %v912
        %1185 = vmatprep.subr.bf16.mxu0 %v919
        %1186 = vmatpush1.bf16.msra.mxu0 %v918
        %1187 = vmatprep.subr.bf16.mxu0 %v925
        %1188 = vmatpush1.bf16.msra.mxu0 %v924
        %1189 = vmatprep.subr.bf16.mxu0 %v931
        %1190 = vmatpush1.bf16.msra.mxu0 %v930
        %1191 = vmatprep.subr.bf16.mxu0 %v937
        %1192 = vmatpush1.bf16.msra.mxu0 %v936
        %1193 = vmatprep.subr.bf16.mxu0 %v943
        %1194 = vmatpush1.bf16.msra.mxu0 %v942
        %1195 = vmatprep.subr.bf16.mxu0 %v949
        %1196 = vmatpush1.bf16.msra.mxu0 %v948
        %1197 = vmatprep.subr.bf16.mxu0 %v955
        %1198 = vmatpush1.bf16.msra.mxu0 %v954
        %1199 = vmatprep.mubr.bf16.mxu0 %v463
        %1200 = vmatmul.mubr.bf16.gmra.mrb[0].mxu0 %v462
        %v1201 = vpop.f32.mrb[0].mxu0
        %v1202 = vadd.f32 0.0, %v1201
        %v1203 = vpop.f32.mrb[0].mxu0
        %v1204 = vadd.f32 0.0, %v1203
        %v1205 = vpop.f32.mrb[0].mxu0
        %v1206 = vadd.f32 0.0, %v1205
        %v1207 = vpop.f32.mrb[0].mxu0
        %v1208 = vadd.f32 0.0, %v1207
        %1209 = vmatprep.mubr.bf16.mxu0 %v465
        %1210 = vmatmul.mubr.bf16.gmra.mrb[0].mxu0 %v464
        %v1211 = vpop.f32.mrb[0].mxu0
        %v1212 = vadd.f32 0.0, %v1211
        %v1213 = vpop.f32.mrb[0].mxu0
        %v1214 = vadd.f32 0.0, %v1213
        %v1215 = vpop.f32.mrb[0].mxu0
        %v1216 = vadd.f32 0.0, %v1215
        %v1217 = vpop.f32.mrb[0].mxu0
        %v1218 = vadd.f32 0.0, %v1217
        %1219 = vmatprep.mubr.bf16.mxu0 %v467
        %1220 = vmatmul.mubr.bf16.gmra.mrb[0].mxu0 %v466
        %v1221 = vpop.f32.mrb[0].mxu0
        %v1222 = vadd.f32 0.0, %v1221
        %v1223 = vpop.f32.mrb[0].mxu0
        %v1224 = vadd.f32 0.0, %v1223
        %v1225 = vpop.f32.mrb[0].mxu0
        %v1226 = vadd.f32 0.0, %v1225
        %v1227 = vpop.f32.mrb[0].mxu0
        %v1228 = vadd.f32 0.0, %v1227
        %1229 = vmatprep.mubr.bf16.mxu0 %v469
        %1230 = vmatmul.mubr.bf16.gmra.mrb[0].mxu0 %v468
        %v1231 = vpop.f32.mrb[0].mxu0
        %v1232 = vadd.f32 0.0, %v1231
        %v1233 = vpop.f32.mrb[0].mxu0
        %v1234 = vadd.f32 0.0, %v1233
        %v1235 = vpop.f32.mrb[0].mxu0
        %v1236 = vadd.f32 0.0, %v1235
        %v1237 = vpop.f32.mrb[0].mxu0
        %v1238 = vadd.f32 0.0, %v1237
        %1239 = vmatprep.mubr.bf16.mxu0 %v471
        %1240 = vmatmul.mubr.bf16.gmra.mrb[0].mxu0 %v470
        %v1241 = vpop.f32.mrb[0].mxu0
        %v1242 = vadd.f32 0.0, %v1241
        %v1243 = vpop.f32.mrb[0].mxu0
        %v1244 = vadd.f32 0.0, %v1243
        %v1245 = vpop.f32.mrb[0].mxu0
        %v1246 = vadd.f32 0.0, %v1245
        %v1247 = vpop.f32.mrb[0].mxu0
        %v1248 = vadd.f32 0.0, %v1247
        %1249 = vmatprep.mubr.bf16.mxu0 %v473
        %1250 = vmatmul.mubr.bf16.gmra.mrb[0].mxu0 %v472
        %v1251 = vpop.f32.mrb[0].mxu0
        %v1252 = vadd.f32 0.0, %v1251
        %v1253 = vpop.f32.mrb[0].mxu0
        %v1254 = vadd.f32 0.0, %v1253
        %v1255 = vpop.f32.mrb[0].mxu0
        %v1256 = vadd.f32 0.0, %v1255
        %v1257 = vpop.f32.mrb[0].mxu0
        %v1258 = vadd.f32 0.0, %v1257
        %1259 = vmatprep.mubr.bf16.mxu0 %v475
        %1260 = vmatmul.mubr.bf16.gmra.mrb[0].mxu0 %v474
        %v1261 = vpop.f32.mrb[0].mxu0
        %v1262 = vadd.f32 0.0, %v1261
        %v1263 = vpop.f32.mrb[0].mxu0
        %v1264 = vadd.f32 0.0, %v1263
        %v1265 = vpop.f32.mrb[0].mxu0
        %v1266 = vadd.f32 0.0, %v1265
        %v1267 = vpop.f32.mrb[0].mxu0
        %v1268 = vadd.f32 0.0, %v1267
        %1269 = vmatprep.mubr.bf16.mxu0 %v477
        %1270 = vmatmul.mubr.bf16.gmra.mrb[0].mxu0 %v476
        %v1271 = vpop.f32.mrb[0].mxu0
        %v1272 = vadd.f32 0.0, %v1271
        %v1273 = vpop.f32.mrb[0].mxu0
        %v1274 = vadd.f32 0.0, %v1273
        %v1275 = vpop.f32.mrb[0].mxu0
        %v1276 = vadd.f32 0.0, %v1275
        %v1277 = vpop.f32.mrb[0].mxu0
        %v1278 = vadd.f32 0.0, %v1277
        %1279 = vdwg.mxu0
        %1280 = vmatprep.subr.bf16.mxu0 %v867
        %1281 = vmatpush1.bf16.msra.mxu0 %v866
        %1282 = vmatprep.subr.bf16.mxu0 %v873
        %1283 = vmatpush1.bf16.msra.mxu0 %v872
        %1284 = vmatprep.subr.bf16.mxu0 %v879
        %1285 = vmatpush1.bf16.msra.mxu0 %v878
        %1286 = vmatprep.subr.bf16.mxu0 %v885
        %1287 = vmatpush1.bf16.msra.mxu0 %v884
        %1288 = vmatprep.subr.bf16.mxu0 %v891
        %1289 = vmatpush1.bf16.msra.mxu0 %v890
        %1290 = vmatprep.subr.bf16.mxu0 %v897
        %1291 = vmatpush1.bf16.msra.mxu0 %v896
        %1292 = vmatprep.subr.bf16.mxu0 %v903
        %1293 = vmatpush1.bf16.msra.mxu0 %v902
        %1294 = vmatprep.subr.bf16.mxu0 %v909
        %1295 = vmatpush1.bf16.msra.mxu0 %v908
        %1296 = vmatprep.subr.bf16.mxu0 %v915
        %1297 = vmatpush1.bf16.msra.mxu0 %v914
        %1298 = vmatprep.subr.bf16.mxu0 %v921
        %1299 = vmatpush1.bf16.msra.mxu0 %v920
        %1300 = vmatprep.subr.bf16.mxu0 %v927
        %1301 = vmatpush1.bf16.msra.mxu0 %v926
        %1302 = vmatprep.subr.bf16.mxu0 %v933
        %1303 = vmatpush1.bf16.msra.mxu0 %v932
        %1304 = vmatprep.subr.bf16.mxu0 %v939
        %1305 = vmatpush1.bf16.msra.mxu0 %v938
        %1306 = vmatprep.subr.bf16.mxu0 %v945
        %1307 = vmatpush1.bf16.msra.mxu0 %v944
        %1308 = vmatprep.subr.bf16.mxu0 %v951
        %1309 = vmatpush1.bf16.msra.mxu0 %v950
        %1310 = vmatprep.subr.bf16.mxu0 %v957
        %1311 = vmatpush1.bf16.msra.mxu0 %v956
        %1312 = vmatprep.mubr.bf16.mxu0 %v463
        %1313 = vmatmul.mubr.bf16.gmra.mrb[0].mxu0 %v462
        %v1314 = vpop.f32.mrb[0].mxu0
        %v1315 = vadd.f32 0.0, %v1314
        %v1316 = vpop.f32.mrb[0].mxu0
        %v1317 = vadd.f32 0.0, %v1316
        %v1318 = vpop.f32.mrb[0].mxu0
        %v1319 = vadd.f32 0.0, %v1318
        %v1320 = vpop.f32.mrb[0].mxu0
        %v1321 = vadd.f32 0.0, %v1320
        %1322 = vmatprep.mubr.bf16.mxu0 %v465
        %1323 = vmatmul.mubr.bf16.gmra.mrb[0].mxu0 %v464
        %v1324 = vpop.f32.mrb[0].mxu0
        %v1325 = vadd.f32 0.0, %v1324
        %v1326 = vpop.f32.mrb[0].mxu0
        %v1327 = vadd.f32 0.0, %v1326
        %v1328 = vpop.f32.mrb[0].mxu0
        %v1329 = vadd.f32 0.0, %v1328
        %v1330 = vpop.f32.mrb[0].mxu0
        %v1331 = vadd.f32 0.0, %v1330
        %1332 = vmatprep.mubr.bf16.mxu0 %v467
        %1333 = vmatmul.mubr.bf16.gmra.mrb[0].mxu0 %v466
        %v1334 = vpop.f32.mrb[0].mxu0
        %v1335 = vadd.f32 0.0, %v1334
        %v1336 = vpop.f32.mrb[0].mxu0
        %v1337 = vadd.f32 0.0, %v1336
        %v1338 = vpop.f32.mrb[0].mxu0
        %v1339 = vadd.f32 0.0, %v1338
        %v1340 = vpop.f32.mrb[0].mxu0
        %v1341 = vadd.f32 0.0, %v1340
        %1342 = vmatprep.mubr.bf16.mxu0 %v469
        %1343 = vmatmul.mubr.bf16.gmra.mrb[0].mxu0 %v468
        %v1344 = vpop.f32.mrb[0].mxu0
        %v1345 = vadd.f32 0.0, %v1344
        %v1346 = vpop.f32.mrb[0].mxu0
        %v1347 = vadd.f32 0.0, %v1346
        %v1348 = vpop.f32.mrb[0].mxu0
        %v1349 = vadd.f32 0.0, %v1348
        %v1350 = vpop.f32.mrb[0].mxu0
        %v1351 = vadd.f32 0.0, %v1350
        %1352 = vmatprep.mubr.bf16.mxu0 %v471
        %1353 = vmatmul.mubr.bf16.gmra.mrb[0].mxu0 %v470
        %v1354 = vpop.f32.mrb[0].mxu0
        %v1355 = vadd.f32 0.0, %v1354
        %v1356 = vpop.f32.mrb[0].mxu0
        %v1357 = vadd.f32 0.0, %v1356
        %v1358 = vpop.f32.mrb[0].mxu0
        %v1359 = vadd.f32 0.0, %v1358
        %v1360 = vpop.f32.mrb[0].mxu0
        %v1361 = vadd.f32 0.0, %v1360
        %1362 = vmatprep.mubr.bf16.mxu0 %v473
        %1363 = vmatmul.mubr.bf16.gmra.mrb[0].mxu0 %v472
        %v1364 = vpop.f32.mrb[0].mxu0
        %v1365 = vadd.f32 0.0, %v1364
        %v1366 = vpop.f32.mrb[0].mxu0
        %v1367 = vadd.f32 0.0, %v1366
        %v1368 = vpop.f32.mrb[0].mxu0
        %v1369 = vadd.f32 0.0, %v1368
        %v1370 = vpop.f32.mrb[0].mxu0
        %v1371 = vadd.f32 0.0, %v1370
        %1372 = vmatprep.mubr.bf16.mxu0 %v475
        %1373 = vmatmul.mubr.bf16.gmra.mrb[0].mxu0 %v474
        %v1374 = vpop.f32.mrb[0].mxu0
        %v1375 = vadd.f32 0.0, %v1374
        %v1376 = vpop.f32.mrb[0].mxu0
        %v1377 = vadd.f32 0.0, %v1376
        %v1378 = vpop.f32.mrb[0].mxu0
        %v1379 = vadd.f32 0.0, %v1378
        %v1380 = vpop.f32.mrb[0].mxu0
        %v1381 = vadd.f32 0.0, %v1380
        %1382 = vmatprep.mubr.bf16.mxu0 %v477
        %1383 = vmatmul.mubr.bf16.gmra.mrb[0].mxu0 %v476
        %v1384 = vpop.f32.mrb[0].mxu0
        %v1385 = vadd.f32 0.0, %v1384
        %v1386 = vpop.f32.mrb[0].mxu0
        %v1387 = vadd.f32 0.0, %v1386
        %v1388 = vpop.f32.mrb[0].mxu0
        %v1389 = vadd.f32 0.0, %v1388
        %v1390 = vpop.f32.mrb[0].mxu0
        %v1391 = vadd.f32 0.0, %v1390
        %1392 = vdwg.mxu0
        %v1393 = vpack.c.bf16 %v1093, %v1089
        %v1394 = vpack.c.bf16 %v1095, %v1091
        %v1395 = vpack.c.bf16 %v1206, %v1202
        %v1396 = vpack.c.bf16 %v1208, %v1204
        %v1397 = vpack.c.bf16 %v1319, %v1315
        %v1398 = vpack.c.bf16 %v1321, %v1317
        %v1399 = vpack.c.bf16 %v1103, %v1099
        %v1400 = vpack.c.bf16 %v1105, %v1101
        %v1401 = vpack.c.bf16 %v1216, %v1212
        %v1402 = vpack.c.bf16 %v1218, %v1214
        %v1403 = vpack.c.bf16 %v1329, %v1325
        %v1404 = vpack.c.bf16 %v1331, %v1327
        %v1405 = vpack.c.bf16 %v1113, %v1109
        %v1406 = vpack.c.bf16 %v1115, %v1111
        %v1407 = vpack.c.bf16 %v1226, %v1222
        %v1408 = vpack.c.bf16 %v1228, %v1224
        %v1409 = vpack.c.bf16 %v1339, %v1335
        %v1410 = vpack.c.bf16 %v1341, %v1337
        %v1411 = vpack.c.bf16 %v1123, %v1119
        %v1412 = vpack.c.bf16 %v1125, %v1121
        %v1413 = vpack.c.bf16 %v1236, %v1232
        %v1414 = vpack.c.bf16 %v1238, %v1234
        %v1415 = vpack.c.bf16 %v1349, %v1345
        %v1416 = vpack.c.bf16 %v1351, %v1347
        %v1417 = vpack.c.bf16 %v1133, %v1129
        %v1418 = vpack.c.bf16 %v1135, %v1131
        %v1419 = vpack.c.bf16 %v1246, %v1242
        %v1420 = vpack.c.bf16 %v1248, %v1244
        %v1421 = vpack.c.bf16 %v1359, %v1355
        %v1422 = vpack.c.bf16 %v1361, %v1357
        %v1423 = vpack.c.bf16 %v1143, %v1139
        %v1424 = vpack.c.bf16 %v1145, %v1141
        %v1425 = vpack.c.bf16 %v1256, %v1252
        %v1426 = vpack.c.bf16 %v1258, %v1254
        %v1427 = vpack.c.bf16 %v1369, %v1365
        %v1428 = vpack.c.bf16 %v1371, %v1367
        %v1429 = vpack.c.bf16 %v1153, %v1149
        %v1430 = vpack.c.bf16 %v1155, %v1151
        %v1431 = vpack.c.bf16 %v1266, %v1262
        %v1432 = vpack.c.bf16 %v1268, %v1264
        %v1433 = vpack.c.bf16 %v1379, %v1375
        %v1434 = vpack.c.bf16 %v1381, %v1377
        %v1435 = vpack.c.bf16 %v1163, %v1159
        %v1436 = vpack.c.bf16 %v1165, %v1161
        %v1437 = vpack.c.bf16 %v1276, %v1272
        %v1438 = vpack.c.bf16 %v1278, %v1274
        %v1439 = vpack.c.bf16 %v1389, %v1385
        %v1440 = vpack.c.bf16 %v1391, %v1387
        %v1489 = vunpack.c.l.b16 %v1393
        %v1490 = vunpack.c.l.b16 %v1394
        %v1491 = vunpack.c.l.b16 %v1395
        %v1492 = vunpack.c.l.b16 %v1396
        %v1493 = vunpack.c.l.b16 %v1397
        %v1494 = vunpack.c.l.b16 %v1398
        %v1495 = vunpack.c.h.b16 %v1393
        %v1496 = vunpack.c.h.b16 %v1394
        %v1497 = vunpack.c.h.b16 %v1395
        %v1498 = vunpack.c.h.b16 %v1396
        %v1499 = vunpack.c.h.b16 %v1397
        %v1500 = vunpack.c.h.b16 %v1398
        %v1501 = vunpack.c.l.b16 %v1399
        %v1502 = vunpack.c.l.b16 %v1400
        %v1503 = vunpack.c.l.b16 %v1401
        %v1504 = vunpack.c.l.b16 %v1402
        %v1505 = vunpack.c.l.b16 %v1403
        %v1506 = vunpack.c.l.b16 %v1404
        %v1507 = vunpack.c.h.b16 %v1399
        %v1508 = vunpack.c.h.b16 %v1400
        %v1509 = vunpack.c.h.b16 %v1401
        %v1510 = vunpack.c.h.b16 %v1402
        %v1511 = vunpack.c.h.b16 %v1403
        %v1512 = vunpack.c.h.b16 %v1404
        %v1513 = vunpack.c.l.b16 %v1405
        %v1514 = vunpack.c.l.b16 %v1406
        %v1515 = vunpack.c.l.b16 %v1407
        %v1516 = vunpack.c.l.b16 %v1408
        %v1517 = vunpack.c.l.b16 %v1409
        %v1518 = vunpack.c.l.b16 %v1410
        %v1519 = vunpack.c.h.b16 %v1405
        %v1520 = vunpack.c.h.b16 %v1406
        %v1521 = vunpack.c.h.b16 %v1407
        %v1522 = vunpack.c.h.b16 %v1408
        %v1523 = vunpack.c.h.b16 %v1409
        %v1524 = vunpack.c.h.b16 %v1410
        %v1525 = vunpack.c.l.b16 %v1411
        %v1526 = vunpack.c.l.b16 %v1412
        %v1527 = vunpack.c.l.b16 %v1413
        %v1528 = vunpack.c.l.b16 %v1414
        %v1529 = vunpack.c.l.b16 %v1415
        %v1530 = vunpack.c.l.b16 %v1416
        %v1531 = vunpack.c.h.b16 %v1411
        %v1532 = vunpack.c.h.b16 %v1412
        %v1533 = vunpack.c.h.b16 %v1413
        %v1534 = vunpack.c.h.b16 %v1414
        %v1535 = vunpack.c.h.b16 %v1415
        %v1536 = vunpack.c.h.b16 %v1416
        %v1537 = vunpack.c.l.b16 %v1417
        %v1538 = vunpack.c.l.b16 %v1418
        %v1539 = vunpack.c.l.b16 %v1419
        %v1540 = vunpack.c.l.b16 %v1420
        %v1541 = vunpack.c.l.b16 %v1421
        %v1542 = vunpack.c.l.b16 %v1422
        %v1543 = vunpack.c.h.b16 %v1417
        %v1544 = vunpack.c.h.b16 %v1418
        %v1545 = vunpack.c.h.b16 %v1419
        %v1546 = vunpack.c.h.b16 %v1420
        %v1547 = vunpack.c.h.b16 %v1421
        %v1548 = vunpack.c.h.b16 %v1422
        %v1549 = vunpack.c.l.b16 %v1423
        %v1550 = vunpack.c.l.b16 %v1424
        %v1551 = vunpack.c.l.b16 %v1425
        %v1552 = vunpack.c.l.b16 %v1426
        %v1553 = vunpack.c.l.b16 %v1427
        %v1554 = vunpack.c.l.b16 %v1428
        %v1555 = vunpack.c.h.b16 %v1423
        %v1556 = vunpack.c.h.b16 %v1424
        %v1557 = vunpack.c.h.b16 %v1425
        %v1558 = vunpack.c.h.b16 %v1426
        %v1559 = vunpack.c.h.b16 %v1427
        %v1560 = vunpack.c.h.b16 %v1428
        %v1561 = vunpack.c.l.b16 %v1429
        %v1562 = vunpack.c.l.b16 %v1430
        %v1563 = vunpack.c.l.b16 %v1431
        %v1564 = vunpack.c.l.b16 %v1432
        %v1565 = vunpack.c.l.b16 %v1433
        %v1566 = vunpack.c.l.b16 %v1434
        %v1567 = vunpack.c.h.b16 %v1429
        %v1568 = vunpack.c.h.b16 %v1430
        %v1569 = vunpack.c.h.b16 %v1431
        %v1570 = vunpack.c.h.b16 %v1432
        %v1571 = vunpack.c.h.b16 %v1433
        %v1572 = vunpack.c.h.b16 %v1434
        %v1573 = vunpack.c.l.b16 %v1435
        %v1574 = vunpack.c.l.b16 %v1436
        %v1575 = vunpack.c.l.b16 %v1437
        %v1576 = vunpack.c.l.b16 %v1438
        %v1577 = vunpack.c.l.b16 %v1439
        %v1578 = vunpack.c.l.b16 %v1440
        %v1579 = vunpack.c.h.b16 %v1435
        %v1580 = vunpack.c.h.b16 %v1436
        %v1581 = vunpack.c.h.b16 %v1437
        %v1582 = vunpack.c.h.b16 %v1438
        %v1583 = vunpack.c.h.b16 %v1439
        %v1584 = vunpack.c.h.b16 %v1440
        %v1585 = vpack.c.b16 %v1490, %v1489
        %v1586 = vpack.c.b16 %v1492, %v1491
        %v1587 = vpack.c.b16 %v1494, %v1493
        %v1588 = vpack.c.b16 %v1496, %v1495
        %v1589 = vpack.c.b16 %v1498, %v1497
        %v1590 = vpack.c.b16 %v1500, %v1499
        %v1591 = vpack.c.b16 %v1502, %v1501
        %v1592 = vpack.c.b16 %v1504, %v1503
        %v1593 = vpack.c.b16 %v1506, %v1505
        %v1594 = vpack.c.b16 %v1508, %v1507
        %v1595 = vpack.c.b16 %v1510, %v1509
        %v1596 = vpack.c.b16 %v1512, %v1511
        %v1597 = vpack.c.b16 %v1514, %v1513
        %v1598 = vpack.c.b16 %v1516, %v1515
        %v1599 = vpack.c.b16 %v1518, %v1517
        %v1600 = vpack.c.b16 %v1520, %v1519
        %v1601 = vpack.c.b16 %v1522, %v1521
        %v1602 = vpack.c.b16 %v1524, %v1523
        %v1603 = vpack.c.b16 %v1526, %v1525
        %v1604 = vpack.c.b16 %v1528, %v1527
        %v1605 = vpack.c.b16 %v1530, %v1529
        %v1606 = vpack.c.b16 %v1532, %v1531
        %v1607 = vpack.c.b16 %v1534, %v1533
        %v1608 = vpack.c.b16 %v1536, %v1535
        %v1609 = vpack.c.b16 %v1538, %v1537
        %v1610 = vpack.c.b16 %v1540, %v1539
        %v1611 = vpack.c.b16 %v1542, %v1541
        %v1612 = vpack.c.b16 %v1544, %v1543
        %v1613 = vpack.c.b16 %v1546, %v1545
        %v1614 = vpack.c.b16 %v1548, %v1547
        %v1615 = vpack.c.b16 %v1550, %v1549
        %v1616 = vpack.c.b16 %v1552, %v1551
        %v1617 = vpack.c.b16 %v1554, %v1553
        %v1618 = vpack.c.b16 %v1556, %v1555
        %v1619 = vpack.c.b16 %v1558, %v1557
        %v1620 = vpack.c.b16 %v1560, %v1559
        %v1621 = vpack.c.b16 %v1562, %v1561
        %v1622 = vpack.c.b16 %v1564, %v1563
        %v1623 = vpack.c.b16 %v1566, %v1565
        %v1624 = vpack.c.b16 %v1568, %v1567
        %v1625 = vpack.c.b16 %v1570, %v1569
        %v1626 = vpack.c.b16 %v1572, %v1571
        %v1627 = vpack.c.b16 %v1574, %v1573
        %v1628 = vpack.c.b16 %v1576, %v1575
        %v1629 = vpack.c.b16 %v1578, %v1577
        %v1630 = vpack.c.b16 %v1580, %v1579
        %v1631 = vpack.c.b16 %v1582, %v1581
        %v1632 = vpack.c.b16 %v1584, %v1583
        %1681 = vst [vmem:[%s222] sm:$0xff] %v1585
        %1682 = vst [vmem:[%s222 + $0x8] sm:$0xff] %v1586
        %1683 = vst [vmem:[%s222 + $0x10] sm:$0xff] %v1587
        %1684 = vst [vmem:[%s222 + $0x18] sm:$0xff] %v1588
        %1685 = vst [vmem:[%s222 + $0x20] sm:$0xff] %v1589
        %1686 = vst [vmem:[%s222 + $0x28] sm:$0xff] %v1590
        %1687 = vst [vmem:[%s222 + $0x30] sm:$0xff] %v1591
        %1688 = vst [vmem:[%s222 + $0x38] sm:$0xff] %v1592
        %1689 = vst [vmem:[%s222 + $0x40] sm:$0xff] %v1593
        %1690 = vst [vmem:[%s222 + $0x48] sm:$0xff] %v1594
        %1691 = vst [vmem:[%s222 + $0x50] sm:$0xff] %v1595
        %1692 = vst [vmem:[%s222 + $0x58] sm:$0xff] %v1596
        %1693 = vst [vmem:[%s222 + $0x60] sm:$0xff] %v1597
        %1694 = vst [vmem:[%s222 + $0x68] sm:$0xff] %v1598
        %1695 = vst [vmem:[%s222 + $0x70] sm:$0xff] %v1599
        %1696 = vst [vmem:[%s222 + $0x78] sm:$0xff] %v1600
        %1697 = vst [vmem:[%s222 + $0x80] sm:$0xff] %v1601
        %1698 = vst [vmem:[%s222 + $0x88] sm:$0xff] %v1602
        %1699 = vst [vmem:[%s222 + $0x90] sm:$0xff] %v1603
        %1700 = vst [vmem:[%s222 + $0x98] sm:$0xff] %v1604
        %1701 = vst [vmem:[%s222 + $0xa0] sm:$0xff] %v1605
        %1702 = vst [vmem:[%s222 + $0xa8] sm:$0xff] %v1606
        %1703 = vst [vmem:[%s222 + $0xb0] sm:$0xff] %v1607
        %1704 = vst [vmem:[%s222 + $0xb8] sm:$0xff] %v1608
        %1705 = vst [vmem:[%s222 + $0xc0] sm:$0xff] %v1609
        %1706 = vst [vmem:[%s222 + $0xc8] sm:$0xff] %v1610
        %1707 = vst [vmem:[%s222 + $0xd0] sm:$0xff] %v1611
        %1708 = vst [vmem:[%s222 + $0xd8] sm:$0xff] %v1612
        %1709 = vst [vmem:[%s222 + $0xe0] sm:$0xff] %v1613
        %1710 = vst [vmem:[%s222 + $0xe8] sm:$0xff] %v1614
        %1711 = vst [vmem:[%s222 + $0xf0] sm:$0xff] %v1615
        %1712 = vst [vmem:[%s222 + $0xf8] sm:$0xff] %v1616
        %1713 = vst [vmem:[%s222 + $0x100] sm:$0xff] %v1617
        %1714 = vst [vmem:[%s222 + $0x108] sm:$0xff] %v1618
        %1715 = vst [vmem:[%s222 + $0x110] sm:$0xff] %v1619
        %1716 = vst [vmem:[%s222 + $0x118] sm:$0xff] %v1620
        %1717 = vst [vmem:[%s222 + $0x120] sm:$0xff] %v1621
        %1718 = vst [vmem:[%s222 + $0x128] sm:$0xff] %v1622
        %1719 = vst [vmem:[%s222 + $0x130] sm:$0xff] %v1623
        %1720 = vst [vmem:[%s222 + $0x138] sm:$0xff] %v1624
        %1721 = vst [vmem:[%s222 + $0x140] sm:$0xff] %v1625
        %1722 = vst [vmem:[%s222 + $0x148] sm:$0xff] %v1626
        %1723 = vst [vmem:[%s222 + $0x150] sm:$0xff] %v1627
        %1724 = vst [vmem:[%s222 + $0x158] sm:$0xff] %v1628
        %1725 = vst [vmem:[%s222 + $0x160] sm:$0xff] %v1629
        %1726 = vst [vmem:[%s222 + $0x168] sm:$0xff] %v1630
        %1727 = vst [vmem:[%s222 + $0x170] sm:$0xff] %v1631
        %1728 = vst [vmem:[%s222 + $0x178] sm:$0xff] %v1632
        %s1729 = sand.u32 %s113, 1
        %s1730 = scalar_lea.sflag [#allocation4], %s1729
        %s1731 = sand.u32 %s113, 1
        %s1732 = smul.addr %s1731, 384
        %s1733 = scalar_lea.vmem [#allocation7], %s1732
        // Predicated region
        $region41: #{tpu_custom_call.1} parent=31 // pred_check
          %p1734 = pneg %p123
        $region42: #{tpu_custom_call.1} parent=31 // pred_check_branch
          %1736 = sbr.rel (%p1734) target = $region44
        $region43: #{tpu_custom_call.1} parent=31 // pred_region
          %s1737 = smul.u32 16, %s26
          %s1739 = ssub.s32 6144, 6144
          %1740 = vsyncadd %s1730, %s1739
          %s1741 = smul.addr %s1737, 6
          %s1742 = smul.addr %s25, 192
          %s1743 = sadd.s32 %s1741, %s1742
          %s1744 = smul.addr %s1743, 64
          %s1745 = scalar_lea.hbm %s3, %s1744
          %s1746 = sshll.u32 %s1733, 4
          %s1747 = int_to_ptr.vmem [resolvable:$true] %s1746
          %1752 = dma.vmem_to_hbm [thread:$0]  %s1747, 6144, %s1745, %s1730, 384, 384, 24
        $region44: #{tpu_custom_call.1} parent=31 // pred_fallthru
          _
      $region32: #{tpu_custom_call.1} parent=5 // pred_fallthru
        _
      %p1753 = scmp.le.s32.totalorder 2, %s16
      // Predicated region
      $region45: #{tpu_custom_call.1} parent=5 // pred_check
        %p1754 = pneg %p1753
      $region46: #{tpu_custom_call.1} parent=5 // pred_check_branch
        %1756 = sbr.rel (%p1754) target = $region48
      $region47: #{tpu_custom_call.1} parent=5 // pred_region
        %s1757 = ssub.s32 %s16, 2
        // Predicated region
        $region49: #{tpu_custom_call.1} parent=47 // pred_check
          %p1758 = pneg %p129
        $region50: #{tpu_custom_call.1} parent=47 // pred_check_branch
          %1760 = sbr.rel (%p1758) target = $region52
        $region51: #{tpu_custom_call.1} parent=47 // pred_region
          %s1761 = sand.u32 %s114, 1
          %s1762 = scalar_lea.sflag [#allocation4], %s1761
          %s1763 = sand.u32 %s114, 1
          %s1764 = smul.addr %s1763, 384
          %s1765 = scalar_lea.vmem [#allocation7], %s1764
          %1766 = dma.done %s1762, 6144
        $region52: #{tpu_custom_call.1} parent=47 // pred_fallthru
          _
      $region48: #{tpu_custom_call.1} parent=5 // pred_fallthru
        _
    $region6: #{tpu_custom_call.1} parent=1 // loop_footer
      %s20 = sadd.s32 1, %s16
    $region7: #{tpu_custom_call.1} parent=1 // loop_footer_branch
      %15 = sbr.rel target = $region3
    $region8: #{tpu_custom_call.1} parent=1 // loop_exit
      _
    %1767 = vsyncpa [#allocation3], 1
    %s1768 = scalar_lea.sflag [#allocation3], 1
    %1769 = vsyncpa %s1768, 1
    %1770 = vsyncpa [#allocation6], 1
    %1771 = vsyncpa [#allocation4], 1
    %s1772 = scalar_lea.sflag [#allocation4], 1
    %1773 = vsyncpa %s1772, 1

// kernel: tpu_custom_call.1
$region0: #{tpu_custom_call.1}
  #allocation0 [shape = 'u32[]', space=smem, size = 0x4, offset = 0x4, fixed_abs, tag = 'smem constant byte address 0x4 - core index']
  #allocation1 [shape = 'u32[144,128]{1,0:T(1,128)}', space=vmem, size = 0x12000, scoped, tag = 'internal scratch']
  %s0 = inlined_call_operand.hbm [shape: f32[2,256,256], index: 0, kind: input, shape index: {}]
  %s1 = inlined_call_operand.vmem [shape: f32[1,256], index: 1, kind: input, shape index: {}]
  %s2 = inlined_call_operand.hbm [shape: bf16[256,768], index: 2, kind: input, shape index: {}]
  %s3 = inlined_call_operand.hbm [shape: bf16[2,256,768], index: 3, kind: output, shape index: {}]
  %s4 = sld [smem:[#allocation0]]
  $region53: #{tpu_custom_call.1} parent=0
    _
  %s6 = ssub.s32 1, %s4
  %s7 = scalar_select 0, %s6, %s4
  $region1: #{tpu_custom_call.1} parent=0
    #allocation2 [shape = 'u8[262144]{0}', space=vmem, size = 0x40000, scoped, tag = 'input window, operand 0']
    #allocation3 [shape = 's32[2]{0}', space=sflag, size = 0x8, scoped, tag = 'scoped memory for tpu_custom_call.1']
    #allocation4 [shape = 's32[2]{0}', space=sflag, size = 0x8, scoped, tag = 'scoped memory for tpu_custom_call.1']
    #allocation5 [shape = 'u8[393216]{0}', space=vmem, size = 0x60000, scoped, tag = 'input window, operand 2, single buffered']
    #allocation6 [shape = 's32[1]{0}', space=sflag, size = 0x4, scoped, tag = 'scoped memory for tpu_custom_call.1']
    #allocation7 [shape = 'u8[393216]{0}', space=vmem, size = 0x60000, scoped, tag = 'output window, operand 0']
    %8 = vsyncpa [#allocation3], 0
    %s9 = scalar_lea.sflag [#allocation3], 1
    %10 = vsyncpa %s9, 0
    %11 = vsyncpa [#allocation6], 0
    %12 = vsyncpa [#allocation4], 0
    %s13 = scalar_lea.sflag [#allocation4], 1
    %14 = vsyncpa %s13, 0
    loop: start=0, step=1, limit=6
    $region2: #{tpu_custom_call.1} parent=1 // loop_pre_header
      _
    $region3: #{tpu_custom_call.1} parent=1 // loop_header
      %s16 = sphi 0, %s20
      %p17 = scmp.ge.s32.totalorder %s16, 6
      %s23 = sphi 0, %s35
      %s24 = sphi 0, %s31
      %s25 = sphi 0, %s23
      %s26 = sphi 0, %s24
      %s27 = sphi 0, %s25
      %s28 = sphi 0, %s26
      %s40 = sphi 0, %s42
      %s43 = sphi 0, %s40
      %s44 = sphi 0, %s43
      %s60 = sphi 0, %s44
      %s64 = sphi 0, %s64
      %s66 = sphi 0, %s64
      %s67 = sphi 0, %s66
      %s81 = sphi 0, %s67
      %s85 = sphi 0, %s85
      %s87 = sphi 0, %s85
      %s88 = sphi 0, %s87
      %s102 = sphi 0, %s88
      %s110 = sphi 0, %s112
      %s113 = sphi 0, %s110
      %s114 = sphi 0, %s113
      %s130 = sphi 0, %s114
    $region4: #{tpu_custom_call.1} parent=1 // loop_header_branch
      %19 = sbr.rel (%p17) target = $region8
    $region5: #{tpu_custom_call.1} parent=1 // loop_body
      %s21 = ssub.s32 %s16, 1
      %s22 = ssub.s32 %s16, 2
      %s29 = sadd.s32 1, %s24
      %p30 = scmp.ge.s32.totalorder %s29, 2
      %s31 = scalar_select %p30, 0, %s29
      %s32 = sadd.s32 1, %s23
      %s33 = scalar_select %p30, %s32, %s23
      %p34 = scmp.ge.s32.totalorder %s33, 2
      %s35 = scalar_select %p34, 0, %s33
      %s36 = ssub.s32 %s23, %s35
      %s37 = ssub.s32 %s24, %s31
      %s38 = sor.u32 %s36, %s37
      %p39 = scmp.eq.s32.totalorder %s38, 0
      %s41 = sadd.s32 %s40, 1
      %s42 = scalar_select %p39, %s40, %s41
      %p45 = pneg %p39
      %p46 = scmp.eq.s32.totalorder %s16, 3
      %p47 = por %p45, %p46
      %p48 = scmp.ne.s32.totalorder %s40, %s43
      %p49 = scmp.eq.s32.totalorder %s16, 0
      %p50 = por %p48, %p49
      %p51 = scmp.ne.s32.totalorder %s40, %s43
      %p52 = scmp.eq.s32.totalorder %s21, 3
      %p53 = por %p51, %p52
      %p54 = scmp.ne.s32.totalorder %s43, %s44
      %p55 = scmp.eq.s32.totalorder %s21, 0
      %p56 = por %p54, %p55
      %p57 = scmp.ne.s32.totalorder %s43, %s44
      %p58 = scmp.eq.s32.totalorder %s22, 3
      %p59 = por %p57, %p58
      %p61 = scmp.ne.s32.totalorder %s44, %s60
      %p62 = scmp.eq.s32.totalorder %s22, 0
      %p63 = por %p61, %p62
      %s65 = sadd.s32 %s64, 1
      %p68 = scmp.eq.s32.totalorder %s16, 3
      %p69 = scmp.ne.s32.totalorder %s64, %s66
      %p70 = scmp.eq.s32.totalorder %s16, 0
      %p71 = por %p69, %p70
      %p72 = scmp.ne.s32.totalorder %s64, %s66
      %p73 = scmp.eq.s32.totalorder %s21, 3
      %p74 = por %p72, %p73
      %p75 = scmp.ne.s32.totalorder %s66, %s67
      %p76 = scmp.eq.s32.totalorder %s21, 0
      %p77 = por %p75, %p76
      %p78 = scmp.ne.s32.totalorder %s66, %s67
      %p79 = scmp.eq.s32.totalorder %s22, 3
      %p80 = por %p78, %p79
      %p82 = scmp.ne.s32.totalorder %s67, %s81
      %p83 = scmp.eq.s32.totalorder %s22, 0
      %p84 = por %p82, %p83
      %s86 = sadd.s32 %s85, 1
      %p89 = scmp.eq.s32.totalorder %s16, 3
      %p90 = scmp.ne.s32.totalorder %s85, %s87
      %p91 = scmp.eq.s32.totalorder %s16, 0
      %p92 = por %p90, %p91
      %p93 = scmp.ne.s32.totalorder %s85, %s87
      %p94 = scmp.eq.s32.totalorder %s21, 3
      %p95 = por %p93, %p94
      %p96 = scmp.ne.s32.totalorder %s87, %s88
      %p97 = scmp.eq.s32.totalorder %s21, 0
      %p98 = por %p96, %p97
      %p99 = scmp.ne.s32.totalorder %s87, %s88
      %p100 = scmp.eq.s32.totalorder %s22, 3
      %p101 = por %p99, %p100
      %p103 = scmp.ne.s32.totalorder %s88, %s102
      %p104 = scmp.eq.s32.totalorder %s22, 0
      %p105 = por %p103, %p104
      %s106 = ssub.s32 %s23, %s35
      %s107 = ssub.s32 %s24, %s31
      %s108 = sor.u32 %s106, %s107
      %p109 = scmp.eq.s32.totalorder %s108, 0
      %s111 = sadd.s32 %s110, 1
      %s112 = scalar_select %p109, %s110, %s111
      %p115 = pneg %p109
      %p116 = scmp.eq.s32.totalorder %s16, 3
      %p117 = por %p115, %p116
      %p118 = scmp.ne.s32.totalorder %s110, %s113
      %p119 = scmp.eq.s32.totalorder %s16, 0
      %p120 = por %p118, %p119
      %p121 = scmp.ne.s32.totalorder %s110, %s113
      %p122 = scmp.eq.s32.totalorder %s21, 3
      %p123 = por %p121, %p122
      %p124 = scmp.ne.s32.totalorder %s113, %s114
      %p125 = scmp.eq.s32.totalorder %s21, 0
      %p126 = por %p124, %p125
      %p127 = scmp.ne.s32.totalorder %s113, %s114
      %p128 = scmp.eq.s32.totalorder %s22, 3
      %p129 = por %p127, %p128
      %p131 = scmp.ne.s32.totalorder %s114, %s130
      %p132 = scmp.eq.s32.totalorder %s22, 0
      %p133 = por %p131, %p132
      %p134 = scmp.le.s32.totalorder 1, %s16
      %p135 = scmp.lt.s32.totalorder %s16, 5
      %p136 = pnand %p134, %p135
      %p137 = pneg %p136
      // Predicated region
      $region9: #{tpu_custom_call.1} parent=5 // pred_check
        _
      $region10: #{tpu_custom_call.1} parent=5 // pred_check_branch
        %139 = sbr.rel (%p136) target = $region12
      $region11: #{tpu_custom_call.1} parent=5 // pred_region
        %s140 = ssub.s32 %s16, 1
        // Predicated region
        $region13: #{tpu_custom_call.1} parent=11 // pred_check
          %p141 = pneg %p77
        $region14: #{tpu_custom_call.1} parent=11 // pred_check_branch
          %143 = sbr.rel (%p141) target = $region16
        $region15: #{tpu_custom_call.1} parent=11 // pred_region
          _
        $region16: #{tpu_custom_call.1} parent=11 // pred_fallthru
          _
        // Predicated region
        $region17: #{tpu_custom_call.1} parent=11 // pred_check
          %p144 = pneg %p98
        $region18: #{tpu_custom_call.1} parent=11 // pred_check_branch
          %146 = sbr.rel (%p144) target = $region20
        $region19: #{tpu_custom_call.1} parent=11 // pred_region
          %s148 = ssub.s32 12288, 12288
          %149 = vsyncadd [#allocation6], %s148
          %s150 = sshll.u32 [#allocation5], 4
          %s151 = int_to_ptr.vmem [resolvable:$true] %s150
          %156 = dma.hbm_to_vmem [thread:$0]  %s2, 12288, %s151, [#allocation6], 384, 384, 24
        $region20: #{tpu_custom_call.1} parent=11 // pred_fallthru
          _
      $region12: #{tpu_custom_call.1} parent=5 // pred_fallthru
        _
      %p157 = scmp.lt.s32.totalorder %s16, 4
      // Predicated region
      $region21: #{tpu_custom_call.1} parent=5 // pred_check
        %p158 = pneg %p157
      $region22: #{tpu_custom_call.1} parent=5 // pred_check_branch
        %160 = sbr.rel (%p158) target = $region24
      $region23: #{tpu_custom_call.1} parent=5 // pred_region
        // Predicated region
        $region25: #{tpu_custom_call.1} parent=23 // pred_check
          %p161 = pneg %p50
        $region26: #{tpu_custom_call.1} parent=23 // pred_check_branch
          %163 = sbr.rel (%p161) target = $region28
        $region27: #{tpu_custom_call.1} parent=23 // pred_region
          %s164 = sand.u32 %s40, 1
          %s165 = scalar_lea.sflag [#allocation3], %s164
          %s166 = sand.u32 %s40, 1
          %s167 = smul.addr %s166, 256
          %s168 = scalar_lea.vmem [#allocation2], %s167
          %s169 = smul.u32 16, %s24
          %s171 = ssub.s32 4096, 4096
          %172 = vsyncadd %s165, %s171
          %s173 = smul.addr %s169, 2
          %s174 = smul.addr %s23, 64
          %s175 = sadd.s32 %s173, %s174
          %s176 = smul.addr %s175, 128
          %s177 = scalar_lea.hbm %s0, %s176
          %s178 = sshll.u32 %s168, 4
          %s179 = int_to_ptr.vmem [resolvable:$true] %s178
          %184 = dma.hbm_to_vmem [thread:$0]  %s177, 4096, %s179, %s165, 256, 256, 16
        $region28: #{tpu_custom_call.1} parent=23 // pred_fallthru
          _
      $region24: #{tpu_custom_call.1} parent=5 // pred_fallthru
        _
      %p185 = scmp.le.s32.totalorder 1, %s16
      %p186 = scmp.lt.s32.totalorder %s16, 5
      %p187 = pnand %p185, %p186
      %p188 = pneg %p187
      // Predicated region
      $region29: #{tpu_custom_call.1} parent=5 // pred_check
        _
      $region30: #{tpu_custom_call.1} parent=5 // pred_check_branch
        %190 = sbr.rel (%p187) target = $region32
      $region31: #{tpu_custom_call.1} parent=5 // pred_region
        %s191 = ssub.s32 %s16, 1
        %s192 = sand.u32 %s43, 1
        %s193 = scalar_lea.sflag [#allocation3], %s192
        %s194 = sand.u32 %s43, 1
        %s195 = smul.addr %s194, 256
        %s196 = scalar_lea.vmem [#allocation2], %s195
        // Predicated region
        $region33: #{tpu_custom_call.1} parent=31 // pred_check
          %p197 = pneg %p56
        $region34: #{tpu_custom_call.1} parent=31 // pred_check_branch
          %199 = sbr.rel (%p197) target = $region36
        $region35: #{tpu_custom_call.1} parent=31 // pred_region
          %200 = dma.done %s193, 4096
        $region36: #{tpu_custom_call.1} parent=31 // pred_fallthru
          _
        // Predicated region
        $region37: #{tpu_custom_call.1} parent=31 // pred_check
          %p201 = pneg %p98
        $region38: #{tpu_custom_call.1} parent=31 // pred_check_branch
          %203 = sbr.rel (%p201) target = $region40
        $region39: #{tpu_custom_call.1} parent=31 // pred_region
          %204 = dma.done [#allocation6], 12288
        $region40: #{tpu_custom_call.1} parent=31 // pred_fallthru
          _
        %s205 = sand.u32 %s43, 1
        %s206 = scalar_lea.sflag [#allocation3], %s205
        %s207 = sand.u32 %s43, 1
        %s208 = smul.addr %s207, 256
        %s209 = scalar_lea.vmem [#allocation2], %s208
        %p210 = pneg %p56
        %p211 = pneg %p53
        %p212 = pneg %p77
        %p213 = pneg %p74
        %p214 = pneg %p98
        %p215 = pneg %p95
        %p216 = pneg %p126
        %p217 = pneg %p123
        %s218 = sand.u32 %s113, 1
        %s219 = scalar_lea.sflag [#allocation4], %s218
        %s220 = sand.u32 %s113, 1
        %s221 = smul.addr %s220, 384
        %s222 = scalar_lea.vmem [#allocation7], %s221
        %s223 = smul.u32 16, %s26
        %s224 = smul.u32 16, %s26
        %v225 = vld [vmem:[%s196] sm:$0xff]
        %v226 = vld [vmem:[%s196 + $0x8] sm:$0xff]
        %v227 = vld [vmem:[%s196 + $0x10] sm:$0xff]
        %v228 = vld [vmem:[%s196 + $0x18] sm:$0xff]
        %v229 = vld [vmem:[%s196 + $0x20] sm:$0xff]
        %v230 = vld [vmem:[%s196 + $0x28] sm:$0xff]
        %v231 = vld [vmem:[%s196 + $0x30] sm:$0xff]
        %v232 = vld [vmem:[%s196 + $0x38] sm:$0xff]
        %v233 = vld [vmem:[%s196 + $0x40] sm:$0xff]
        %v234 = vld [vmem:[%s196 + $0x48] sm:$0xff]
        %v235 = vld [vmem:[%s196 + $0x50] sm:$0xff]
        %v236 = vld [vmem:[%s196 + $0x58] sm:$0xff]
        %v237 = vld [vmem:[%s196 + $0x60] sm:$0xff]
        %v238 = vld [vmem:[%s196 + $0x68] sm:$0xff]
        %v239 = vld [vmem:[%s196 + $0x70] sm:$0xff]
        %v240 = vld [vmem:[%s196 + $0x78] sm:$0xff]
        %v241 = vld [vmem:[%s196 + $0x80] sm:$0xff]
        %v242 = vld [vmem:[%s196 + $0x88] sm:$0xff]
        %v243 = vld [vmem:[%s196 + $0x90] sm:$0xff]
        %v244 = vld [vmem:[%s196 + $0x98] sm:$0xff]
        %v245 = vld [vmem:[%s196 + $0xa0] sm:$0xff]
        %v246 = vld [vmem:[%s196 + $0xa8] sm:$0xff]
        %v247 = vld [vmem:[%s196 + $0xb0] sm:$0xff]
        %v248 = vld [vmem:[%s196 + $0xb8] sm:$0xff]
        %v249 = vld [vmem:[%s196 + $0xc0] sm:$0xff]
        %v250 = vld [vmem:[%s196 + $0xc8] sm:$0xff]
        %v251 = vld [vmem:[%s196 + $0xd0] sm:$0xff]
        %v252 = vld [vmem:[%s196 + $0xd8] sm:$0xff]
        %v253 = vld [vmem:[%s196 + $0xe0] sm:$0xff]
        %v254 = vld [vmem:[%s196 + $0xe8] sm:$0xff]
        %v255 = vld [vmem:[%s196 + $0xf0] sm:$0xff]
        %v256 = vld [vmem:[%s196 + $0xf8] sm:$0xff]
        %v257 = vmul.f32 %v225, %v225
        %v258 = vmul.f32 %v226, %v226
        %v259 = vmul.f32 %v227, %v227
        %v260 = vmul.f32 %v228, %v228
        %v261 = vmul.f32 %v229, %v229
        %v262 = vmul.f32 %v230, %v230
        %v263 = vmul.f32 %v231, %v231
        %v264 = vmul.f32 %v232, %v232
        %v265 = vmul.f32 %v233, %v233
        %v266 = vmul.f32 %v234, %v234
        %v267 = vmul.f32 %v235, %v235
        %v268 = vmul.f32 %v236, %v236
        %v269 = vmul.f32 %v237, %v237
        %v270 = vmul.f32 %v238, %v238
        %v271 = vmul.f32 %v239, %v239
        %v272 = vmul.f32 %v240, %v240
        %v273 = vmul.f32 %v241, %v241
        %v274 = vmul.f32 %v242, %v242
        %v275 = vmul.f32 %v243, %v243
        %v276 = vmul.f32 %v244, %v244
        %v277 = vmul.f32 %v245, %v245
        %v278 = vmul.f32 %v246, %v246
        %v279 = vmul.f32 %v247, %v247
        %v280 = vmul.f32 %v248, %v248
        %v281 = vmul.f32 %v249, %v249
        %v282 = vmul.f32 %v250, %v250
        %v283 = vmul.f32 %v251, %v251
        %v284 = vmul.f32 %v252, %v252
        %v285 = vmul.f32 %v253, %v253
        %v286 = vmul.f32 %v254, %v254
        %v287 = vmul.f32 %v255, %v255
        %v288 = vmul.f32 %v256, %v256
        %v289 = vadd.f32 %v257, %v258
        %290 = vadd.xlane.f32.xlu0 %v289
        %v291 = vpop.xlane.xlu0 %290
        %v292 = vadd.f32 %v259, %v260
        %293 = vadd.xlane.f32.xlu0 %v292
        %v294 = vpop.xlane.xlu0 %293
        %v295 = vadd.f32 %v261, %v262
        %296 = vadd.xlane.f32.xlu0 %v295
        %v297 = vpop.xlane.xlu0 %296
        %v298 = vadd.f32 %v263, %v264
        %299 = vadd.xlane.f32.xlu0 %v298
        %v300 = vpop.xlane.xlu0 %299
        %v301 = vadd.f32 %v265, %v266
        %302 = vadd.xlane.f32.xlu0 %v301
        %v303 = vpop.xlane.xlu0 %302
        %v304 = vadd.f32 %v267, %v268
        %305 = vadd.xlane.f32.xlu0 %v304
        %v306 = vpop.xlane.xlu0 %305
        %v307 = vadd.f32 %v269, %v270
        %308 = vadd.xlane.f32.xlu0 %v307
        %v309 = vpop.xlane.xlu0 %308
        %v310 = vadd.f32 %v271, %v272
        %311 = vadd.xlane.f32.xlu0 %v310
        %v312 = vpop.xlane.xlu0 %311
        %v313 = vadd.f32 %v273, %v274
        %314 = vadd.xlane.f32.xlu0 %v313
        %v315 = vpop.xlane.xlu0 %314
        %v316 = vadd.f32 %v275, %v276
        %317 = vadd.xlane.f32.xlu0 %v316
        %v318 = vpop.xlane.xlu0 %317
        %v319 = vadd.f32 %v277, %v278
        %320 = vadd.xlane.f32.xlu0 %v319
        %v321 = vpop.xlane.xlu0 %320
        %v322 = vadd.f32 %v279, %v280
        %323 = vadd.xlane.f32.xlu0 %v322
        %v324 = vpop.xlane.xlu0 %323
        %v325 = vadd.f32 %v281, %v282
        %326 = vadd.xlane.f32.xlu0 %v325
        %v327 = vpop.xlane.xlu0 %326
        %v328 = vadd.f32 %v283, %v284
        %329 = vadd.xlane.f32.xlu0 %v328
        %v330 = vpop.xlane.xlu0 %329
        %v331 = vadd.f32 %v285, %v286
        %332 = vadd.xlane.f32.xlu0 %v331
        %v333 = vpop.xlane.xlu0 %332
        %v334 = vadd.f32 %v287, %v288
        %335 = vadd.xlane.f32.xlu0 %v334
        %v336 = vpop.xlane.xlu0 %335
        %v337 = vrcp.pop 256.0
        %v338 = vmul.f32 %v291, %v337
        %v339 = vmul.f32 %v294, %v337
        %v340 = vmul.f32 %v297, %v337
        %v341 = vmul.f32 %v300, %v337
        %v342 = vmul.f32 %v303, %v337
        %v343 = vmul.f32 %v306, %v337
        %v344 = vmul.f32 %v309, %v337
        %v345 = vmul.f32 %v312, %v337
        %v346 = vmul.f32 %v315, %v337
        %v347 = vmul.f32 %v318, %v337
        %v348 = vmul.f32 %v321, %v337
        %v349 = vmul.f32 %v324, %v337
        %v350 = vmul.f32 %v327, %v337
        %v351 = vmul.f32 %v330, %v337
        %v352 = vmul.f32 %v333, %v337
        %v353 = vmul.f32 %v336, %v337
        %v354 = vadd.f32 %v338, 1e-05
        %v355 = vadd.f32 %v339, 1e-05
        %v356 = vadd.f32 %v340, 1e-05
        %v357 = vadd.f32 %v341, 1e-05
        %v358 = vadd.f32 %v342, 1e-05
        %v359 = vadd.f32 %v343, 1e-05
        %v360 = vadd.f32 %v344, 1e-05
        %v361 = vadd.f32 %v345, 1e-05
        %v362 = vadd.f32 %v346, 1e-05
        %v363 = vadd.f32 %v347, 1e-05
        %v364 = vadd.f32 %v348, 1e-05
        %v365 = vadd.f32 %v349, 1e-05
        %v366 = vadd.f32 %v350, 1e-05
        %v367 = vadd.f32 %v351, 1e-05
        %v368 = vadd.f32 %v352, 1e-05
        %v369 = vadd.f32 %v353, 1e-05
        %v370 = vrsqrt.pop %v354
        %v371 = vrsqrt.pop %v355
        %v372 = vrsqrt.pop %v356
        %v373 = vrsqrt.pop %v357
        %v374 = vrsqrt.pop %v358
        %v375 = vrsqrt.pop %v359
        %v376 = vrsqrt.pop %v360
        %v377 = vrsqrt.pop %v361
        %v378 = vrsqrt.pop %v362
        %v379 = vrsqrt.pop %v363
        %v380 = vrsqrt.pop %v364
        %v381 = vrsqrt.pop %v365
        %v382 = vrsqrt.pop %v366
        %v383 = vrsqrt.pop %v367
        %v384 = vrsqrt.pop %v368
        %v385 = vrsqrt.pop %v369
        %v386 = vld [vmem:[%s1] sm:$0x3]
        %v387 = vmul.f32 %v225, %v370
        %v388 = vmul.f32 %v226, %v370
        %v389 = vmul.f32 %v227, %v371
        %v390 = vmul.f32 %v228, %v371
        %v391 = vmul.f32 %v229, %v372
        %v392 = vmul.f32 %v230, %v372
        %v393 = vmul.f32 %v231, %v373
        %v394 = vmul.f32 %v232, %v373
        %v395 = vmul.f32 %v233, %v374
        %v396 = vmul.f32 %v234, %v374
        %v397 = vmul.f32 %v235, %v375
        %v398 = vmul.f32 %v236, %v375
        %v399 = vmul.f32 %v237, %v376
        %v400 = vmul.f32 %v238, %v376
        %v401 = vmul.f32 %v239, %v377
        %v402 = vmul.f32 %v240, %v377
        %v403 = vmul.f32 %v241, %v378
        %v404 = vmul.f32 %v242, %v378
        %v405 = vmul.f32 %v243, %v379
        %v406 = vmul.f32 %v244, %v379
        %v407 = vmul.f32 %v245, %v380
        %v408 = vmul.f32 %v246, %v380
        %v409 = vmul.f32 %v247, %v381
        %v410 = vmul.f32 %v248, %v381
        %v411 = vmul.f32 %v249, %v382
        %v412 = vmul.f32 %v250, %v382
        %v413 = vmul.f32 %v251, %v383
        %v414 = vmul.f32 %v252, %v383
        %v415 = vmul.f32 %v253, %v384
        %v416 = vmul.f32 %v254, %v384
        %v417 = vmul.f32 %v255, %v385
        %v418 = vmul.f32 %v256, %v385
        %v420 = vlaneseq
        %v421 = vshrl.u32 %v420, 7
        %v422 = vsub.s32 0, %v421
        %v423 = vrot.slane %v386, %v422
        %v424 = vlaneseq
        %v425 = vshrl.u32 %v424, 7
        %v426 = vsub.s32 1, %v425
        %v427 = vrot.slane %v386, %v426
        %v430 = vmul.f32 %v423, %v387
        %v431 = vmul.f32 %v427, %v388
        %v432 = vmul.f32 %v423, %v389
        %v433 = vmul.f32 %v427, %v390
        %v434 = vmul.f32 %v423, %v391
        %v435 = vmul.f32 %v427, %v392
        %v436 = vmul.f32 %v423, %v393
        %v437 = vmul.f32 %v427, %v394
        %v438 = vmul.f32 %v423, %v395
        %v439 = vmul.f32 %v427, %v396
        %v440 = vmul.f32 %v423, %v397
        %v441 = vmul.f32 %v427, %v398
        %v442 = vmul.f32 %v423, %v399
        %v443 = vmul.f32 %v427, %v400
        %v444 = vmul.f32 %v423, %v401
        %v445 = vmul.f32 %v427, %v402
        %v446 = vmul.f32 %v423, %v403
        %v447 = vmul.f32 %v427, %v404
        %v448 = vmul.f32 %v423, %v405
        %v449 = vmul.f32 %v427, %v406
        %v450 = vmul.f32 %v423, %v407
        %v451 = vmul.f32 %v427, %v408
        %v452 = vmul.f32 %v423, %v409
        %v453 = vmul.f32 %v427, %v410
        %v454 = vmul.f32 %v423, %v411
        %v455 = vmul.f32 %v427, %v412
        %v456 = vmul.f32 %v423, %v413
        %v457 = vmul.f32 %v427, %v414
        %v458 = vmul.f32 %v423, %v415
        %v459 = vmul.f32 %v427, %v416
        %v460 = vmul.f32 %v423, %v417
        %v461 = vmul.f32 %v427, %v418
        %v462 = vpack.c.bf16 %v432, %v430
        %v463 = vpack.c.bf16 %v433, %v431
        %v464 = vpack.c.bf16 %v436, %v434
        %v465 = vpack.c.bf16 %v437, %v435
        %v466 = vpack.c.bf16 %v440, %v438
        %v467 = vpack.c.bf16 %v441, %v439
        %v468 = vpack.c.bf16 %v444, %v442
        %v469 = vpack.c.bf16 %v445, %v443
        %v470 = vpack.c.bf16 %v448, %v446
        %v471 = vpack.c.bf16 %v449, %v447
        %v472 = vpack.c.bf16 %v452, %v450
        %v473 = vpack.c.bf16 %v453, %v451
        %v474 = vpack.c.bf16 %v456, %v454
        %v475 = vpack.c.bf16 %v457, %v455
        %v476 = vpack.c.bf16 %v460, %v458
        %v477 = vpack.c.bf16 %v461, %v459
        %v478 = vld [vmem:[#allocation5] sm:$0xff]
        %v479 = vld [vmem:[#allocation5 + $0x8] sm:$0xff]
        %v480 = vld [vmem:[#allocation5 + $0x10] sm:$0xff]
        %v481 = vld [vmem:[#allocation5 + $0x18] sm:$0xff]
        %v482 = vld [vmem:[#allocation5 + $0x20] sm:$0xff]
        %v483 = vld [vmem:[#allocation5 + $0x28] sm:$0xff]
        %v484 = vld [vmem:[#allocation5 + $0x30] sm:$0xff]
        %v485 = vld [vmem:[#allocation5 + $0x38] sm:$0xff]
        %v486 = vld [vmem:[#allocation5 + $0x40] sm:$0xff]
        %v487 = vld [vmem:[#allocation5 + $0x48] sm:$0xff]
        %v488 = vld [vmem:[#allocation5 + $0x50] sm:$0xff]
        %v489 = vld [vmem:[#allocation5 + $0x58] sm:$0xff]
        %v490 = vld [vmem:[#allocation5 + $0x60] sm:$0xff]
        %v491 = vld [vmem:[#allocation5 + $0x68] sm:$0xff]
        %v492 = vld [vmem:[#allocation5 + $0x70] sm:$0xff]
        %v493 = vld [vmem:[#allocation5 + $0x78] sm:$0xff]
        %v494 = vld [vmem:[#allocation5 + $0x80] sm:$0xff]
        %v495 = vld [vmem:[#allocation5 + $0x88] sm:$0xff]
        %v496 = vld [vmem:[#allocation5 + $0x90] sm:$0xff]
        %v497 = vld [vmem:[#allocation5 + $0x98] sm:$0xff]
        %v498 = vld [vmem:[#allocation5 + $0xa0] sm:$0xff]
        %v499 = vld [vmem:[#allocation5 + $0xa8] sm:$0xff]
        %v500 = vld [vmem:[#allocation5 + $0xb0] sm:$0xff]
        %v501 = vld [vmem:[#allocation5 + $0xb8] sm:$0xff]
        %v502 = vld [vmem:[#allocation5 + $0xc0] sm:$0xff]
        %v503 = vld [vmem:[#allocation5 + $0xc8] sm:$0xff]
        %v504 = vld [vmem:[#allocation5 + $0xd0] sm:$0xff]
        %v505 = vld [vmem:[#allocation5 + $0xd8] sm:$0xff]
        %v506 = vld [vmem:[#allocation5 + $0xe0] sm:$0xff]
        %v507 = vld [vmem:[#allocation5 + $0xe8] sm:$0xff]
        %v508 = vld [vmem:[#allocation5 + $0xf0] sm:$0xff]
        %v509 = vld [vmem:[#allocation5 + $0xf8] sm:$0xff]
        %v510 = vld [vmem:[#allocation5 + $0x100] sm:$0xff]
        %v511 = vld [vmem:[#allocation5 + $0x108] sm:$0xff]
        %v512 = vld [vmem:[#allocation5 + $0x110] sm:$0xff]
        %v513 = vld [vmem:[#allocation5 + $0x118] sm:$0xff]
        %v514 = vld [vmem:[#allocation5 + $0x120] sm:$0xff]
        %v515 = vld [vmem:[#allocation5 + $0x128] sm:$0xff]
        %v516 = vld [vmem:[#allocation5 + $0x130] sm:$0xff]
        %v517 = vld [vmem:[#allocation5 + $0x138] sm:$0xff]
        %v518 = vld [vmem:[#allocation5 + $0x140] sm:$0xff]
        %v519 = vld [vmem:[#allocation5 + $0x148] sm:$0xff]
        %v520 = vld [vmem:[#allocation5 + $0x150] sm:$0xff]
        %v521 = vld [vmem:[#allocation5 + $0x158] sm:$0xff]
        %v522 = vld [vmem:[#allocation5 + $0x160] sm:$0xff]
        %v523 = vld [vmem:[#allocation5 + $0x168] sm:$0xff]
        %v524 = vld [vmem:[#allocation5 + $0x170] sm:$0xff]
        %v525 = vld [vmem:[#allocation5 + $0x178] sm:$0xff]
        %v526 = vld [vmem:[#allocation5 + $0x180] sm:$0xff]
        %v527 = vld [vmem:[#allocation5 + $0x188] sm:$0xff]
        %v528 = vld [vmem:[#allocation5 + $0x190] sm:$0xff]
        %v529 = vld [vmem:[#allocation5 + $0x198] sm:$0xff]
        %v530 = vld [vmem:[#allocation5 + $0x1a0] sm:$0xff]
        %v531 = vld [vmem:[#allocation5 + $0x1a8] sm:$0xff]
        %v532 = vld [vmem:[#allocation5 + $0x1b0] sm:$0xff]
        %v533 = vld [vmem:[#allocation5 + $0x1b8] sm:$0xff]
        %v534 = vld [vmem:[#allocation5 + $0x1c0] sm:$0xff]
        %v535 = vld [vmem:[#allocation5 + $0x1c8] sm:$0xff]
        %v536 = vld [vmem:[#allocation5 + $0x1d0] sm:$0xff]
        %v537 = vld [vmem:[#allocation5 + $0x1d8] sm:$0xff]
        %v538 = vld [vmem:[#allocation5 + $0x1e0] sm:$0xff]
        %v539 = vld [vmem:[#allocation5 + $0x1e8] sm:$0xff]
        %v540 = vld [vmem:[#allocation5 + $0x1f0] sm:$0xff]
        %v541 = vld [vmem:[#allocation5 + $0x1f8] sm:$0xff]
        %v542 = vld [vmem:[#allocation5 + $0x200] sm:$0xff]
        %v543 = vld [vmem:[#allocation5 + $0x208] sm:$0xff]
        %v544 = vld [vmem:[#allocation5 + $0x210] sm:$0xff]
        %v545 = vld [vmem:[#allocation5 + $0x218] sm:$0xff]
        %v546 = vld [vmem:[#allocation5 + $0x220] sm:$0xff]
        %v547 = vld [vmem:[#allocation5 + $0x228] sm:$0xff]
        %v548 = vld [vmem:[#allocation5 + $0x230] sm:$0xff]
        %v549 = vld [vmem:[#allocation5 + $0x238] sm:$0xff]
        %v550 = vld [vmem:[#allocation5 + $0x240] sm:$0xff]
        %v551 = vld [vmem:[#allocation5 + $0x248] sm:$0xff]
        %v552 = vld [vmem:[#allocation5 + $0x250] sm:$0xff]
        %v553 = vld [vmem:[#allocation5 + $0x258] sm:$0xff]
        %v554 = vld [vmem:[#allocation5 + $0x260] sm:$0xff]
        %v555 = vld [vmem:[#allocation5 + $0x268] sm:$0xff]
        %v556 = vld [vmem:[#allocation5 + $0x270] sm:$0xff]
        %v557 = vld [vmem:[#allocation5 + $0x278] sm:$0xff]
        %v558 = vld [vmem:[#allocation5 + $0x280] sm:$0xff]
        %v559 = vld [vmem:[#allocation5 + $0x288] sm:$0xff]
        %v560 = vld [vmem:[#allocation5 + $0x290] sm:$0xff]
        %v561 = vld [vmem:[#allocation5 + $0x298] sm:$0xff]
        %v562 = vld [vmem:[#allocation5 + $0x2a0] sm:$0xff]
        %v563 = vld [vmem:[#allocation5 + $0x2a8] sm:$0xff]
        %v564 = vld [vmem:[#allocation5 + $0x2b0] sm:$0xff]
        %v565 = vld [vmem:[#allocation5 + $0x2b8] sm:$0xff]
        %v566 = vld [vmem:[#allocation5 + $0x2c0] sm:$0xff]
        %v567 = vld [vmem:[#allocation5 + $0x2c8] sm:$0xff]
        %v568 = vld [vmem:[#allocation5 + $0x2d0] sm:$0xff]
        %v569 = vld [vmem:[#allocation5 + $0x2d8] sm:$0xff]
        %v570 = vld [vmem:[#allocation5 + $0x2e0] sm:$0xff]
        %v571 = vld [vmem:[#allocation5 + $0x2e8] sm:$0xff]
        %v572 = vld [vmem:[#allocation5 + $0x2f0] sm:$0xff]
        %v573 = vld [vmem:[#allocation5 + $0x2f8] sm:$0xff]
        %v670 = vunpack.c.l.b16 %v478
        %v671 = vunpack.c.h.b16 %v478
        %v672 = vunpack.c.l.b16 %v479
        %v673 = vunpack.c.h.b16 %v479
        %v674 = vunpack.c.l.b16 %v480
        %v675 = vunpack.c.h.b16 %v480
        %v676 = vunpack.c.l.b16 %v481
        %v677 = vunpack.c.h.b16 %v481
        %v678 = vunpack.c.l.b16 %v482
        %v679 = vunpack.c.h.b16 %v482
        %v680 = vunpack.c.l.b16 %v483
        %v681 = vunpack.c.h.b16 %v483
        %v682 = vunpack.c.l.b16 %v484
        %v683 = vunpack.c.h.b16 %v484
        %v684 = vunpack.c.l.b16 %v485
        %v685 = vunpack.c.h.b16 %v485
        %v686 = vunpack.c.l.b16 %v486
        %v687 = vunpack.c.h.b16 %v486
        %v688 = vunpack.c.l.b16 %v487
        %v689 = vunpack.c.h.b16 %v487
        %v690 = vunpack.c.l.b16 %v488
        %v691 = vunpack.c.h.b16 %v488
        %v692 = vunpack.c.l.b16 %v489
        %v693 = vunpack.c.h.b16 %v489
        %v694 = vunpack.c.l.b16 %v490
        %v695 = vunpack.c.h.b16 %v490
        %v696 = vunpack.c.l.b16 %v491
        %v697 = vunpack.c.h.b16 %v491
        %v698 = vunpack.c.l.b16 %v492
        %v699 = vunpack.c.h.b16 %v492
        %v700 = vunpack.c.l.b16 %v493
        %v701 = vunpack.c.h.b16 %v493
        %v702 = vunpack.c.l.b16 %v494
        %v703 = vunpack.c.h.b16 %v494
        %v704 = vunpack.c.l.b16 %v495
        %v705 = vunpack.c.h.b16 %v495
        %v706 = vunpack.c.l.b16 %v496
        %v707 = vunpack.c.h.b16 %v496
        %v708 = vunpack.c.l.b16 %v497
        %v709 = vunpack.c.h.b16 %v497
        %v710 = vunpack.c.l.b16 %v498
        %v711 = vunpack.c.h.b16 %v498
        %v712 = vunpack.c.l.b16 %v499
        %v713 = vunpack.c.h.b16 %v499
        %v714 = vunpack.c.l.b16 %v500
        %v715 = vunpack.c.h.b16 %v500
        %v716 = vunpack.c.l.b16 %v501
        %v717 = vunpack.c.h.b16 %v501
        %v718 = vunpack.c.l.b16 %v502
        %v719 = vunpack.c.h.b16 %v502
        %v720 = vunpack.c.l.b16 %v503
        %v721 = vunpack.c.h.b16 %v503
        %v722 = vunpack.c.l.b16 %v504
        %v723 = vunpack.c.h.b16 %v504
        %v724 = vunpack.c.l.b16 %v505
        %v725 = vunpack.c.h.b16 %v505
        %v726 = vunpack.c.l.b16 %v506
        %v727 = vunpack.c.h.b16 %v506
        %v728 = vunpack.c.l.b16 %v507
        %v729 = vunpack.c.h.b16 %v507
        %v730 = vunpack.c.l.b16 %v508
        %v731 = vunpack.c.h.b16 %v508
        %v732 = vunpack.c.l.b16 %v509
        %v733 = vunpack.c.h.b16 %v509
        %v734 = vunpack.c.l.b16 %v510
        %v735 = vunpack.c.h.b16 %v510
        %v736 = vunpack.c.l.b16 %v511
        %v737 = vunpack.c.h.b16 %v511
        %v738 = vunpack.c.l.b16 %v512
        %v739 = vunpack.c.h.b16 %v512
        %v740 = vunpack.c.l.b16 %v513
        %v741 = vunpack.c.h.b16 %v513
        %v742 = vunpack.c.l.b16 %v514
        %v743 = vunpack.c.h.b16 %v514
        %v744 = vunpack.c.l.b16 %v515
        %v745 = vunpack.c.h.b16 %v515
        %v746 = vunpack.c.l.b16 %v516
        %v747 = vunpack.c.h.b16 %v516
        %v748 = vunpack.c.l.b16 %v517
        %v749 = vunpack.c.h.b16 %v517
        %v750 = vunpack.c.l.b16 %v518
        %v751 = vunpack.c.h.b16 %v518
        %v752 = vunpack.c.l.b16 %v519
        %v753 = vunpack.c.h.b16 %v519
        %v754 = vunpack.c.l.b16 %v520
        %v755 = vunpack.c.h.b16 %v520
        %v756 = vunpack.c.l.b16 %v521
        %v757 = vunpack.c.h.b16 %v521
        %v758 = vunpack.c.l.b16 %v522
        %v759 = vunpack.c.h.b16 %v522
        %v760 = vunpack.c.l.b16 %v523
        %v761 = vunpack.c.h.b16 %v523
        %v762 = vunpack.c.l.b16 %v524
        %v763 = vunpack.c.h.b16 %v524
        %v764 = vunpack.c.l.b16 %v525
        %v765 = vunpack.c.h.b16 %v525
        %v766 = vunpack.c.l.b16 %v526
        %v767 = vunpack.c.h.b16 %v526
        %v768 = vunpack.c.l.b16 %v527
        %v769 = vunpack.c.h.b16 %v527
        %v770 = vunpack.c.l.b16 %v528
        %v771 = vunpack.c.h.b16 %v528
        %v772 = vunpack.c.l.b16 %v529
        %v773 = vunpack.c.h.b16 %v529
        %v774 = vunpack.c.l.b16 %v530
        %v775 = vunpack.c.h.b16 %v530
        %v776 = vunpack.c.l.b16 %v531
        %v777 = vunpack.c.h.b16 %v531
        %v778 = vunpack.c.l.b16 %v532
        %v779 = vunpack.c.h.b16 %v532
        %v780 = vunpack.c.l.b16 %v533
        %v781 = vunpack.c.h.b16 %v533
        %v782 = vunpack.c.l.b16 %v534
        %v783 = vunpack.c.h.b16 %v534
        %v784 = vunpack.c.l.b16 %v535
        %v785 = vunpack.c.h.b16 %v535
        %v786 = vunpack.c.l.b16 %v536
        %v787 = vunpack.c.h.b16 %v536
        %v788 = vunpack.c.l.b16 %v537
        %v789 = vunpack.c.h.b16 %v537
        %v790 = vunpack.c.l.b16 %v538
        %v791 = vunpack.c.h.b16 %v538
        %v792 = vunpack.c.l.b16 %v539
        %v793 = vunpack.c.h.b16 %v539
        %v794 = vunpack.c.l.b16 %v540
        %v795 = vunpack.c.h.b16 %v540
        %v796 = vunpack.c.l.b16 %v541
        %v797 = vunpack.c.h.b16 %v541
        %v798 = vunpack.c.l.b16 %v542
        %v799 = vunpack.c.h.b16 %v542
        %v800 = vunpack.c.l.b16 %v543
        %v801 = vunpack.c.h.b16 %v543
        %v802 = vunpack.c.l.b16 %v544
        %v803 = vunpack.c.h.b16 %v544
        %v804 = vunpack.c.l.b16 %v545
        %v805 = vunpack.c.h.b16 %v545
        %v806 = vunpack.c.l.b16 %v546
        %v807 = vunpack.c.h.b16 %v546
        %v808 = vunpack.c.l.b16 %v547
        %v809 = vunpack.c.h.b16 %v547
        %v810 = vunpack.c.l.b16 %v548
        %v811 = vunpack.c.h.b16 %v548
        %v812 = vunpack.c.l.b16 %v549
        %v813 = vunpack.c.h.b16 %v549
        %v814 = vunpack.c.l.b16 %v550
        %v815 = vunpack.c.h.b16 %v550
        %v816 = vunpack.c.l.b16 %v551
        %v817 = vunpack.c.h.b16 %v551
        %v818 = vunpack.c.l.b16 %v552
        %v819 = vunpack.c.h.b16 %v552
        %v820 = vunpack.c.l.b16 %v553
        %v821 = vunpack.c.h.b16 %v553
        %v822 = vunpack.c.l.b16 %v554
        %v823 = vunpack.c.h.b16 %v554
        %v824 = vunpack.c.l.b16 %v555
        %v825 = vunpack.c.h.b16 %v555
        %v826 = vunpack.c.l.b16 %v556
        %v827 = vunpack.c.h.b16 %v556
        %v828 = vunpack.c.l.b16 %v557
        %v829 = vunpack.c.h.b16 %v557
        %v830 = vunpack.c.l.b16 %v558
        %v831 = vunpack.c.h.b16 %v558
        %v832 = vunpack.c.l.b16 %v559
        %v833 = vunpack.c.h.b16 %v559
        %v834 = vunpack.c.l.b16 %v560
        %v835 = vunpack.c.h.b16 %v560
        %v836 = vunpack.c.l.b16 %v561
        %v837 = vunpack.c.h.b16 %v561
        %v838 = vunpack.c.l.b16 %v562
        %v839 = vunpack.c.h.b16 %v562
        %v840 = vunpack.c.l.b16 %v563
        %v841 = vunpack.c.h.b16 %v563
        %v842 = vunpack.c.l.b16 %v564
        %v843 = vunpack.c.h.b16 %v564
        %v844 = vunpack.c.l.b16 %v565
        %v845 = vunpack.c.h.b16 %v565
        %v846 = vunpack.c.l.b16 %v566
        %v847 = vunpack.c.h.b16 %v566
        %v848 = vunpack.c.l.b16 %v567
        %v849 = vunpack.c.h.b16 %v567
        %v850 = vunpack.c.l.b16 %v568
        %v851 = vunpack.c.h.b16 %v568
        %v852 = vunpack.c.l.b16 %v569
        %v853 = vunpack.c.h.b16 %v569
        %v854 = vunpack.c.l.b16 %v570
        %v855 = vunpack.c.h.b16 %v570
        %v856 = vunpack.c.l.b16 %v571
        %v857 = vunpack.c.h.b16 %v571
        %v858 = vunpack.c.l.b16 %v572
        %v859 = vunpack.c.h.b16 %v572
        %v860 = vunpack.c.l.b16 %v573
        %v861 = vunpack.c.h.b16 %v573
        %v862 = vpack.c.b16 %v676, %v670
        %v863 = vpack.c.b16 %v677, %v671
        %v864 = vpack.c.b16 %v678, %v672
        %v865 = vpack.c.b16 %v679, %v673
        %v866 = vpack.c.b16 %v680, %v674
        %v867 = vpack.c.b16 %v681, %v675
        %v868 = vpack.c.b16 %v688, %v682
        %v869 = vpack.c.b16 %v689, %v683
        %v870 = vpack.c.b16 %v690, %v684
        %v871 = vpack.c.b16 %v691, %v685
        %v872 = vpack.c.b16 %v692, %v686
        %v873 = vpack.c.b16 %v693, %v687
        %v874 = vpack.c.b16 %v700, %v694
        %v875 = vpack.c.b16 %v701, %v695
        %v876 = vpack.c.b16 %v702, %v696
        %v877 = vpack.c.b16 %v703, %v697
        %v878 = vpack.c.b16 %v704, %v698
        %v879 = vpack.c.b16 %v705, %v699
        %v880 = vpack.c.b16 %v712, %v706
        %v881 = vpack.c.b16 %v713, %v707
        %v882 = vpack.c.b16 %v714, %v708
        %v883 = vpack.c.b16 %v715, %v709
        %v884 = vpack.c.b16 %v716, %v710
        %v885 = vpack.c.b16 %v717, %v711
        %v886 = vpack.c.b16 %v724, %v718
        %v887 = vpack.c.b16 %v725, %v719
        %v888 = vpack.c.b16 %v726, %v720
        %v889 = vpack.c.b16 %v727, %v721
        %v890 = vpack.c.b16 %v728, %v722
        %v891 = vpack.c.b16 %v729, %v723
        %v892 = vpack.c.b16 %v736, %v730
        %v893 = vpack.c.b16 %v737, %v731
        %v894 = vpack.c.b16 %v738, %v732
        %v895 = vpack.c.b16 %v739, %v733
        %v896 = vpack.c.b16 %v740, %v734
        %v897 = vpack.c.b16 %v741, %v735
        %v898 = vpack.c.b16 %v748, %v742
        %v899 = vpack.c.b16 %v749, %v743
        %v900 = vpack.c.b16 %v750, %v744
        %v901 = vpack.c.b16 %v751, %v745
        %v902 = vpack.c.b16 %v752, %v746
        %v903 = vpack.c.b16 %v753, %v747
        %v904 = vpack.c.b16 %v760, %v754
        %v905 = vpack.c.b16 %v761, %v755
        %v906 = vpack.c.b16 %v762, %v756
        %v907 = vpack.c.b16 %v763, %v757
        %v908 = vpack.c.b16 %v764, %v758
        %v909 = vpack.c.b16 %v765, %v759
        %v910 = vpack.c.b16 %v772, %v766
        %v911 = vpack.c.b16 %v773, %v767
        %v912 = vpack.c.b16 %v774, %v768
        %v913 = vpack.c.b16 %v775, %v769
        %v914 = vpack.c.b16 %v776, %v770
        %v915 = vpack.c.b16 %v777, %v771
        %v916 = vpack.c.b16 %v784, %v778
        %v917 = vpack.c.b16 %v785, %v779
        %v918 = vpack.c.b16 %v786, %v780
        %v919 = vpack.c.b16 %v787, %v781
        %v920 = vpack.c.b16 %v788, %v782
        %v921 = vpack.c.b16 %v789, %v783
        %v922 = vpack.c.b16 %v796, %v790
        %v923 = vpack.c.b16 %v797, %v791
        %v924 = vpack.c.b16 %v798, %v792
        %v925 = vpack.c.b16 %v799, %v793
        %v926 = vpack.c.b16 %v800, %v794
        %v927 = vpack.c.b16 %v801, %v795
        %v928 = vpack.c.b16 %v808, %v802
        %v929 = vpack.c.b16 %v809, %v803
        %v930 = vpack.c.b16 %v810, %v804
        %v931 = vpack.c.b16 %v811, %v805
        %v932 = vpack.c.b16 %v812, %v806
        %v933 = vpack.c.b16 %v813, %v807
        %v934 = vpack.c.b16 %v820, %v814
        %v935 = vpack.c.b16 %v821, %v815
        %v936 = vpack.c.b16 %v822, %v816
        %v937 = vpack.c.b16 %v823, %v817
        %v938 = vpack.c.b16 %v824, %v818
        %v939 = vpack.c.b16 %v825, %v819
        %v940 = vpack.c.b16 %v832, %v826
        %v941 = vpack.c.b16 %v833, %v827
        %v942 = vpack.c.b16 %v834, %v828
        %v943 = vpack.c.b16 %v835, %v829
        %v944 = vpack.c.b16 %v836, %v830
        %v945 = vpack.c.b16 %v837, %v831
        %v946 = vpack.c.b16 %v844, %v838
        %v947 = vpack.c.b16 %v845, %v839
        %v948 = vpack.c.b16 %v846, %v840
        %v949 = vpack.c.b16 %v847, %v841
        %v950 = vpack.c.b16 %v848, %v842
        %v951 = vpack.c.b16 %v849, %v843
        %v952 = vpack.c.b16 %v856, %v850
        %v953 = vpack.c.b16 %v857, %v851
        %v954 = vpack.c.b16 %v858, %v852
        %v955 = vpack.c.b16 %v859, %v853
        %v956 = vpack.c.b16 %v860, %v854
        %v957 = vpack.c.b16 %v861, %v855
        %1054 = vmatprep.subr.bf16.mxu0 %v863
        %1055 = vmatpush1.bf16.msra.mxu0 %v862
        %1056 = vmatprep.subr.bf16.mxu0 %v869
        %1057 = vmatpush1.bf16.msra.mxu0 %v868
        %1058 = vmatprep.subr.bf16.mxu0 %v875
        %1059 = vmatpush1.bf16.msra.mxu0 %v874
        %1060 = vmatprep.subr.bf16.mxu0 %v881
        %1061 = vmatpush1.bf16.msra.mxu0 %v880
        %1062 = vmatprep.subr.bf16.mxu0 %v887
        %1063 = vmatpush1.bf16.msra.mxu0 %v886
        %1064 = vmatprep.subr.bf16.mxu0 %v893
        %1065 = vmatpush1.bf16.msra.mxu0 %v892
        %1066 = vmatprep.subr.bf16.mxu0 %v899
        %1067 = vmatpush1.bf16.msra.mxu0 %v898
        %1068 = vmatprep.subr.bf16.mxu0 %v905
        %1069 = vmatpush1.bf16.msra.mxu0 %v904
        %1070 = vmatprep.subr.bf16.mxu0 %v911
        %1071 = vmatpush1.bf16.msra.mxu0 %v910
        %1072 = vmatprep.subr.bf16.mxu0 %v917
        %1073 = vmatpush1.bf16.msra.mxu0 %v916
        %1074 = vmatprep.subr.bf16.mxu0 %v923
        %1075 = vmatpush1.bf16.msra.mxu0 %v922
        %1076 = vmatprep.subr.bf16.mxu0 %v929
        %1077 = vmatpush1.bf16.msra.mxu0 %v928
        %1078 = vmatprep.subr.bf16.mxu0 %v935
        %1079 = vmatpush1.bf16.msra.mxu0 %v934
        %1080 = vmatprep.subr.bf16.mxu0 %v941
        %1081 = vmatpush1.bf16.msra.mxu0 %v940
        %1082 = vmatprep.subr.bf16.mxu0 %v947
        %1083 = vmatpush1.bf16.msra.mxu0 %v946
        %1084 = vmatprep.subr.bf16.mxu0 %v953
        %1085 = vmatpush1.bf16.msra.mxu0 %v952
        %1086 = vmatprep.mubr.bf16.mxu0 %v463
        %1087 = vmatmul.mubr.bf16.gmra.mrb[0].mxu0 %v462
        %v1088 = vpop.f32.mrb[0].mxu0
        %v1089 = vadd.f32 0.0, %v1088
        %v1090 = vpop.f32.mrb[0].mxu0
        %v1091 = vadd.f32 0.0, %v1090
        %v1092 = vpop.f32.mrb[0].mxu0
        %v1093 = vadd.f32 0.0, %v1092
        %v1094 = vpop.f32.mrb[0].mxu0
        %v1095 = vadd.f32 0.0, %v1094
        %1096 = vmatprep.mubr.bf16.mxu0 %v465
        %1097 = vmatmul.mubr.bf16.gmra.mrb[0].mxu0 %v464
        %v1098 = vpop.f32.mrb[0].mxu0
        %v1099 = vadd.f32 0.0, %v1098
        %v1100 = vpop.f32.mrb[0].mxu0
        %v1101 = vadd.f32 0.0, %v1100
        %v1102 = vpop.f32.mrb[0].mxu0
        %v1103 = vadd.f32 0.0, %v1102
        %v1104 = vpop.f32.mrb[0].mxu0
        %v1105 = vadd.f32 0.0, %v1104
        %1106 = vmatprep.mubr.bf16.mxu0 %v467
        %1107 = vmatmul.mubr.bf16.gmra.mrb[0].mxu0 %v466
        %v1108 = vpop.f32.mrb[0].mxu0
        %v1109 = vadd.f32 0.0, %v1108
        %v1110 = vpop.f32.mrb[0].mxu0
        %v1111 = vadd.f32 0.0, %v1110
        %v1112 = vpop.f32.mrb[0].mxu0
        %v1113 = vadd.f32 0.0, %v1112
        %v1114 = vpop.f32.mrb[0].mxu0
        %v1115 = vadd.f32 0.0, %v1114
        %1116 = vmatprep.mubr.bf16.mxu0 %v469
        %1117 = vmatmul.mubr.bf16.gmra.mrb[0].mxu0 %v468
        %v1118 = vpop.f32.mrb[0].mxu0
        %v1119 = vadd.f32 0.0, %v1118
        %v1120 = vpop.f32.mrb[0].mxu0
        %v1121 = vadd.f32 0.0, %v1120
        %v1122 = vpop.f32.mrb[0].mxu0
        %v1123 = vadd.f32 0.0, %v1122
        %v1124 = vpop.f32.mrb[0].mxu0
        %v1125 = vadd.f32 0.0, %v1124
        %1126 = vmatprep.mubr.bf16.mxu0 %v471
        %1127 = vmatmul.mubr.bf16.gmra.mrb[0].mxu0 %v470
        %v1128 = vpop.f32.mrb[0].mxu0
        %v1129 = vadd.f32 0.0, %v1128
        %v1130 = vpop.f32.mrb[0].mxu0
        %v1131 = vadd.f32 0.0, %v1130
        %v1132 = vpop.f32.mrb[0].mxu0
        %v1133 = vadd.f32 0.0, %v1132
        %v1134 = vpop.f32.mrb[0].mxu0
        %v1135 = vadd.f32 0.0, %v1134
        %1136 = vmatprep.mubr.bf16.mxu0 %v473
        %1137 = vmatmul.mubr.bf16.gmra.mrb[0].mxu0 %v472
        %v1138 = vpop.f32.mrb[0].mxu0
        %v1139 = vadd.f32 0.0, %v1138
        %v1140 = vpop.f32.mrb[0].mxu0
        %v1141 = vadd.f32 0.0, %v1140
        %v1142 = vpop.f32.mrb[0].mxu0
        %v1143 = vadd.f32 0.0, %v1142
        %v1144 = vpop.f32.mrb[0].mxu0
        %v1145 = vadd.f32 0.0, %v1144
        %1146 = vmatprep.mubr.bf16.mxu0 %v475
        %1147 = vmatmul.mubr.bf16.gmra.mrb[0].mxu0 %v474
        %v1148 = vpop.f32.mrb[0].mxu0
        %v1149 = vadd.f32 0.0, %v1148
        %v1150 = vpop.f32.mrb[0].mxu0
        %v1151 = vadd.f32 0.0, %v1150
        %v1152 = vpop.f32.mrb[0].mxu0
        %v1153 = vadd.f32 0.0, %v1152
        %v1154 = vpop.f32.mrb[0].mxu0
        %v1155 = vadd.f32 0.0, %v1154
        %1156 = vmatprep.mubr.bf16.mxu0 %v477
        %1157 = vmatmul.mubr.bf16.gmra.mrb[0].mxu0 %v476
        %v1158 = vpop.f32.mrb[0].mxu0
        %v1159 = vadd.f32 0.0, %v1158
        %v1160 = vpop.f32.mrb[0].mxu0
        %v1161 = vadd.f32 0.0, %v1160
        %v1162 = vpop.f32.mrb[0].mxu0
        %v1163 = vadd.f32 0.0, %v1162
        %v1164 = vpop.f32.mrb[0].mxu0
        %v1165 = vadd.f32 0.0, %v1164
        %1166 = vdwg.mxu0
        %1167 = vmatprep.subr.bf16.mxu0 %v865
        %1168 = vmatpush1.bf16.msra.mxu0 %v864
        %1169 = vmatprep.subr.bf16.mxu0 %v871
        %1170 = vmatpush1.bf16.msra.mxu0 %v870
        %1171 = vmatprep.subr.bf16.mxu0 %v877
        %1172 = vmatpush1.bf16.msra.mxu0 %v876
        %1173 = vmatprep.subr.bf16.mxu0 %v883
        %1174 = vmatpush1.bf16.msra.mxu0 %v882
        %1175 = vmatprep.subr.bf16.mxu0 %v889
        %1176 = vmatpush1.bf16.msra.mxu0 %v888
        %1177 = vmatprep.subr.bf16.mxu0 %v895
        %1178 = vmatpush1.bf16.msra.mxu0 %v894
        %1179 = vmatprep.subr.bf16.mxu0 %v901
        %1180 = vmatpush1.bf16.msra.mxu0 %v900
        %1181 = vmatprep.subr.bf16.mxu0 %v907
        %1182 = vmatpush1.bf16.msra.mxu0 %v906
        %1183 = vmatprep.subr.bf16.mxu0 %v913
        %1184 = vmatpush1.bf16.msra.mxu0 %v912
        %1185 = vmatprep.subr.bf16.mxu0 %v919
        %1186 = vmatpush1.bf16.msra.mxu0 %v918
        %1187 = vmatprep.subr.bf16.mxu0 %v925
        %1188 = vmatpush1.bf16.msra.mxu0 %v924
        %1189 = vmatprep.subr.bf16.mxu0 %v931
        %1190 = vmatpush1.bf16.msra.mxu0 %v930
        %1191 = vmatprep.subr.bf16.mxu0 %v937
        %1192 = vmatpush1.bf16.msra.mxu0 %v936
        %1193 = vmatprep.subr.bf16.mxu0 %v943
        %1194 = vmatpush1.bf16.msra.mxu0 %v942
        %1195 = vmatprep.subr.bf16.mxu0 %v949
        %1196 = vmatpush1.bf16.msra.mxu0 %v948
        %1197 = vmatprep.subr.bf16.mxu0 %v955
        %1198 = vmatpush1.bf16.msra.mxu0 %v954
        %1199 = vmatprep.mubr.bf16.mxu0 %v463
        %1200 = vmatmul.mubr.bf16.gmra.mrb[0].mxu0 %v462
        %v1201 = vpop.f32.mrb[0].mxu0
        %v1202 = vadd.f32 0.0, %v1201
        %v1203 = vpop.f32.mrb[0].mxu0
        %v1204 = vadd.f32 0.0, %v1203
        %v1205 = vpop.f32.mrb[0].mxu0
        %v1206 = vadd.f32 0.0, %v1205
        %v1207 = vpop.f32.mrb[0].mxu0
        %v1208 = vadd.f32 0.0, %v1207
        %1209 = vmatprep.mubr.bf16.mxu0 %v465
        %1210 = vmatmul.mubr.bf16.gmra.mrb[0].mxu0 %v464
        %v1211 = vpop.f32.mrb[0].mxu0
        %v1212 = vadd.f32 0.0, %v1211
        %v1213 = vpop.f32.mrb[0].mxu0
        %v1214 = vadd.f32 0.0, %v1213
        %v1215 = vpop.f32.mrb[0].mxu0
        %v1216 = vadd.f32 0.0, %v1215
        %v1217 = vpop.f32.mrb[0].mxu0
        %v1218 = vadd.f32 0.0, %v1217
        %1219 = vmatprep.mubr.bf16.mxu0 %v467
        %1220 = vmatmul.mubr.bf16.gmra.mrb[0].mxu0 %v466
        %v1221 = vpop.f32.mrb[0].mxu0
        %v1222 = vadd.f32 0.0, %v1221
        %v1223 = vpop.f32.mrb[0].mxu0
        %v1224 = vadd.f32 0.0, %v1223
        %v1225 = vpop.f32.mrb[0].mxu0
        %v1226 = vadd.f32 0.0, %v1225
        %v1227 = vpop.f32.mrb[0].mxu0
        %v1228 = vadd.f32 0.0, %v1227
        %1229 = vmatprep.mubr.bf16.mxu0 %v469
        %1230 = vmatmul.mubr.bf16.gmra.mrb[0].mxu0 %v468
        %v1231 = vpop.f32.mrb[0].mxu0
        %v1232 = vadd.f32 0.0, %v1231
        %v1233 = vpop.f32.mrb[0].mxu0
        %v1234 = vadd.f32 0.0, %v1233
        %v1235 = vpop.f32.mrb[0].mxu0
        %v1236 = vadd.f32 0.0, %v1235
        %v1237 = vpop.f32.mrb[0].mxu0
        %v1238 = vadd.f32 0.0, %v1237
        %1239 = vmatprep.mubr.bf16.mxu0 %v471
        %1240 = vmatmul.mubr.bf16.gmra.mrb[0].mxu0 %v470
        %v1241 = vpop.f32.mrb[0].mxu0
        %v1242 = vadd.f32 0.0, %v1241
        %v1243 = vpop.f32.mrb[0].mxu0
        %v1244 = vadd.f32 0.0, %v1243
        %v1245 = vpop.f32.mrb[0].mxu0
        %v1246 = vadd.f32 0.0, %v1245
        %v1247 = vpop.f32.mrb[0].mxu0
        %v1248 = vadd.f32 0.0, %v1247
        %1249 = vmatprep.mubr.bf16.mxu0 %v473
        %1250 = vmatmul.mubr.bf16.gmra.mrb[0].mxu0 %v472
        %v1251 = vpop.f32.mrb[0].mxu0
        %v1252 = vadd.f32 0.0, %v1251
        %v1253 = vpop.f32.mrb[0].mxu0
        %v1254 = vadd.f32 0.0, %v1253
        %v1255 = vpop.f32.mrb[0].mxu0
        %v1256 = vadd.f32 0.0, %v1255
        %v1257 = vpop.f32.mrb[0].mxu0
        %v1258 = vadd.f32 0.0, %v1257
        %1259 = vmatprep.mubr.bf16.mxu0 %v475
        %1260 = vmatmul.mubr.bf16.gmra.mrb[0].mxu0 %v474
        %v1261 = vpop.f32.mrb[0].mxu0
        %v1262 = vadd.f32 0.0, %v1261
        %v1263 = vpop.f32.mrb[0].mxu0
        %v1264 = vadd.f32 0.0, %v1263
        %v1265 = vpop.f32.mrb[0].mxu0
        %v1266 = vadd.f32 0.0, %v1265
        %v1267 = vpop.f32.mrb[0].mxu0
        %v1268 = vadd.f32 0.0, %v1267
        %1269 = vmatprep.mubr.bf16.mxu0 %v477
        %1270 = vmatmul.mubr.bf16.gmra.mrb[0].mxu0 %v476
        %v1271 = vpop.f32.mrb[0].mxu0
        %v1272 = vadd.f32 0.0, %v1271
        %v1273 = vpop.f32.mrb[0].mxu0
        %v1274 = vadd.f32 0.0, %v1273
        %v1275 = vpop.f32.mrb[0].mxu0
        %v1276 = vadd.f32 0.0, %v1275
        %v1277 = vpop.f32.mrb[0].mxu0
        %v1278 = vadd.f32 0.0, %v1277
        %1279 = vdwg.mxu0
        %1280 = vmatprep.subr.bf16.mxu0 %v867
        %1281 = vmatpush1.bf16.msra.mxu0 %v866
        %1282 = vmatprep.subr.bf16.mxu0 %v873
        %1283 = vmatpush1.bf16.msra.mxu0 %v872
        %1284 = vmatprep.subr.bf16.mxu0 %v879
        %1285 = vmatpush1.bf16.msra.mxu0 %v878
        %1286 = vmatprep.subr.bf16.mxu0 %v885
        %1287 = vmatpush1.bf16.msra.mxu0 %v884
        %1288 = vmatprep.subr.bf16.mxu0 %v891
        %1289 = vmatpush1.bf16.msra.mxu0 %v890
        %1290 = vmatprep.subr.bf16.mxu0 %v897
        %1291 = vmatpush1.bf16.msra.mxu0 %v896
        %1292 = vmatprep.subr.bf16.mxu0 %v903
        %1293 = vmatpush1.bf16.msra.mxu0 %v902
        %1294 = vmatprep.subr.bf16.mxu0 %v909
        %1295 = vmatpush1.bf16.msra.mxu0 %v908
        %1296 = vmatprep.subr.bf16.mxu0 %v915
        %1297 = vmatpush1.bf16.msra.mxu0 %v914
        %1298 = vmatprep.subr.bf16.mxu0 %v921
        %1299 = vmatpush1.bf16.msra.mxu0 %v920
        %1300 = vmatprep.subr.bf16.mxu0 %v927
        %1301 = vmatpush1.bf16.msra.mxu0 %v926
        %1302 = vmatprep.subr.bf16.mxu0 %v933
        %1303 = vmatpush1.bf16.msra.mxu0 %v932
        %1304 = vmatprep.subr.bf16.mxu0 %v939
        %1305 = vmatpush1.bf16.msra.mxu0 %v938
        %1306 = vmatprep.subr.bf16.mxu0 %v945
        %1307 = vmatpush1.bf16.msra.mxu0 %v944
        %1308 = vmatprep.subr.bf16.mxu0 %v951
        %1309 = vmatpush1.bf16.msra.mxu0 %v950
        %1310 = vmatprep.subr.bf16.mxu0 %v957
        %1311 = vmatpush1.bf16.msra.mxu0 %v956
        %1312 = vmatprep.mubr.bf16.mxu0 %v463
        %1313 = vmatmul.mubr.bf16.gmra.mrb[0].mxu0 %v462
        %v1314 = vpop.f32.mrb[0].mxu0
        %v1315 = vadd.f32 0.0, %v1314
        %v1316 = vpop.f32.mrb[0].mxu0
        %v1317 = vadd.f32 0.0, %v1316
        %v1318 = vpop.f32.mrb[0].mxu0
        %v1319 = vadd.f32 0.0, %v1318
        %v1320 = vpop.f32.mrb[0].mxu0
        %v1321 = vadd.f32 0.0, %v1320
        %1322 = vmatprep.mubr.bf16.mxu0 %v465
        %1323 = vmatmul.mubr.bf16.gmra.mrb[0].mxu0 %v464
        %v1324 = vpop.f32.mrb[0].mxu0
        %v1325 = vadd.f32 0.0, %v1324
        %v1326 = vpop.f32.mrb[0].mxu0
        %v1327 = vadd.f32 0.0, %v1326
        %v1328 = vpop.f32.mrb[0].mxu0
        %v1329 = vadd.f32 0.0, %v1328
        %v1330 = vpop.f32.mrb[0].mxu0
        %v1331 = vadd.f32 0.0, %v1330
        %1332 = vmatprep.mubr.bf16.mxu0 %v467
        %1333 = vmatmul.mubr.bf16.gmra.mrb[0].mxu0 %v466
        %v1334 = vpop.f32.mrb[0].mxu0
        %v1335 = vadd.f32 0.0, %v1334
        %v1336 = vpop.f32.mrb[0].mxu0
        %v1337 = vadd.f32 0.0, %v1336
        %v1338 = vpop.f32.mrb[0].mxu0
        %v1339 = vadd.f32 0.0, %v1338
        %v1340 = vpop.f32.mrb[0].mxu0
        %v1341 = vadd.f32 0.0, %v1340
        %1342 = vmatprep.mubr.bf16.mxu0 %v469
        %1343 = vmatmul.mubr.bf16.gmra.mrb[0].mxu0 %v468
        %v1344 = vpop.f32.mrb[0].mxu0
        %v1345 = vadd.f32 0.0, %v1344
        %v1346 = vpop.f32.mrb[0].mxu0
        %v1347 = vadd.f32 0.0, %v1346
        %v1348 = vpop.f32.mrb[0].mxu0
        %v1349 = vadd.f32 0.0, %v1348
        %v1350 = vpop.f32.mrb[0].mxu0
        %v1351 = vadd.f32 0.0, %v1350
        %1352 = vmatprep.mubr.bf16.mxu0 %v471
        %1353 = vmatmul.mubr.bf16.gmra.mrb[0].mxu0 %v470
        %v1354 = vpop.f32.mrb[0].mxu0
        %v1355 = vadd.f32 0.0, %v1354
        %v1356 = vpop.f32.mrb[0].mxu0
        %v1357 = vadd.f32 0.0, %v1356
        %v1358 = vpop.f32.mrb[0].mxu0
        %v1359 = vadd.f32 0.0, %v1358
        %v1360 = vpop.f32.mrb[0].mxu0
        %v1361 = vadd.f32 0.0, %v1360
        %1362 = vmatprep.mubr.bf16.mxu0 %v473
        %1363 = vmatmul.mubr.bf16.gmra.mrb[0].mxu0 %v472
        %v1364 = vpop.f32.mrb[0].mxu0
        %v1365 = vadd.f32 0.0, %v1364
        %v1366 = vpop.f32.mrb[0].mxu0
        %v1367 = vadd.f32 0.0, %v1366
        %v1368 = vpop.f32.mrb[0].mxu0
        %v1369 = vadd.f32 0.0, %v1368
        %v1370 = vpop.f32.mrb[0].mxu0
        %v1371 = vadd.f32 0.0, %v1370
        %1372 = vmatprep.mubr.bf16.mxu0 %v475
        %1373 = vmatmul.mubr.bf16.gmra.mrb[0].mxu0 %v474
        %v1374 = vpop.f32.mrb[0].mxu0
        %v1375 = vadd.f32 0.0, %v1374
        %v1376 = vpop.f32.mrb[0].mxu0
        %v1377 = vadd.f32 0.0, %v1376
        %v1378 = vpop.f32.mrb[0].mxu0
        %v1379 = vadd.f32 0.0, %v1378
        %v1380 = vpop.f32.mrb[0].mxu0
        %v1381 = vadd.f32 0.0, %v1380
        %1382 = vmatprep.mubr.bf16.mxu0 %v477
        %1383 = vmatmul.mubr.bf16.gmra.mrb[0].mxu0 %v476
        %v1384 = vpop.f32.mrb[0].mxu0
        %v1385 = vadd.f32 0.0, %v1384
        %v1386 = vpop.f32.mrb[0].mxu0
        %v1387 = vadd.f32 0.0, %v1386
        %v1388 = vpop.f32.mrb[0].mxu0
        %v1389 = vadd.f32 0.0, %v1388
        %v1390 = vpop.f32.mrb[0].mxu0
        %v1391 = vadd.f32 0.0, %v1390
        %1392 = vdwg.mxu0
        %v1393 = vpack.c.bf16 %v1093, %v1089
        %v1394 = vpack.c.bf16 %v1095, %v1091
        %v1395 = vpack.c.bf16 %v1206, %v1202
        %v1396 = vpack.c.bf16 %v1208, %v1204
        %v1397 = vpack.c.bf16 %v1319, %v1315
        %v1398 = vpack.c.bf16 %v1321, %v1317
        %v1399 = vpack.c.bf16 %v1103, %v1099
        %v1400 = vpack.c.bf16 %v1105, %v1101
        %v1401 = vpack.c.bf16 %v1216, %v1212
        %v1402 = vpack.c.bf16 %v1218, %v1214
        %v1403 = vpack.c.bf16 %v1329, %v1325
        %v1404 = vpack.c.bf16 %v1331, %v1327
        %v1405 = vpack.c.bf16 %v1113, %v1109
        %v1406 = vpack.c.bf16 %v1115, %v1111
        %v1407 = vpack.c.bf16 %v1226, %v1222
        %v1408 = vpack.c.bf16 %v1228, %v1224
        %v1409 = vpack.c.bf16 %v1339, %v1335
        %v1410 = vpack.c.bf16 %v1341, %v1337
        %v1411 = vpack.c.bf16 %v1123, %v1119
        %v1412 = vpack.c.bf16 %v1125, %v1121
        %v1413 = vpack.c.bf16 %v1236, %v1232
        %v1414 = vpack.c.bf16 %v1238, %v1234
        %v1415 = vpack.c.bf16 %v1349, %v1345
        %v1416 = vpack.c.bf16 %v1351, %v1347
        %v1417 = vpack.c.bf16 %v1133, %v1129
        %v1418 = vpack.c.bf16 %v1135, %v1131
        %v1419 = vpack.c.bf16 %v1246, %v1242
        %v1420 = vpack.c.bf16 %v1248, %v1244
        %v1421 = vpack.c.bf16 %v1359, %v1355
        %v1422 = vpack.c.bf16 %v1361, %v1357
        %v1423 = vpack.c.bf16 %v1143, %v1139
        %v1424 = vpack.c.bf16 %v1145, %v1141
        %v1425 = vpack.c.bf16 %v1256, %v1252
        %v1426 = vpack.c.bf16 %v1258, %v1254
        %v1427 = vpack.c.bf16 %v1369, %v1365
        %v1428 = vpack.c.bf16 %v1371, %v1367
        %v1429 = vpack.c.bf16 %v1153, %v1149
        %v1430 = vpack.c.bf16 %v1155, %v1151
        %v1431 = vpack.c.bf16 %v1266, %v1262
        %v1432 = vpack.c.bf16 %v1268, %v1264
        %v1433 = vpack.c.bf16 %v1379, %v1375
        %v1434 = vpack.c.bf16 %v1381, %v1377
        %v1435 = vpack.c.bf16 %v1163, %v1159
        %v1436 = vpack.c.bf16 %v1165, %v1161
        %v1437 = vpack.c.bf16 %v1276, %v1272
        %v1438 = vpack.c.bf16 %v1278, %v1274
        %v1439 = vpack.c.bf16 %v1389, %v1385
        %v1440 = vpack.c.bf16 %v1391, %v1387
        %v1489 = vunpack.c.l.b16 %v1393
        %v1490 = vunpack.c.l.b16 %v1394
        %v1491 = vunpack.c.l.b16 %v1395
        %v1492 = vunpack.c.l.b16 %v1396
        %v1493 = vunpack.c.l.b16 %v1397
        %v1494 = vunpack.c.l.b16 %v1398
        %v1495 = vunpack.c.h.b16 %v1393
        %v1496 = vunpack.c.h.b16 %v1394
        %v1497 = vunpack.c.h.b16 %v1395
        %v1498 = vunpack.c.h.b16 %v1396
        %v1499 = vunpack.c.h.b16 %v1397
        %v1500 = vunpack.c.h.b16 %v1398
        %v1501 = vunpack.c.l.b16 %v1399
        %v1502 = vunpack.c.l.b16 %v1400
        %v1503 = vunpack.c.l.b16 %v1401
        %v1504 = vunpack.c.l.b16 %v1402
        %v1505 = vunpack.c.l.b16 %v1403
        %v1506 = vunpack.c.l.b16 %v1404
        %v1507 = vunpack.c.h.b16 %v1399
        %v1508 = vunpack.c.h.b16 %v1400
        %v1509 = vunpack.c.h.b16 %v1401
        %v1510 = vunpack.c.h.b16 %v1402
        %v1511 = vunpack.c.h.b16 %v1403
        %v1512 = vunpack.c.h.b16 %v1404
        %v1513 = vunpack.c.l.b16 %v1405
        %v1514 = vunpack.c.l.b16 %v1406
        %v1515 = vunpack.c.l.b16 %v1407
        %v1516 = vunpack.c.l.b16 %v1408
        %v1517 = vunpack.c.l.b16 %v1409
        %v1518 = vunpack.c.l.b16 %v1410
        %v1519 = vunpack.c.h.b16 %v1405
        %v1520 = vunpack.c.h.b16 %v1406
        %v1521 = vunpack.c.h.b16 %v1407
        %v1522 = vunpack.c.h.b16 %v1408
        %v1523 = vunpack.c.h.b16 %v1409
        %v1524 = vunpack.c.h.b16 %v1410
        %v1525 = vunpack.c.l.b16 %v1411
        %v1526 = vunpack.c.l.b16 %v1412
        %v1527 = vunpack.c.l.b16 %v1413
        %v1528 = vunpack.c.l.b16 %v1414
        %v1529 = vunpack.c.l.b16 %v1415
        %v1530 = vunpack.c.l.b16 %v1416
        %v1531 = vunpack.c.h.b16 %v1411
        %v1532 = vunpack.c.h.b16 %v1412
        %v1533 = vunpack.c.h.b16 %v1413
        %v1534 = vunpack.c.h.b16 %v1414
        %v1535 = vunpack.c.h.b16 %v1415
        %v1536 = vunpack.c.h.b16 %v1416
        %v1537 = vunpack.c.l.b16 %v1417
        %v1538 = vunpack.c.l.b16 %v1418
        %v1539 = vunpack.c.l.b16 %v1419
        %v1540 = vunpack.c.l.b16 %v1420
        %v1541 = vunpack.c.l.b16 %v1421
        %v1542 = vunpack.c.l.b16 %v1422
        %v1543 = vunpack.c.h.b16 %v1417
        %v1544 = vunpack.c.h.b16 %v1418
        %v1545 = vunpack.c.h.b16 %v1419
        %v1546 = vunpack.c.h.b16 %v1420
        %v1547 = vunpack.c.h.b16 %v1421
        %v1548 = vunpack.c.h.b16 %v1422
        %v1549 = vunpack.c.l.b16 %v1423
        %v1550 = vunpack.c.l.b16 %v1424
        %v1551 = vunpack.c.l.b16 %v1425
        %v1552 = vunpack.c.l.b16 %v1426
        %v1553 = vunpack.c.l.b16 %v1427
        %v1554 = vunpack.c.l.b16 %v1428
        %v1555 = vunpack.c.h.b16 %v1423
        %v1556 = vunpack.c.h.b16 %v1424
        %v1557 = vunpack.c.h.b16 %v1425
        %v1558 = vunpack.c.h.b16 %v1426
        %v1559 = vunpack.c.h.b16 %v1427
        %v1560 = vunpack.c.h.b16 %v1428
        %v1561 = vunpack.c.l.b16 %v1429
        %v1562 = vunpack.c.l.b16 %v1430
        %v1563 = vunpack.c.l.b16 %v1431
        %v1564 = vunpack.c.l.b16 %v1432
        %v1565 = vunpack.c.l.b16 %v1433
        %v1566 = vunpack.c.l.b16 %v1434
        %v1567 = vunpack.c.h.b16 %v1429
        %v1568 = vunpack.c.h.b16 %v1430
        %v1569 = vunpack.c.h.b16 %v1431
        %v1570 = vunpack.c.h.b16 %v1432
        %v1571 = vunpack.c.h.b16 %v1433
        %v1572 = vunpack.c.h.b16 %v1434
        %v1573 = vunpack.c.l.b16 %v1435
        %v1574 = vunpack.c.l.b16 %v1436
        %v1575 = vunpack.c.l.b16 %v1437
        %v1576 = vunpack.c.l.b16 %v1438
        %v1577 = vunpack.c.l.b16 %v1439
        %v1578 = vunpack.c.l.b16 %v1440
        %v1579 = vunpack.c.h.b16 %v1435
        %v1580 = vunpack.c.h.b16 %v1436
        %v1581 = vunpack.c.h.b16 %v1437
        %v1582 = vunpack.c.h.b16 %v1438
        %v1583 = vunpack.c.h.b16 %v1439
        %v1584 = vunpack.c.h.b16 %v1440
        %v1585 = vpack.c.b16 %v1490, %v1489
        %v1586 = vpack.c.b16 %v1492, %v1491
        %v1587 = vpack.c.b16 %v1494, %v1493
        %v1588 = vpack.c.b16 %v1496, %v1495
        %v1589 = vpack.c.b16 %v1498, %v1497
        %v1590 = vpack.c.b16 %v1500, %v1499
        %v1591 = vpack.c.b16 %v1502, %v1501
        %v1592 = vpack.c.b16 %v1504, %v1503
        %v1593 = vpack.c.b16 %v1506, %v1505
        %v1594 = vpack.c.b16 %v1508, %v1507
        %v1595 = vpack.c.b16 %v1510, %v1509
        %v1596 = vpack.c.b16 %v1512, %v1511
        %v1597 = vpack.c.b16 %v1514, %v1513
        %v1598 = vpack.c.b16 %v1516, %v1515
        %v1599 = vpack.c.b16 %v1518, %v1517
        %v1600 = vpack.c.b16 %v1520, %v1519
        %v1601 = vpack.c.b16 %v1522, %v1521
        %v1602 = vpack.c.b16 %v1524, %v1523
        %v1603 = vpack.c.b16 %v1526, %v1525
        %v1604 = vpack.c.b16 %v1528, %v1527
        %v1605 = vpack.c.b16 %v1530, %v1529
        %v1606 = vpack.c.b16 %v1532, %v1531
        %v1607 = vpack.c.b16 %v1534, %v1533
        %v1608 = vpack.c.b16 %v1536, %v1535
        %v1609 = vpack.c.b16 %v1538, %v1537
        %v1610 = vpack.c.b16 %v1540, %v1539
        %v1611 = vpack.c.b16 %v1542, %v1541
        %v1612 = vpack.c.b16 %v1544, %v1543
        %v1613 = vpack.c.b16 %v1546, %v1545
        %v1614 = vpack.c.b16 %v1548, %v1547
        %v1615 = vpack.c.b16 %v1550, %v1549
        %v1616 = vpack.c.b16 %v1552, %v1551
        %v1617 = vpack.c.b16 %v1554, %v1553
        %v1618 = vpack.c.b16 %v1556, %v1555
        %v1619 = vpack.c.b16 %v1558, %v1557
        %v1620 = vpack.c.b16 %v1560, %v1559
        %v1621 = vpack.c.b16 %v1562, %v1561
        %v1622 = vpack.c.b16 %v1564, %v1563
        %v1623 = vpack.c.b16 %v1566, %v1565
        %v1624 = vpack.c.b16 %v1568, %v1567
        %v1625 = vpack.c.b16 %v1570, %v1569
        %v1626 = vpack.c.b16 %v1572, %v1571
        %v1627 = vpack.c.b16 %v1574, %v1573
        %v1628 = vpack.c.b16 %v1576, %v1575
        %v1629 = vpack.c.b16 %v1578, %v1577
        %v1630 = vpack.c.b16 %v1580, %v1579
        %v1631 = vpack.c.b16 %v1582, %v1581
        %v1632 = vpack.c.b16 %v1584, %v1583
        %1681 = vst [vmem:[%s222] sm:$0xff] %v1585
        %1682 = vst [vmem:[%s222 + $0x8] sm:$0xff] %v1586
        %1683 = vst [vmem:[%s222 + $0x10] sm:$0xff] %v1587
        %1684 = vst [vmem:[%s222 + $0x18] sm:$0xff] %v1588
        %1685 = vst [vmem:[%s222 + $0x20] sm:$0xff] %v1589
        %1686 = vst [vmem:[%s222 + $0x28] sm:$0xff] %v1590
        %1687 = vst [vmem:[%s222 + $0x30] sm:$0xff] %v1591
        %1688 = vst [vmem:[%s222 + $0x38] sm:$0xff] %v1592
        %1689 = vst [vmem:[%s222 + $0x40] sm:$0xff] %v1593
        %1690 = vst [vmem:[%s222 + $0x48] sm:$0xff] %v1594
        %1691 = vst [vmem:[%s222 + $0x50] sm:$0xff] %v1595
        %1692 = vst [vmem:[%s222 + $0x58] sm:$0xff] %v1596
        %1693 = vst [vmem:[%s222 + $0x60] sm:$0xff] %v1597
        %1694 = vst [vmem:[%s222 + $0x68] sm:$0xff] %v1598
        %1695 = vst [vmem:[%s222 + $0x70] sm:$0xff] %v1599
        %1696 = vst [vmem:[%s222 + $0x78] sm:$0xff] %v1600
        %1697 = vst [vmem:[%s222 + $0x80] sm:$0xff] %v1601
        %1698 = vst [vmem:[%s222 + $0x88] sm:$0xff] %v1602
        %1699 = vst [vmem:[%s222 + $0x90] sm:$0xff] %v1603
        %1700 = vst [vmem:[%s222 + $0x98] sm:$0xff] %v1604
        %1701 = vst [vmem:[%s222 + $0xa0] sm:$0xff] %v1605
        %1702 = vst [vmem:[%s222 + $0xa8] sm:$0xff] %v1606
        %1703 = vst [vmem:[%s222 + $0xb0] sm:$0xff] %v1607
        %1704 = vst [vmem:[%s222 + $0xb8] sm:$0xff] %v1608
        %1705 = vst [vmem:[%s222 + $0xc0] sm:$0xff] %v1609
        %1706 = vst [vmem:[%s222 + $0xc8] sm:$0xff] %v1610
        %1707 = vst [vmem:[%s222 + $0xd0] sm:$0xff] %v1611
        %1708 = vst [vmem:[%s222 + $0xd8] sm:$0xff] %v1612
        %1709 = vst [vmem:[%s222 + $0xe0] sm:$0xff] %v1613
        %1710 = vst [vmem:[%s222 + $0xe8] sm:$0xff] %v1614
        %1711 = vst [vmem:[%s222 + $0xf0] sm:$0xff] %v1615
        %1712 = vst [vmem:[%s222 + $0xf8] sm:$0xff] %v1616
        %1713 = vst [vmem:[%s222 + $0x100] sm:$0xff] %v1617
        %1714 = vst [vmem:[%s222 + $0x108] sm:$0xff] %v1618
        %1715 = vst [vmem:[%s222 + $0x110] sm:$0xff] %v1619
        %1716 = vst [vmem:[%s222 + $0x118] sm:$0xff] %v1620
        %1717 = vst [vmem:[%s222 + $0x120] sm:$0xff] %v1621
        %1718 = vst [vmem:[%s222 + $0x128] sm:$0xff] %v1622
        %1719 = vst [vmem:[%s222 + $0x130] sm:$0xff] %v1623
        %1720 = vst [vmem:[%s222 + $0x138] sm:$0xff] %v1624
        %1721 = vst [vmem:[%s222 + $0x140] sm:$0xff] %v1625
        %1722 = vst [vmem:[%s222 + $0x148] sm:$0xff] %v1626
        %1723 = vst [vmem:[%s222 + $0x150] sm:$0xff] %v1627
        %1724 = vst [vmem:[%s222 + $0x158] sm:$0xff] %v1628
        %1725 = vst [vmem:[%s222 + $0x160] sm:$0xff] %v1629
        %1726 = vst [vmem:[%s222 + $0x168] sm:$0xff] %v1630
        %1727 = vst [vmem:[%s222 + $0x170] sm:$0xff] %v1631
        %1728 = vst [vmem:[%s222 + $0x178] sm:$0xff] %v1632
        %s1729 = sand.u32 %s113, 1
        %s1730 = scalar_lea.sflag [#allocation4], %s1729
        %s1731 = sand.u32 %s113, 1
        %s1732 = smul.addr %s1731, 384
        %s1733 = scalar_lea.vmem [#allocation7], %s1732
        // Predicated region
        $region41: #{tpu_custom_call.1} parent=31 // pred_check
          %p1734 = pneg %p123
        $region42: #{tpu_custom_call.1} parent=31 // pred_check_branch
          %1736 = sbr.rel (%p1734) target = $region44
        $region43: #{tpu_custom_call.1} parent=31 // pred_region
          %s1737 = smul.u32 16, %s26
          %s1739 = ssub.s32 6144, 6144
          %1740 = vsyncadd %s1730, %s1739
          %s1741 = smul.addr %s1737, 6
          %s1742 = smul.addr %s25, 192
          %s1743 = sadd.s32 %s1741, %s1742
          %s1744 = smul.addr %s1743, 64
          %s1745 = scalar_lea.hbm %s3, %s1744
          %s1746 = sshll.u32 %s1733, 4
          %s1747 = int_to_ptr.vmem [resolvable:$true] %s1746
          %1752 = dma.vmem_to_hbm [thread:$0]  %s1747, 6144, %s1745, %s1730, 384, 384, 24
        $region44: #{tpu_custom_call.1} parent=31 // pred_fallthru
          _
      $region32: #{tpu_custom_call.1} parent=5 // pred_fallthru
        _
      %p1753 = scmp.le.s32.totalorder 2, %s16
      // Predicated region
      $region45: #{tpu_custom_call.1} parent=5 // pred_check
        %p1754 = pneg %p1753
      $region46: #{tpu_custom_call.1} parent=5 // pred_check_branch
        %1756 = sbr.rel (%p1754) target = $region48
      $region47: #{tpu_custom_call.1} parent=5 // pred_region
        %s1757 = ssub.s32 %s16, 2
        // Predicated region
        $region49: #{tpu_custom_call.1} parent=47 // pred_check
          %p1758 = pneg %p129
        $region50: #{tpu_custom_call.1} parent=47 // pred_check_branch
          %1760 = sbr.rel (%p1758) target = $region52
        $region51: #{tpu_custom_call.1} parent=47 // pred_region
          %s1761 = sand.u32 %s114, 1
          %s1762 = scalar_lea.sflag [#allocation4], %s1761
          %s1763 = sand.u32 %s114, 1
          %s1764 = smul.addr %s1763, 384
          %s1765 = scalar_lea.vmem [#allocation7], %s1764
          %1766 = dma.done %s1762, 6144
        $region52: #{tpu_custom_call.1} parent=47 // pred_fallthru
          _
      $region48: #{tpu_custom_call.1} parent=5 // pred_fallthru
        _
    $region6: #{tpu_custom_call.1} parent=1 // loop_footer
      %s20 = sadd.s32 1, %s16
    $region7: #{tpu_custom_call.1} parent=1 // loop_footer_branch
      %15 = sbr.rel target = $region3
    $region8: #{tpu_custom_call.1} parent=1 // loop_exit
      _
    %1767 = vsyncpa [#allocation3], 1
    %s1768 = scalar_lea.sflag [#allocation3], 1
    %1769 = vsyncpa %s1768, 1
    %1770 = vsyncpa [#allocation6], 1
    %1771 = vsyncpa [#allocation4], 1
    %s1772 = scalar_lea.sflag [#allocation4], 1
    %1773 = vsyncpa %s1772, 1

</llo_original>
